<compile_context>
chip_gen: v7x
topology: tpu7x:2x2x1
jax: 0.10.0
libtpu: 0.0.40
codegen_flags: <defaults>
</compile_context>

<pallas_src>
import jax
import jax.numpy as jnp
from jax import lax
from jax.experimental import pallas as pl
from jax.experimental.pallas import tpu as pltpu

# Problem sizes (small, consistent with the harmonic-oscillator NODE: dim=2).
B = 8      # batch (trajectories)
D = 4      # ODE state dimension (= 2 * dim)
H = 32     # MLP hidden width (nhidden)
T = 5      # number of integration time points
N_SUB = 8  # fixed RK4 sub-steps per output interval


def _elu(x):
    # ELU(alpha=1): x if x > 0 else exp(x) - 1  (clamp exp arg: `where` evaluates both sides)
    return jnp.where(x > 0, x, jnp.exp(jnp.minimum(x, 0.0)) - 1.0)


def _ode_block_kernel(times_ref,                 # scalar-prefetch: (T,) f32 in SMEM
                      x_ref,                     # (B, D) initial state
                      w1_ref, b1_ref,            # (D, H), (1, H)
                      w2_ref, b2_ref,            # (H, H), (1, H)
                      w3_ref, b3_ref,            # (H, D), (1, D)
                      out_ref):                  # (T, B, D) full output block
    # ---- load weights once; hoist bias broadcasts out of all loops ----------
    w1 = w1_ref[...]
    w2 = w2_ref[...]
    w3 = w3_ref[...]
    b1b = jnp.broadcast_to(b1_ref[...], (B, H))
    b2b = jnp.broadcast_to(b2_ref[...], (B, H))
    b3b = jnp.broadcast_to(b3_ref[...], (B, D))

    def f(y):
        # odefunc(t, y): t-independent MLP. All contractions are done as VPU
        # broadcast-MACs (column of y splat across lanes x weight row splat
        # across sublanes) -- no MXU round trip for these tiny K/N.
        # fc1: (B,D) @ (D,H), K = 4
        h = b1b
        for d in range(D):
            h = h + y[:, d:d + 1] * w1[d:d + 1, :]
        h = _elu(h)
        # fc2: (B,H) @ (H,H), K = 32
        h2 = b2b
        for d in range(H):
            h2 = h2 + h[:, d:d + 1] * w2[d:d + 1, :]
        h2 = _elu(h2)
        # fc3: (B,H) @ (H,D), K = 32, N = 4
        o = b3b
        for d in range(H):
            o = o + h2[:, d:d + 1] * w3[d:d + 1, :]
        return o

    x0 = x_ref[...]
    out_ref[0] = x0  # odeint returns the initial condition at times[0]

    def interval_body(k, y):
        t0 = times_ref[k - 1]
        t1 = times_ref[k]
        dt = (t1 - t0) / jnp.float32(N_SUB)

        def rk4_step(_, yc):
            k1 = f(yc)
            k2 = f(yc + 0.5 * dt * k1)
            k3 = f(yc + 0.5 * dt * k2)
            k4 = f(yc + dt * k3)
            return yc + (dt / 6.0) * (k1 + 2.0 * k2 + 2.0 * k3 + k4)

        # Bounded fori_loop: visible loop body, bounded vreg live ranges.
        y_new = lax.fori_loop(0, N_SUB, rk4_step, y)
        out_ref[k] = y_new            # VMEM store; HBM writeback happens once at end
        return y_new

    lax.fori_loop(1, T, interval_body, x0)


def ode_block_forward(x, integration_times, params):
    """Pallas equivalent of ODEBlock.forward: returns (T, B, D)."""
    w1, b1, w2, b2, w3, b3 = params

    grid_spec = pltpu.PrefetchScalarGridSpec(
        num_scalar_prefetch=1,          # integration_times -> SMEM
        grid=(1,),                      # single fused invocation (serial recurrence)
        in_specs=[
            pl.BlockSpec((B, D), lambda i, t: (0, 0)),   # x
            pl.BlockSpec((D, H), lambda i, t: (0, 0)),   # w1
            pl.BlockSpec((1, H), lambda i, t: (0, 0)),   # b1
            pl.BlockSpec((H, H), lambda i, t: (0, 0)),   # w2
            pl.BlockSpec((1, H), lambda i, t: (0, 0)),   # b2
            pl.BlockSpec((H, D), lambda i, t: (0, 0)),   # w3
            pl.BlockSpec((1, D), lambda i, t: (0, 0)),   # b3
        ],
        out_specs=pl.BlockSpec((T, B, D), lambda i, t: (0, 0, 0)),
    )

    return pl.pallas_call(
        _ode_block_kernel,
        out_shape=jax.ShapeDtypeStruct((T, B, D), jnp.float32),
        grid_spec=grid_spec,
        compiler_params=pltpu.CompilerParams(
            dimension_semantics=("arbitrary",),
        ),
    )(integration_times, x, w1, b1, w2, b2, w3, b3)


def _init_params(key):
    """Deterministic params, PyTorch-Linear-style uniform(+-1/sqrt(fan_in))."""
    ks = jax.random.split(key, 6)

    def lin(kw, kb, fan_in, fan_out):
        bound = 1.0 / jnp.sqrt(jnp.float32(fan_in))
        w = jax.random.uniform(kw, (fan_in, fan_out), jnp.float32, -bound, bound)
        b = jax.random.uniform(kb, (1, fan_out), jnp.float32, -bound, bound)
        return w, b

    w1, b1 = lin(ks[0], ks[1], D, H)
    w2, b2 = lin(ks[2], ks[3], H, H)
    w3, b3 = lin(ks[4], ks[5], H, D)
    return (w1, b1, w2, b2, w3, b3)


def _reference(x, times, params):
    """Pure-JAX fixed-step RK4 reference for correctness checking."""
    w1, b1, w2, b2, w3, b3 = params

    def f(y):
        h = _elu(y @ w1 + b1)
        h = _elu(h @ w2 + b2)
        return h @ w3 + b3

    outs = [x]
    y = x
    for k in range(1, T):
        dt = (times[k] - times[k - 1]) / N_SUB
        for _ in range(N_SUB):
            k1 = f(y)
            k2 = f(y + 0.5 * dt * k1)
            k3 = f(y + 0.5 * dt * k2)
            k4 = f(y + dt * k3)
            y = y + (dt / 6.0) * (k1 + 2.0 * k2 + 2.0 * k3 + k4)
        outs.append(y)
    return jnp.stack(outs, axis=0)


if __name__ == "__main__":
    key = jax.random.PRNGKey(0)
    kx, kp = jax.random.split(key)

    x = jax.random.normal(kx, (B, D), dtype=jnp.float32)
    integration_times = jnp.linspace(0.0, 1.0, T, dtype=jnp.float32)
    params = _init_params(kp)

    out = ode_block_forward(x, integration_times, params)
    out = jax.block_until_ready(out)

    assert out.shape == (T, B, D), out.shape
    ref = _reference(x, integration_times, params)
    assert jnp.allclose(out, ref, rtol=1e-4, atol=1e-4), float(jnp.max(jnp.abs(out - ref)))

    print("KERNEL_OK")
</pallas_src>

<mosaic_0001>
module attributes {stable_mosaic.version = 11 : i64} {
  func.func @_ode_block_kernel(%arg0: i32, %arg1: memref<5xf32, #tpu.memory_space<smem>>, %arg2: memref<8x4xf32, #tpu.memory_space<vmem>>, %arg3: memref<4x32xf32, #tpu.memory_space<vmem>>, %arg4: memref<1x32xf32, #tpu.memory_space<vmem>>, %arg5: memref<32x32xf32, #tpu.memory_space<vmem>>, %arg6: memref<1x32xf32, #tpu.memory_space<vmem>>, %arg7: memref<32x4xf32, #tpu.memory_space<vmem>>, %arg8: memref<1x4xf32, #tpu.memory_space<vmem>>, %arg9: memref<5x8x4xf32, #tpu.memory_space<vmem>>) attributes {dimension_semantics = [#tpu.dimension_semantics<arbitrary>], iteration_bounds = array<i64: 1>, scalar_prefetch = 1 : i64, scratch_operands = 0 : i64, tpu.core_type = #tpu.core_type<tc>, window_params = [{pipeline_mode = #tpu.pipeline_mode<synchronous>, transform_indices = @transform_0, window_bounds = array<i64: 8, 4>}, {pipeline_mode = #tpu.pipeline_mode<synchronous>, transform_indices = @transform_1, window_bounds = array<i64: 4, 32>}, {pipeline_mode = #tpu.pipeline_mode<synchronous>, transform_indices = @transform_2, window_bounds = array<i64: 1, 32>}, {pipeline_mode = #tpu.pipeline_mode<synchronous>, transform_indices = @transform_3, window_bounds = array<i64: 32, 32>}, {pipeline_mode = #tpu.pipeline_mode<synchronous>, transform_indices = @transform_4, window_bounds = array<i64: 1, 32>}, {pipeline_mode = #tpu.pipeline_mode<synchronous>, transform_indices = @transform_5, window_bounds = array<i64: 32, 4>}, {pipeline_mode = #tpu.pipeline_mode<synchronous>, transform_indices = @transform_6, window_bounds = array<i64: 1, 4>}, {pipeline_mode = #tpu.pipeline_mode<synchronous>, transform_indices = @transform_7, window_bounds = array<i64: 5, 8, 4>}]} {
    %c0 = arith.constant 0 : index
    %c0_0 = arith.constant 0 : index
    %0 = vector.load %arg3[%c0, %c0_0] : memref<4x32xf32, #tpu.memory_space<vmem>>, vector<4x32xf32>
    %c0_1 = arith.constant 0 : index
    %c0_2 = arith.constant 0 : index
    %1 = vector.load %arg5[%c0_1, %c0_2] : memref<32x32xf32, #tpu.memory_space<vmem>>, vector<32x32xf32>
    %c0_3 = arith.constant 0 : index
    %c0_4 = arith.constant 0 : index
    %2 = vector.load %arg7[%c0_3, %c0_4] : memref<32x4xf32, #tpu.memory_space<vmem>>, vector<32x4xf32>
    %c0_5 = arith.constant 0 : index
    %c0_6 = arith.constant 0 : index
    %3 = vector.load %arg4[%c0_5, %c0_6] : memref<1x32xf32, #tpu.memory_space<vmem>>, vector<1x32xf32>
    %4 = vector.shape_cast %3 : vector<1x32xf32> to vector<1x32xf32>
    %5 = vector.broadcast %4 : vector<1x32xf32> to vector<8x32xf32>
    %c0_7 = arith.constant 0 : index
    %c0_8 = arith.constant 0 : index
    %6 = vector.load %arg6[%c0_7, %c0_8] : memref<1x32xf32, #tpu.memory_space<vmem>>, vector<1x32xf32>
    %7 = vector.shape_cast %6 : vector<1x32xf32> to vector<1x32xf32>
    %8 = vector.broadcast %7 : vector<1x32xf32> to vector<8x32xf32>
    %c0_9 = arith.constant 0 : index
    %c0_10 = arith.constant 0 : index
    %9 = vector.load %arg8[%c0_9, %c0_10] : memref<1x4xf32, #tpu.memory_space<vmem>>, vector<1x4xf32>
    %10 = vector.shape_cast %9 : vector<1x4xf32> to vector<1x4xf32>
    %11 = vector.broadcast %10 : vector<1x4xf32> to vector<8x4xf32>
    %c0_11 = arith.constant 0 : index
    %c0_12 = arith.constant 0 : index
    %12 = vector.load %arg2[%c0_11, %c0_12] : memref<8x4xf32, #tpu.memory_space<vmem>>, vector<8x4xf32>
    %c0_13 = arith.constant 0 : index
    %c0_14 = arith.constant 0 : index
    %c0_15 = arith.constant 0 : index
    %13 = vector.load %arg9[%c0_13, %c0_14, %c0_15] : memref<5x8x4xf32, #tpu.memory_space<vmem>>, vector<1x8x4xf32>
    %14 = vector.shape_cast %13 : vector<1x8x4xf32> to vector<8x4xf32>
    %15 = vector.shape_cast %12 : vector<8x4xf32> to vector<1x8x4xf32>
    tpu.vector_store %arg9[%c0_13, %c0_14, %c0_15], %15 {strides = array<i32>} : memref<5x8x4xf32, #tpu.memory_space<vmem>>, vector<1x8x4xf32>,
    %c1_i32 = arith.constant 1 : i32
    %c4_i32 = arith.constant 4 : i32
    %16 = arith.addi %c1_i32, %c4_i32 : i32
    %c1_i32_16 = arith.constant 1 : i32
    %17 = scf.for %arg10 = %c1_i32 to %16 step %c1_i32_16 iter_args(%arg11 = %12) -> (vector<8x4xf32>)  : i32 {
      %c1_i32_18 = arith.constant 1 : i32
      %18 = arith.subi %arg10, %c1_i32_18 : i32
      %19 = arith.index_cast %18 : i32 to index
      %20 = memref.load %arg1[%19] : memref<5xf32, #tpu.memory_space<smem>>
      %21 = arith.index_cast %arg10 : i32 to index
      %22 = memref.load %arg1[%21] : memref<5xf32, #tpu.memory_space<smem>>
      %23 = arith.subf %22, %20 : f32
      %cst = arith.constant 8.000000e+00 : f32
      %24 = arith.divf %23, %cst : f32
      %c0_i32 = arith.constant 0 : i32
      %c8_i32 = arith.constant 8 : i32
      %25 = arith.addi %c0_i32, %c8_i32 : i32
      %c1_i32_19 = arith.constant 1 : i32
      %26 = scf.for %arg12 = %c0_i32 to %25 step %c1_i32_19 iter_args(%arg13 = %arg11) -> (vector<8x4xf32>)  : i32 {
        %31 = vector.extract_strided_slice %arg13 {offsets = [0, 0], sizes = [8, 1], strides = [1, 1]} : vector<8x4xf32> to vector<8x1xf32>
        %32 = vector.extract_strided_slice %0 {offsets = [0, 0], sizes = [1, 32], strides = [1, 1]} : vector<4x32xf32> to vector<1x32xf32>
        %33 = vector.broadcast %31 : vector<8x1xf32> to vector<8x32xf32>
        %34 = vector.broadcast %32 : vector<1x32xf32> to vector<8x32xf32>
        %35 = arith.mulf %33, %34 : vector<8x32xf32>
        %36 = arith.addf %5, %35 : vector<8x32xf32>
        %37 = vector.extract_strided_slice %arg13 {offsets = [0, 1], sizes = [8, 1], strides = [1, 1]} : vector<8x4xf32> to vector<8x1xf32>
        %38 = vector.extract_strided_slice %0 {offsets = [1, 0], sizes = [1, 32], strides = [1, 1]} : vector<4x32xf32> to vector<1x32xf32>
        %39 = vector.broadcast %37 : vector<8x1xf32> to vector<8x32xf32>
        %40 = vector.broadcast %38 : vector<1x32xf32> to vector<8x32xf32>
        %41 = arith.mulf %39, %40 : vector<8x32xf32>
        %42 = arith.addf %36, %41 : vector<8x32xf32>
        %43 = vector.extract_strided_slice %arg13 {offsets = [0, 2], sizes = [8, 1], strides = [1, 1]} : vector<8x4xf32> to vector<8x1xf32>
        %44 = vector.extract_strided_slice %0 {offsets = [2, 0], sizes = [1, 32], strides = [1, 1]} : vector<4x32xf32> to vector<1x32xf32>
        %45 = vector.broadcast %43 : vector<8x1xf32> to vector<8x32xf32>
        %46 = vector.broadcast %44 : vector<1x32xf32> to vector<8x32xf32>
        %47 = arith.mulf %45, %46 : vector<8x32xf32>
        %48 = arith.addf %42, %47 : vector<8x32xf32>
        %49 = vector.extract_strided_slice %arg13 {offsets = [0, 3], sizes = [8, 1], strides = [1, 1]} : vector<8x4xf32> to vector<8x1xf32>
        %50 = vector.extract_strided_slice %0 {offsets = [3, 0], sizes = [1, 32], strides = [1, 1]} : vector<4x32xf32> to vector<1x32xf32>
        %51 = vector.broadcast %49 : vector<8x1xf32> to vector<8x32xf32>
        %52 = vector.broadcast %50 : vector<1x32xf32> to vector<8x32xf32>
        %53 = arith.mulf %51, %52 : vector<8x32xf32>
        %54 = arith.addf %48, %53 : vector<8x32xf32>
        %cst_22 = arith.constant 0.000000e+00 : f32
        %55 = vector.broadcast %cst_22 : f32 to vector<8x32xf32>
        %56 = arith.cmpf ogt, %54, %55 : vector<8x32xf32>
        %cst_23 = arith.constant 0.000000e+00 : f32
        %57 = vector.broadcast %cst_23 : f32 to vector<8x32xf32>
        %58 = arith.minimumf %54, %57 : vector<8x32xf32>
        %59 = math.exp %58 : vector<8x32xf32>
        %cst_24 = arith.constant 1.000000e+00 : f32
        %60 = vector.broadcast %cst_24 : f32 to vector<8x32xf32>
        %61 = arith.subf %59, %60 : vector<8x32xf32>
        %62 = arith.select %56, %54, %61 : vector<8x32xi1>, vector<8x32xf32>
        %63 = vector.extract_strided_slice %62 {offsets = [0, 0], sizes = [8, 1], strides = [1, 1]} : vector<8x32xf32> to vector<8x1xf32>
        %64 = vector.extract_strided_slice %1 {offsets = [0, 0], sizes = [1, 32], strides = [1, 1]} : vector<32x32xf32> to vector<1x32xf32>
        %65 = vector.broadcast %63 : vector<8x1xf32> to vector<8x32xf32>
        %66 = vector.broadcast %64 : vector<1x32xf32> to vector<8x32xf32>
        %67 = arith.mulf %65, %66 : vector<8x32xf32>
        %68 = arith.addf %8, %67 : vector<8x32xf32>
        %69 = vector.extract_strided_slice %62 {offsets = [0, 1], sizes = [8, 1], strides = [1, 1]} : vector<8x32xf32> to vector<8x1xf32>
        %70 = vector.extract_strided_slice %1 {offsets = [1, 0], sizes = [1, 32], strides = [1, 1]} : vector<32x32xf32> to vector<1x32xf32>
        %71 = vector.broadcast %69 : vector<8x1xf32> to vector<8x32xf32>
        %72 = vector.broadcast %70 : vector<1x32xf32> to vector<8x32xf32>
        %73 = arith.mulf %71, %72 : vector<8x32xf32>
        %74 = arith.addf %68, %73 : vector<8x32xf32>
        %75 = vector.extract_strided_slice %62 {offsets = [0, 2], sizes = [8, 1], strides = [1, 1]} : vector<8x32xf32> to vector<8x1xf32>
        %76 = vector.extract_strided_slice %1 {offsets = [2, 0], sizes = [1, 32], strides = [1, 1]} : vector<32x32xf32> to vector<1x32xf32>
        %77 = vector.broadcast %75 : vector<8x1xf32> to vector<8x32xf32>
        %78 = vector.broadcast %76 : vector<1x32xf32> to vector<8x32xf32>
        %79 = arith.mulf %77, %78 : vector<8x32xf32>
        %80 = arith.addf %74, %79 : vector<8x32xf32>
        %81 = vector.extract_strided_slice %62 {offsets = [0, 3], sizes = [8, 1], strides = [1, 1]} : vector<8x32xf32> to vector<8x1xf32>
        %82 = vector.extract_strided_slice %1 {offsets = [3, 0], sizes = [1, 32], strides = [1, 1]} : vector<32x32xf32> to vector<1x32xf32>
        %83 = vector.broadcast %81 : vector<8x1xf32> to vector<8x32xf32>
        %84 = vector.broadcast %82 : vector<1x32xf32> to vector<8x32xf32>
        %85 = arith.mulf %83, %84 : vector<8x32xf32>
        %86 = arith.addf %80, %85 : vector<8x32xf32>
        %87 = vector.extract_strided_slice %62 {offsets = [0, 4], sizes = [8, 1], strides = [1, 1]} : vector<8x32xf32> to vector<8x1xf32>
        %88 = vector.extract_strided_slice %1 {offsets = [4, 0], sizes = [1, 32], strides = [1, 1]} : vector<32x32xf32> to vector<1x32xf32>
        %89 = vector.broadcast %87 : vector<8x1xf32> to vector<8x32xf32>
        %90 = vector.broadcast %88 : vector<1x32xf32> to vector<8x32xf32>
        %91 = arith.mulf %89, %90 : vector<8x32xf32>
        %92 = arith.addf %86, %91 : vector<8x32xf32>
        %93 = vector.extract_strided_slice %62 {offsets = [0, 5], sizes = [8, 1], strides = [1, 1]} : vector<8x32xf32> to vector<8x1xf32>
        %94 = vector.extract_strided_slice %1 {offsets = [5, 0], sizes = [1, 32], strides = [1, 1]} : vector<32x32xf32> to vector<1x32xf32>
        %95 = vector.broadcast %93 : vector<8x1xf32> to vector<8x32xf32>
        %96 = vector.broadcast %94 : vector<1x32xf32> to vector<8x32xf32>
        %97 = arith.mulf %95, %96 : vector<8x32xf32>
        %98 = arith.addf %92, %97 : vector<8x32xf32>
        %99 = vector.extract_strided_slice %62 {offsets = [0, 6], sizes = [8, 1], strides = [1, 1]} : vector<8x32xf32> to vector<8x1xf32>
        %100 = vector.extract_strided_slice %1 {offsets = [6, 0], sizes = [1, 32], strides = [1, 1]} : vector<32x32xf32> to vector<1x32xf32>
        %101 = vector.broadcast %99 : vector<8x1xf32> to vector<8x32xf32>
        %102 = vector.broadcast %100 : vector<1x32xf32> to vector<8x32xf32>
        %103 = arith.mulf %101, %102 : vector<8x32xf32>
        %104 = arith.addf %98, %103 : vector<8x32xf32>
        %105 = vector.extract_strided_slice %62 {offsets = [0, 7], sizes = [8, 1], strides = [1, 1]} : vector<8x32xf32> to vector<8x1xf32>
        %106 = vector.extract_strided_slice %1 {offsets = [7, 0], sizes = [1, 32], strides = [1, 1]} : vector<32x32xf32> to vector<1x32xf32>
        %107 = vector.broadcast %105 : vector<8x1xf32> to vector<8x32xf32>
        %108 = vector.broadcast %106 : vector<1x32xf32> to vector<8x32xf32>
        %109 = arith.mulf %107, %108 : vector<8x32xf32>
        %110 = arith.addf %104, %109 : vector<8x32xf32>
        %111 = vector.extract_strided_slice %62 {offsets = [0, 8], sizes = [8, 1], strides = [1, 1]} : vector<8x32xf32> to vector<8x1xf32>
        %112 = vector.extract_strided_slice %1 {offsets = [8, 0], sizes = [1, 32], strides = [1, 1]} : vector<32x32xf32> to vector<1x32xf32>
        %113 = vector.broadcast %111 : vector<8x1xf32> to vector<8x32xf32>
        %114 = vector.broadcast %112 : vector<1x32xf32> to vector<8x32xf32>
        %115 = arith.mulf %113, %114 : vector<8x32xf32>
        %116 = arith.addf %110, %115 : vector<8x32xf32>
        %117 = vector.extract_strided_slice %62 {offsets = [0, 9], sizes = [8, 1], strides = [1, 1]} : vector<8x32xf32> to vector<8x1xf32>
        %118 = vector.extract_strided_slice %1 {offsets = [9, 0], sizes = [1, 32], strides = [1, 1]} : vector<32x32xf32> to vector<1x32xf32>
        %119 = vector.broadcast %117 : vector<8x1xf32> to vector<8x32xf32>
        %120 = vector.broadcast %118 : vector<1x32xf32> to vector<8x32xf32>
        %121 = arith.mulf %119, %120 : vector<8x32xf32>
        %122 = arith.addf %116, %121 : vector<8x32xf32>
        %123 = vector.extract_strided_slice %62 {offsets = [0, 10], sizes = [8, 1], strides = [1, 1]} : vector<8x32xf32> to vector<8x1xf32>
        %124 = vector.extract_strided_slice %1 {offsets = [10, 0], sizes = [1, 32], strides = [1, 1]} : vector<32x32xf32> to vector<1x32xf32>
        %125 = vector.broadcast %123 : vector<8x1xf32> to vector<8x32xf32>
        %126 = vector.broadcast %124 : vector<1x32xf32> to vector<8x32xf32>
        %127 = arith.mulf %125, %126 : vector<8x32xf32>
        %128 = arith.addf %122, %127 : vector<8x32xf32>
        %129 = vector.extract_strided_slice %62 {offsets = [0, 11], sizes = [8, 1], strides = [1, 1]} : vector<8x32xf32> to vector<8x1xf32>
        %130 = vector.extract_strided_slice %1 {offsets = [11, 0], sizes = [1, 32], strides = [1, 1]} : vector<32x32xf32> to vector<1x32xf32>
        %131 = vector.broadcast %129 : vector<8x1xf32> to vector<8x32xf32>
        %132 = vector.broadcast %130 : vector<1x32xf32> to vector<8x32xf32>
        %133 = arith.mulf %131, %132 : vector<8x32xf32>
        %134 = arith.addf %128, %133 : vector<8x32xf32>
        %135 = vector.extract_strided_slice %62 {offsets = [0, 12], sizes = [8, 1], strides = [1, 1]} : vector<8x32xf32> to vector<8x1xf32>
        %136 = vector.extract_strided_slice %1 {offsets = [12, 0], sizes = [1, 32], strides = [1, 1]} : vector<32x32xf32> to vector<1x32xf32>
        %137 = vector.broadcast %135 : vector<8x1xf32> to vector<8x32xf32>
        %138 = vector.broadcast %136 : vector<1x32xf32> to vector<8x32xf32>
        %139 = arith.mulf %137, %138 : vector<8x32xf32>
        %140 = arith.addf %134, %139 : vector<8x32xf32>
        %141 = vector.extract_strided_slice %62 {offsets = [0, 13], sizes = [8, 1], strides = [1, 1]} : vector<8x32xf32> to vector<8x1xf32>
        %142 = vector.extract_strided_slice %1 {offsets = [13, 0], sizes = [1, 32], strides = [1, 1]} : vector<32x32xf32> to vector<1x32xf32>
        %143 = vector.broadcast %141 : vector<8x1xf32> to vector<8x32xf32>
        %144 = vector.broadcast %142 : vector<1x32xf32> to vector<8x32xf32>
        %145 = arith.mulf %143, %144 : vector<8x32xf32>
        %146 = arith.addf %140, %145 : vector<8x32xf32>
        %147 = vector.extract_strided_slice %62 {offsets = [0, 14], sizes = [8, 1], strides = [1, 1]} : vector<8x32xf32> to vector<8x1xf32>
        %148 = vector.extract_strided_slice %1 {offsets = [14, 0], sizes = [1, 32], strides = [1, 1]} : vector<32x32xf32> to vector<1x32xf32>
        %149 = vector.broadcast %147 : vector<8x1xf32> to vector<8x32xf32>
        %150 = vector.broadcast %148 : vector<1x32xf32> to vector<8x32xf32>
        %151 = arith.mulf %149, %150 : vector<8x32xf32>
        %152 = arith.addf %146, %151 : vector<8x32xf32>
        %153 = vector.extract_strided_slice %62 {offsets = [0, 15], sizes = [8, 1], strides = [1, 1]} : vector<8x32xf32> to vector<8x1xf32>
        %154 = vector.extract_strided_slice %1 {offsets = [15, 0], sizes = [1, 32], strides = [1, 1]} : vector<32x32xf32> to vector<1x32xf32>
        %155 = vector.broadcast %153 : vector<8x1xf32> to vector<8x32xf32>
        %156 = vector.broadcast %154 : vector<1x32xf32> to vector<8x32xf32>
        %157 = arith.mulf %155, %156 : vector<8x32xf32>
        %158 = arith.addf %152, %157 : vector<8x32xf32>
        %159 = vector.extract_strided_slice %62 {offsets = [0, 16], sizes = [8, 1], strides = [1, 1]} : vector<8x32xf32> to vector<8x1xf32>
        %160 = vector.extract_strided_slice %1 {offsets = [16, 0], sizes = [1, 32], strides = [1, 1]} : vector<32x32xf32> to vector<1x32xf32>
        %161 = vector.broadcast %159 : vector<8x1xf32> to vector<8x32xf32>
        %162 = vector.broadcast %160 : vector<1x32xf32> to vector<8x32xf32>
        %163 = arith.mulf %161, %162 : vector<8x32xf32>
        %164 = arith.addf %158, %163 : vector<8x32xf32>
        %165 = vector.extract_strided_slice %62 {offsets = [0, 17], sizes = [8, 1], strides = [1, 1]} : vector<8x32xf32> to vector<8x1xf32>
        %166 = vector.extract_strided_slice %1 {offsets = [17, 0], sizes = [1, 32], strides = [1, 1]} : vector<32x32xf32> to vector<1x32xf32>
        %167 = vector.broadcast %165 : vector<8x1xf32> to vector<8x32xf32>
        %168 = vector.broadcast %166 : vector<1x32xf32> to vector<8x32xf32>
        %169 = arith.mulf %167, %168 : vector<8x32xf32>
        %170 = arith.addf %164, %169 : vector<8x32xf32>
        %171 = vector.extract_strided_slice %62 {offsets = [0, 18], sizes = [8, 1], strides = [1, 1]} : vector<8x32xf32> to vector<8x1xf32>
        %172 = vector.extract_strided_slice %1 {offsets = [18, 0], sizes = [1, 32], strides = [1, 1]} : vector<32x32xf32> to vector<1x32xf32>
        %173 = vector.broadcast %171 : vector<8x1xf32> to vector<8x32xf32>
        %174 = vector.broadcast %172 : vector<1x32xf32> to vector<8x32xf32>
        %175 = arith.mulf %173, %174 : vector<8x32xf32>
        %176 = arith.addf %170, %175 : vector<8x32xf32>
        %177 = vector.extract_strided_slice %62 {offsets = [0, 19], sizes = [8, 1], strides = [1, 1]} : vector<8x32xf32> to vector<8x1xf32>
        %178 = vector.extract_strided_slice %1 {offsets = [19, 0], sizes = [1, 32], strides = [1, 1]} : vector<32x32xf32> to vector<1x32xf32>
        %179 = vector.broadcast %177 : vector<8x1xf32> to vector<8x32xf32>
        %180 = vector.broadcast %178 : vector<1x32xf32> to vector<8x32xf32>
        %181 = arith.mulf %179, %180 : vector<8x32xf32>
        %182 = arith.addf %176, %181 : vector<8x32xf32>
        %183 = vector.extract_strided_slice %62 {offsets = [0, 20], sizes = [8, 1], strides = [1, 1]} : vector<8x32xf32> to vector<8x1xf32>
        %184 = vector.extract_strided_slice %1 {offsets = [20, 0], sizes = [1, 32], strides = [1, 1]} : vector<32x32xf32> to vector<1x32xf32>
        %185 = vector.broadcast %183 : vector<8x1xf32> to vector<8x32xf32>
        %186 = vector.broadcast %184 : vector<1x32xf32> to vector<8x32xf32>
        %187 = arith.mulf %185, %186 : vector<8x32xf32>
        %188 = arith.addf %182, %187 : vector<8x32xf32>
        %189 = vector.extract_strided_slice %62 {offsets = [0, 21], sizes = [8, 1], strides = [1, 1]} : vector<8x32xf32> to vector<8x1xf32>
        %190 = vector.extract_strided_slice %1 {offsets = [21, 0], sizes = [1, 32], strides = [1, 1]} : vector<32x32xf32> to vector<1x32xf32>
        %191 = vector.broadcast %189 : vector<8x1xf32> to vector<8x32xf32>
        %192 = vector.broadcast %190 : vector<1x32xf32> to vector<8x32xf32>
        %193 = arith.mulf %191, %192 : vector<8x32xf32>
        %194 = arith.addf %188, %193 : vector<8x32xf32>
        %195 = vector.extract_strided_slice %62 {offsets = [0, 22], sizes = [8, 1], strides = [1, 1]} : vector<8x32xf32> to vector<8x1xf32>
        %196 = vector.extract_strided_slice %1 {offsets = [22, 0], sizes = [1, 32], strides = [1, 1]} : vector<32x32xf32> to vector<1x32xf32>
        %197 = vector.broadcast %195 : vector<8x1xf32> to vector<8x32xf32>
        %198 = vector.broadcast %196 : vector<1x32xf32> to vector<8x32xf32>
        %199 = arith.mulf %197, %198 : vector<8x32xf32>
        %200 = arith.addf %194, %199 : vector<8x32xf32>
        %201 = vector.extract_strided_slice %62 {offsets = [0, 23], sizes = [8, 1], strides = [1, 1]} : vector<8x32xf32> to vector<8x1xf32>
        %202 = vector.extract_strided_slice %1 {offsets = [23, 0], sizes = [1, 32], strides = [1, 1]} : vector<32x32xf32> to vector<1x32xf32>
        %203 = vector.broadcast %201 : vector<8x1xf32> to vector<8x32xf32>
        %204 = vector.broadcast %202 : vector<1x32xf32> to vector<8x32xf32>
        %205 = arith.mulf %203, %204 : vector<8x32xf32>
        %206 = arith.addf %200, %205 : vector<8x32xf32>
        %207 = vector.extract_strided_slice %62 {offsets = [0, 24], sizes = [8, 1], strides = [1, 1]} : vector<8x32xf32> to vector<8x1xf32>
        %208 = vector.extract_strided_slice %1 {offsets = [24, 0], sizes = [1, 32], strides = [1, 1]} : vector<32x32xf32> to vector<1x32xf32>
        %209 = vector.broadcast %207 : vector<8x1xf32> to vector<8x32xf32>
        %210 = vector.broadcast %208 : vector<1x32xf32> to vector<8x32xf32>
        %211 = arith.mulf %209, %210 : vector<8x32xf32>
        %212 = arith.addf %206, %211 : vector<8x32xf32>
        %213 = vector.extract_strided_slice %62 {offsets = [0, 25], sizes = [8, 1], strides = [1, 1]} : vector<8x32xf32> to vector<8x1xf32>
        %214 = vector.extract_strided_slice %1 {offsets = [25, 0], sizes = [1, 32], strides = [1, 1]} : vector<32x32xf32> to vector<1x32xf32>
        %215 = vector.broadcast %213 : vector<8x1xf32> to vector<8x32xf32>
        %216 = vector.broadcast %214 : vector<1x32xf32> to vector<8x32xf32>
        %217 = arith.mulf %215, %216 : vector<8x32xf32>
        %218 = arith.addf %212, %217 : vector<8x32xf32>
        %219 = vector.extract_strided_slice %62 {offsets = [0, 26], sizes = [8, 1], strides = [1, 1]} : vector<8x32xf32> to vector<8x1xf32>
        %220 = vector.extract_strided_slice %1 {offsets = [26, 0], sizes = [1, 32], strides = [1, 1]} : vector<32x32xf32> to vector<1x32xf32>
        %221 = vector.broadcast %219 : vector<8x1xf32> to vector<8x32xf32>
        %222 = vector.broadcast %220 : vector<1x32xf32> to vector<8x32xf32>
        %223 = arith.mulf %221, %222 : vector<8x32xf32>
        %224 = arith.addf %218, %223 : vector<8x32xf32>
        %225 = vector.extract_strided_slice %62 {offsets = [0, 27], sizes = [8, 1], strides = [1, 1]} : vector<8x32xf32> to vector<8x1xf32>
        %226 = vector.extract_strided_slice %1 {offsets = [27, 0], sizes = [1, 32], strides = [1, 1]} : vector<32x32xf32> to vector<1x32xf32>
        %227 = vector.broadcast %225 : vector<8x1xf32> to vector<8x32xf32>
        %228 = vector.broadcast %226 : vector<1x32xf32> to vector<8x32xf32>
        %229 = arith.mulf %227, %228 : vector<8x32xf32>
        %230 = arith.addf %224, %229 : vector<8x32xf32>
        %231 = vector.extract_strided_slice %62 {offsets = [0, 28], sizes = [8, 1], strides = [1, 1]} : vector<8x32xf32> to vector<8x1xf32>
        %232 = vector.extract_strided_slice %1 {offsets = [28, 0], sizes = [1, 32], strides = [1, 1]} : vector<32x32xf32> to vector<1x32xf32>
        %233 = vector.broadcast %231 : vector<8x1xf32> to vector<8x32xf32>
        %234 = vector.broadcast %232 : vector<1x32xf32> to vector<8x32xf32>
        %235 = arith.mulf %233, %234 : vector<8x32xf32>
        %236 = arith.addf %230, %235 : vector<8x32xf32>
        %237 = vector.extract_strided_slice %62 {offsets = [0, 29], sizes = [8, 1], strides = [1, 1]} : vector<8x32xf32> to vector<8x1xf32>
        %238 = vector.extract_strided_slice %1 {offsets = [29, 0], sizes = [1, 32], strides = [1, 1]} : vector<32x32xf32> to vector<1x32xf32>
        %239 = vector.broadcast %237 : vector<8x1xf32> to vector<8x32xf32>
        %240 = vector.broadcast %238 : vector<1x32xf32> to vector<8x32xf32>
        %241 = arith.mulf %239, %240 : vector<8x32xf32>
        %242 = arith.addf %236, %241 : vector<8x32xf32>
        %243 = vector.extract_strided_slice %62 {offsets = [0, 30], sizes = [8, 1], strides = [1, 1]} : vector<8x32xf32> to vector<8x1xf32>
        %244 = vector.extract_strided_slice %1 {offsets = [30, 0], sizes = [1, 32], strides = [1, 1]} : vector<32x32xf32> to vector<1x32xf32>
        %245 = vector.broadcast %243 : vector<8x1xf32> to vector<8x32xf32>
        %246 = vector.broadcast %244 : vector<1x32xf32> to vector<8x32xf32>
        %247 = arith.mulf %245, %246 : vector<8x32xf32>
        %248 = arith.addf %242, %247 : vector<8x32xf32>
        %249 = vector.extract_strided_slice %62 {offsets = [0, 31], sizes = [8, 1], strides = [1, 1]} : vector<8x32xf32> to vector<8x1xf32>
        %250 = vector.extract_strided_slice %1 {offsets = [31, 0], sizes = [1, 32], strides = [1, 1]} : vector<32x32xf32> to vector<1x32xf32>
        %251 = vector.broadcast %249 : vector<8x1xf32> to vector<8x32xf32>
        %252 = vector.broadcast %250 : vector<1x32xf32> to vector<8x32xf32>
        %253 = arith.mulf %251, %252 : vector<8x32xf32>
        %254 = arith.addf %248, %253 : vector<8x32xf32>
        %cst_25 = arith.constant 0.000000e+00 : f32
        %255 = vector.broadcast %cst_25 : f32 to vector<8x32xf32>
        %256 = arith.cmpf ogt, %254, %255 : vector<8x32xf32>
        %cst_26 = arith.constant 0.000000e+00 : f32
        %257 = vector.broadcast %cst_26 : f32 to vector<8x32xf32>
        %258 = arith.minimumf %254, %257 : vector<8x32xf32>
        %259 = math.exp %258 : vector<8x32xf32>
        %cst_27 = arith.constant 1.000000e+00 : f32
        %260 = vector.broadcast %cst_27 : f32 to vector<8x32xf32>
        %261 = arith.subf %259, %260 : vector<8x32xf32>
        %262 = arith.select %256, %254, %261 : vector<8x32xi1>, vector<8x32xf32>
        %263 = vector.extract_strided_slice %262 {offsets = [0, 0], sizes = [8, 1], strides = [1, 1]} : vector<8x32xf32> to vector<8x1xf32>
        %264 = vector.extract_strided_slice %2 {offsets = [0, 0], sizes = [1, 4], strides = [1, 1]} : vector<32x4xf32> to vector<1x4xf32>
        %265 = vector.broadcast %263 : vector<8x1xf32> to vector<8x4xf32>
        %266 = vector.broadcast %264 : vector<1x4xf32> to vector<8x4xf32>
        %267 = arith.mulf %265, %266 : vector<8x4xf32>
        %268 = arith.addf %11, %267 : vector<8x4xf32>
        %269 = vector.extract_strided_slice %262 {offsets = [0, 1], sizes = [8, 1], strides = [1, 1]} : vector<8x32xf32> to vector<8x1xf32>
        %270 = vector.extract_strided_slice %2 {offsets = [1, 0], sizes = [1, 4], strides = [1, 1]} : vector<32x4xf32> to vector<1x4xf32>
        %271 = vector.broadcast %269 : vector<8x1xf32> to vector<8x4xf32>
        %272 = vector.broadcast %270 : vector<1x4xf32> to vector<8x4xf32>
        %273 = arith.mulf %271, %272 : vector<8x4xf32>
        %274 = arith.addf %268, %273 : vector<8x4xf32>
        %275 = vector.extract_strided_slice %262 {offsets = [0, 2], sizes = [8, 1], strides = [1, 1]} : vector<8x32xf32> to vector<8x1xf32>
        %276 = vector.extract_strided_slice %2 {offsets = [2, 0], sizes = [1, 4], strides = [1, 1]} : vector<32x4xf32> to vector<1x4xf32>
        %277 = vector.broadcast %275 : vector<8x1xf32> to vector<8x4xf32>
        %278 = vector.broadcast %276 : vector<1x4xf32> to vector<8x4xf32>
        %279 = arith.mulf %277, %278 : vector<8x4xf32>
        %280 = arith.addf %274, %279 : vector<8x4xf32>
        %281 = vector.extract_strided_slice %262 {offsets = [0, 3], sizes = [8, 1], strides = [1, 1]} : vector<8x32xf32> to vector<8x1xf32>
        %282 = vector.extract_strided_slice %2 {offsets = [3, 0], sizes = [1, 4], strides = [1, 1]} : vector<32x4xf32> to vector<1x4xf32>
        %283 = vector.broadcast %281 : vector<8x1xf32> to vector<8x4xf32>
        %284 = vector.broadcast %282 : vector<1x4xf32> to vector<8x4xf32>
        %285 = arith.mulf %283, %284 : vector<8x4xf32>
        %286 = arith.addf %280, %285 : vector<8x4xf32>
        %287 = vector.extract_strided_slice %262 {offsets = [0, 4], sizes = [8, 1], strides = [1, 1]} : vector<8x32xf32> to vector<8x1xf32>
        %288 = vector.extract_strided_slice %2 {offsets = [4, 0], sizes = [1, 4], strides = [1, 1]} : vector<32x4xf32> to vector<1x4xf32>
        %289 = vector.broadcast %287 : vector<8x1xf32> to vector<8x4xf32>
        %290 = vector.broadcast %288 : vector<1x4xf32> to vector<8x4xf32>
        %291 = arith.mulf %289, %290 : vector<8x4xf32>
        %292 = arith.addf %286, %291 : vector<8x4xf32>
        %293 = vector.extract_strided_slice %262 {offsets = [0, 5], sizes = [8, 1], strides = [1, 1]} : vector<8x32xf32> to vector<8x1xf32>
        %294 = vector.extract_strided_slice %2 {offsets = [5, 0], sizes = [1, 4], strides = [1, 1]} : vector<32x4xf32> to vector<1x4xf32>
        %295 = vector.broadcast %293 : vector<8x1xf32> to vector<8x4xf32>
        %296 = vector.broadcast %294 : vector<1x4xf32> to vector<8x4xf32>
        %297 = arith.mulf %295, %296 : vector<8x4xf32>
        %298 = arith.addf %292, %297 : vector<8x4xf32>
        %299 = vector.extract_strided_slice %262 {offsets = [0, 6], sizes = [8, 1], strides = [1, 1]} : vector<8x32xf32> to vector<8x1xf32>
        %300 = vector.extract_strided_slice %2 {offsets = [6, 0], sizes = [1, 4], strides = [1, 1]} : vector<32x4xf32> to vector<1x4xf32>
        %301 = vector.broadcast %299 : vector<8x1xf32> to vector<8x4xf32>
        %302 = vector.broadcast %300 : vector<1x4xf32> to vector<8x4xf32>
        %303 = arith.mulf %301, %302 : vector<8x4xf32>
        %304 = arith.addf %298, %303 : vector<8x4xf32>
        %305 = vector.extract_strided_slice %262 {offsets = [0, 7], sizes = [8, 1], strides = [1, 1]} : vector<8x32xf32> to vector<8x1xf32>
        %306 = vector.extract_strided_slice %2 {offsets = [7, 0], sizes = [1, 4], strides = [1, 1]} : vector<32x4xf32> to vector<1x4xf32>
        %307 = vector.broadcast %305 : vector<8x1xf32> to vector<8x4xf32>
        %308 = vector.broadcast %306 : vector<1x4xf32> to vector<8x4xf32>
        %309 = arith.mulf %307, %308 : vector<8x4xf32>
        %310 = arith.addf %304, %309 : vector<8x4xf32>
        %311 = vector.extract_strided_slice %262 {offsets = [0, 8], sizes = [8, 1], strides = [1, 1]} : vector<8x32xf32> to vector<8x1xf32>
        %312 = vector.extract_strided_slice %2 {offsets = [8, 0], sizes = [1, 4], strides = [1, 1]} : vector<32x4xf32> to vector<1x4xf32>
        %313 = vector.broadcast %311 : vector<8x1xf32> to vector<8x4xf32>
        %314 = vector.broadcast %312 : vector<1x4xf32> to vector<8x4xf32>
        %315 = arith.mulf %313, %314 : vector<8x4xf32>
        %316 = arith.addf %310, %315 : vector<8x4xf32>
        %317 = vector.extract_strided_slice %262 {offsets = [0, 9], sizes = [8, 1], strides = [1, 1]} : vector<8x32xf32> to vector<8x1xf32>
        %318 = vector.extract_strided_slice %2 {offsets = [9, 0], sizes = [1, 4], strides = [1, 1]} : vector<32x4xf32> to vector<1x4xf32>
        %319 = vector.broadcast %317 : vector<8x1xf32> to vector<8x4xf32>
        %320 = vector.broadcast %318 : vector<1x4xf32> to vector<8x4xf32>
        %321 = arith.mulf %319, %320 : vector<8x4xf32>
        %322 = arith.addf %316, %321 : vector<8x4xf32>
        %323 = vector.extract_strided_slice %262 {offsets = [0, 10], sizes = [8, 1], strides = [1, 1]} : vector<8x32xf32> to vector<8x1xf32>
        %324 = vector.extract_strided_slice %2 {offsets = [10, 0], sizes = [1, 4], strides = [1, 1]} : vector<32x4xf32> to vector<1x4xf32>
        %325 = vector.broadcast %323 : vector<8x1xf32> to vector<8x4xf32>
        %326 = vector.broadcast %324 : vector<1x4xf32> to vector<8x4xf32>
        %327 = arith.mulf %325, %326 : vector<8x4xf32>
        %328 = arith.addf %322, %327 : vector<8x4xf32>
        %329 = vector.extract_strided_slice %262 {offsets = [0, 11], sizes = [8, 1], strides = [1, 1]} : vector<8x32xf32> to vector<8x1xf32>
        %330 = vector.extract_strided_slice %2 {offsets = [11, 0], sizes = [1, 4], strides = [1, 1]} : vector<32x4xf32> to vector<1x4xf32>
        %331 = vector.broadcast %329 : vector<8x1xf32> to vector<8x4xf32>
        %332 = vector.broadcast %330 : vector<1x4xf32> to vector<8x4xf32>
        %333 = arith.mulf %331, %332 : vector<8x4xf32>
        %334 = arith.addf %328, %333 : vector<8x4xf32>
        %335 = vector.extract_strided_slice %262 {offsets = [0, 12], sizes = [8, 1], strides = [1, 1]} : vector<8x32xf32> to vector<8x1xf32>
        %336 = vector.extract_strided_slice %2 {offsets = [12, 0], sizes = [1, 4], strides = [1, 1]} : vector<32x4xf32> to vector<1x4xf32>
        %337 = vector.broadcast %335 : vector<8x1xf32> to vector<8x4xf32>
        %338 = vector.broadcast %336 : vector<1x4xf32> to vector<8x4xf32>
        %339 = arith.mulf %337, %338 : vector<8x4xf32>
        %340 = arith.addf %334, %339 : vector<8x4xf32>
        %341 = vector.extract_strided_slice %262 {offsets = [0, 13], sizes = [8, 1], strides = [1, 1]} : vector<8x32xf32> to vector<8x1xf32>
        %342 = vector.extract_strided_slice %2 {offsets = [13, 0], sizes = [1, 4], strides = [1, 1]} : vector<32x4xf32> to vector<1x4xf32>
        %343 = vector.broadcast %341 : vector<8x1xf32> to vector<8x4xf32>
        %344 = vector.broadcast %342 : vector<1x4xf32> to vector<8x4xf32>
        %345 = arith.mulf %343, %344 : vector<8x4xf32>
        %346 = arith.addf %340, %345 : vector<8x4xf32>
        %347 = vector.extract_strided_slice %262 {offsets = [0, 14], sizes = [8, 1], strides = [1, 1]} : vector<8x32xf32> to vector<8x1xf32>
        %348 = vector.extract_strided_slice %2 {offsets = [14, 0], sizes = [1, 4], strides = [1, 1]} : vector<32x4xf32> to vector<1x4xf32>
        %349 = vector.broadcast %347 : vector<8x1xf32> to vector<8x4xf32>
        %350 = vector.broadcast %348 : vector<1x4xf32> to vector<8x4xf32>
        %351 = arith.mulf %349, %350 : vector<8x4xf32>
        %352 = arith.addf %346, %351 : vector<8x4xf32>
        %353 = vector.extract_strided_slice %262 {offsets = [0, 15], sizes = [8, 1], strides = [1, 1]} : vector<8x32xf32> to vector<8x1xf32>
        %354 = vector.extract_strided_slice %2 {offsets = [15, 0], sizes = [1, 4], strides = [1, 1]} : vector<32x4xf32> to vector<1x4xf32>
        %355 = vector.broadcast %353 : vector<8x1xf32> to vector<8x4xf32>
        %356 = vector.broadcast %354 : vector<1x4xf32> to vector<8x4xf32>
        %357 = arith.mulf %355, %356 : vector<8x4xf32>
        %358 = arith.addf %352, %357 : vector<8x4xf32>
        %359 = vector.extract_strided_slice %262 {offsets = [0, 16], sizes = [8, 1], strides = [1, 1]} : vector<8x32xf32> to vector<8x1xf32>
        %360 = vector.extract_strided_slice %2 {offsets = [16, 0], sizes = [1, 4], strides = [1, 1]} : vector<32x4xf32> to vector<1x4xf32>
        %361 = vector.broadcast %359 : vector<8x1xf32> to vector<8x4xf32>
        %362 = vector.broadcast %360 : vector<1x4xf32> to vector<8x4xf32>
        %363 = arith.mulf %361, %362 : vector<8x4xf32>
        %364 = arith.addf %358, %363 : vector<8x4xf32>
        %365 = vector.extract_strided_slice %262 {offsets = [0, 17], sizes = [8, 1], strides = [1, 1]} : vector<8x32xf32> to vector<8x1xf32>
        %366 = vector.extract_strided_slice %2 {offsets = [17, 0], sizes = [1, 4], strides = [1, 1]} : vector<32x4xf32> to vector<1x4xf32>
        %367 = vector.broadcast %365 : vector<8x1xf32> to vector<8x4xf32>
        %368 = vector.broadcast %366 : vector<1x4xf32> to vector<8x4xf32>
        %369 = arith.mulf %367, %368 : vector<8x4xf32>
        %370 = arith.addf %364, %369 : vector<8x4xf32>
        %371 = vector.extract_strided_slice %262 {offsets = [0, 18], sizes = [8, 1], strides = [1, 1]} : vector<8x32xf32> to vector<8x1xf32>
        %372 = vector.extract_strided_slice %2 {offsets = [18, 0], sizes = [1, 4], strides = [1, 1]} : vector<32x4xf32> to vector<1x4xf32>
        %373 = vector.broadcast %371 : vector<8x1xf32> to vector<8x4xf32>
        %374 = vector.broadcast %372 : vector<1x4xf32> to vector<8x4xf32>
        %375 = arith.mulf %373, %374 : vector<8x4xf32>
        %376 = arith.addf %370, %375 : vector<8x4xf32>
        %377 = vector.extract_strided_slice %262 {offsets = [0, 19], sizes = [8, 1], strides = [1, 1]} : vector<8x32xf32> to vector<8x1xf32>
        %378 = vector.extract_strided_slice %2 {offsets = [19, 0], sizes = [1, 4], strides = [1, 1]} : vector<32x4xf32> to vector<1x4xf32>
        %379 = vector.broadcast %377 : vector<8x1xf32> to vector<8x4xf32>
        %380 = vector.broadcast %378 : vector<1x4xf32> to vector<8x4xf32>
        %381 = arith.mulf %379, %380 : vector<8x4xf32>
        %382 = arith.addf %376, %381 : vector<8x4xf32>
        %383 = vector.extract_strided_slice %262 {offsets = [0, 20], sizes = [8, 1], strides = [1, 1]} : vector<8x32xf32> to vector<8x1xf32>
        %384 = vector.extract_strided_slice %2 {offsets = [20, 0], sizes = [1, 4], strides = [1, 1]} : vector<32x4xf32> to vector<1x4xf32>
        %385 = vector.broadcast %383 : vector<8x1xf32> to vector<8x4xf32>
        %386 = vector.broadcast %384 : vector<1x4xf32> to vector<8x4xf32>
        %387 = arith.mulf %385, %386 : vector<8x4xf32>
        %388 = arith.addf %382, %387 : vector<8x4xf32>
        %389 = vector.extract_strided_slice %262 {offsets = [0, 21], sizes = [8, 1], strides = [1, 1]} : vector<8x32xf32> to vector<8x1xf32>
        %390 = vector.extract_strided_slice %2 {offsets = [21, 0], sizes = [1, 4], strides = [1, 1]} : vector<32x4xf32> to vector<1x4xf32>
        %391 = vector.broadcast %389 : vector<8x1xf32> to vector<8x4xf32>
        %392 = vector.broadcast %390 : vector<1x4xf32> to vector<8x4xf32>
        %393 = arith.mulf %391, %392 : vector<8x4xf32>
        %394 = arith.addf %388, %393 : vector<8x4xf32>
        %395 = vector.extract_strided_slice %262 {offsets = [0, 22], sizes = [8, 1], strides = [1, 1]} : vector<8x32xf32> to vector<8x1xf32>
        %396 = vector.extract_strided_slice %2 {offsets = [22, 0], sizes = [1, 4], strides = [1, 1]} : vector<32x4xf32> to vector<1x4xf32>
        %397 = vector.broadcast %395 : vector<8x1xf32> to vector<8x4xf32>
        %398 = vector.broadcast %396 : vector<1x4xf32> to vector<8x4xf32>
        %399 = arith.mulf %397, %398 : vector<8x4xf32>
        %400 = arith.addf %394, %399 : vector<8x4xf32>
        %401 = vector.extract_strided_slice %262 {offsets = [0, 23], sizes = [8, 1], strides = [1, 1]} : vector<8x32xf32> to vector<8x1xf32>
        %402 = vector.extract_strided_slice %2 {offsets = [23, 0], sizes = [1, 4], strides = [1, 1]} : vector<32x4xf32> to vector<1x4xf32>
        %403 = vector.broadcast %401 : vector<8x1xf32> to vector<8x4xf32>
        %404 = vector.broadcast %402 : vector<1x4xf32> to vector<8x4xf32>
        %405 = arith.mulf %403, %404 : vector<8x4xf32>
        %406 = arith.addf %400, %405 : vector<8x4xf32>
        %407 = vector.extract_strided_slice %262 {offsets = [0, 24], sizes = [8, 1], strides = [1, 1]} : vector<8x32xf32> to vector<8x1xf32>
        %408 = vector.extract_strided_slice %2 {offsets = [24, 0], sizes = [1, 4], strides = [1, 1]} : vector<32x4xf32> to vector<1x4xf32>
        %409 = vector.broadcast %407 : vector<8x1xf32> to vector<8x4xf32>
        %410 = vector.broadcast %408 : vector<1x4xf32> to vector<8x4xf32>
        %411 = arith.mulf %409, %410 : vector<8x4xf32>
        %412 = arith.addf %406, %411 : vector<8x4xf32>
        %413 = vector.extract_strided_slice %262 {offsets = [0, 25], sizes = [8, 1], strides = [1, 1]} : vector<8x32xf32> to vector<8x1xf32>
        %414 = vector.extract_strided_slice %2 {offsets = [25, 0], sizes = [1, 4], strides = [1, 1]} : vector<32x4xf32> to vector<1x4xf32>
        %415 = vector.broadcast %413 : vector<8x1xf32> to vector<8x4xf32>
        %416 = vector.broadcast %414 : vector<1x4xf32> to vector<8x4xf32>
        %417 = arith.mulf %415, %416 : vector<8x4xf32>
        %418 = arith.addf %412, %417 : vector<8x4xf32>
        %419 = vector.extract_strided_slice %262 {offsets = [0, 26], sizes = [8, 1], strides = [1, 1]} : vector<8x32xf32> to vector<8x1xf32>
        %420 = vector.extract_strided_slice %2 {offsets = [26, 0], sizes = [1, 4], strides = [1, 1]} : vector<32x4xf32> to vector<1x4xf32>
        %421 = vector.broadcast %419 : vector<8x1xf32> to vector<8x4xf32>
        %422 = vector.broadcast %420 : vector<1x4xf32> to vector<8x4xf32>
        %423 = arith.mulf %421, %422 : vector<8x4xf32>
        %424 = arith.addf %418, %423 : vector<8x4xf32>
        %425 = vector.extract_strided_slice %262 {offsets = [0, 27], sizes = [8, 1], strides = [1, 1]} : vector<8x32xf32> to vector<8x1xf32>
        %426 = vector.extract_strided_slice %2 {offsets = [27, 0], sizes = [1, 4], strides = [1, 1]} : vector<32x4xf32> to vector<1x4xf32>
        %427 = vector.broadcast %425 : vector<8x1xf32> to vector<8x4xf32>
        %428 = vector.broadcast %426 : vector<1x4xf32> to vector<8x4xf32>
        %429 = arith.mulf %427, %428 : vector<8x4xf32>
        %430 = arith.addf %424, %429 : vector<8x4xf32>
        %431 = vector.extract_strided_slice %262 {offsets = [0, 28], sizes = [8, 1], strides = [1, 1]} : vector<8x32xf32> to vector<8x1xf32>
        %432 = vector.extract_strided_slice %2 {offsets = [28, 0], sizes = [1, 4], strides = [1, 1]} : vector<32x4xf32> to vector<1x4xf32>
        %433 = vector.broadcast %431 : vector<8x1xf32> to vector<8x4xf32>
        %434 = vector.broadcast %432 : vector<1x4xf32> to vector<8x4xf32>
        %435 = arith.mulf %433, %434 : vector<8x4xf32>
        %436 = arith.addf %430, %435 : vector<8x4xf32>
        %437 = vector.extract_strided_slice %262 {offsets = [0, 29], sizes = [8, 1], strides = [1, 1]} : vector<8x32xf32> to vector<8x1xf32>
        %438 = vector.extract_strided_slice %2 {offsets = [29, 0], sizes = [1, 4], strides = [1, 1]} : vector<32x4xf32> to vector<1x4xf32>
        %439 = vector.broadcast %437 : vector<8x1xf32> to vector<8x4xf32>
        %440 = vector.broadcast %438 : vector<1x4xf32> to vector<8x4xf32>
        %441 = arith.mulf %439, %440 : vector<8x4xf32>
        %442 = arith.addf %436, %441 : vector<8x4xf32>
        %443 = vector.extract_strided_slice %262 {offsets = [0, 30], sizes = [8, 1], strides = [1, 1]} : vector<8x32xf32> to vector<8x1xf32>
        %444 = vector.extract_strided_slice %2 {offsets = [30, 0], sizes = [1, 4], strides = [1, 1]} : vector<32x4xf32> to vector<1x4xf32>
        %445 = vector.broadcast %443 : vector<8x1xf32> to vector<8x4xf32>
        %446 = vector.broadcast %444 : vector<1x4xf32> to vector<8x4xf32>
        %447 = arith.mulf %445, %446 : vector<8x4xf32>
        %448 = arith.addf %442, %447 : vector<8x4xf32>
        %449 = vector.extract_strided_slice %262 {offsets = [0, 31], sizes = [8, 1], strides = [1, 1]} : vector<8x32xf32> to vector<8x1xf32>
        %450 = vector.extract_strided_slice %2 {offsets = [31, 0], sizes = [1, 4], strides = [1, 1]} : vector<32x4xf32> to vector<1x4xf32>
        %451 = vector.broadcast %449 : vector<8x1xf32> to vector<8x4xf32>
        %452 = vector.broadcast %450 : vector<1x4xf32> to vector<8x4xf32>
        %453 = arith.mulf %451, %452 : vector<8x4xf32>
        %454 = arith.addf %448, %453 : vector<8x4xf32>
        %cst_28 = arith.constant 5.000000e-01 : f32
        %455 = arith.mulf %cst_28, %24 : f32
        %456 = vector.broadcast %455 : f32 to vector<8x4xf32>
        %457 = arith.mulf %456, %454 : vector<8x4xf32>
        %458 = arith.addf %arg13, %457 : vector<8x4xf32>
        %459 = vector.extract_strided_slice %458 {offsets = [0, 0], sizes = [8, 1], strides = [1, 1]} : vector<8x4xf32> to vector<8x1xf32>
        %460 = vector.extract_strided_slice %0 {offsets = [0, 0], sizes = [1, 32], strides = [1, 1]} : vector<4x32xf32> to vector<1x32xf32>
        %461 = vector.broadcast %459 : vector<8x1xf32> to vector<8x32xf32>
        %462 = vector.broadcast %460 : vector<1x32xf32> to vector<8x32xf32>
        %463 = arith.mulf %461, %462 : vector<8x32xf32>
        %464 = arith.addf %5, %463 : vector<8x32xf32>
        %465 = vector.extract_strided_slice %458 {offsets = [0, 1], sizes = [8, 1], strides = [1, 1]} : vector<8x4xf32> to vector<8x1xf32>
        %466 = vector.extract_strided_slice %0 {offsets = [1, 0], sizes = [1, 32], strides = [1, 1]} : vector<4x32xf32> to vector<1x32xf32>
        %467 = vector.broadcast %465 : vector<8x1xf32> to vector<8x32xf32>
        %468 = vector.broadcast %466 : vector<1x32xf32> to vector<8x32xf32>
        %469 = arith.mulf %467, %468 : vector<8x32xf32>
        %470 = arith.addf %464, %469 : vector<8x32xf32>
        %471 = vector.extract_strided_slice %458 {offsets = [0, 2], sizes = [8, 1], strides = [1, 1]} : vector<8x4xf32> to vector<8x1xf32>
        %472 = vector.extract_strided_slice %0 {offsets = [2, 0], sizes = [1, 32], strides = [1, 1]} : vector<4x32xf32> to vector<1x32xf32>
        %473 = vector.broadcast %471 : vector<8x1xf32> to vector<8x32xf32>
        %474 = vector.broadcast %472 : vector<1x32xf32> to vector<8x32xf32>
        %475 = arith.mulf %473, %474 : vector<8x32xf32>
        %476 = arith.addf %470, %475 : vector<8x32xf32>
        %477 = vector.extract_strided_slice %458 {offsets = [0, 3], sizes = [8, 1], strides = [1, 1]} : vector<8x4xf32> to vector<8x1xf32>
        %478 = vector.extract_strided_slice %0 {offsets = [3, 0], sizes = [1, 32], strides = [1, 1]} : vector<4x32xf32> to vector<1x32xf32>
        %479 = vector.broadcast %477 : vector<8x1xf32> to vector<8x32xf32>
        %480 = vector.broadcast %478 : vector<1x32xf32> to vector<8x32xf32>
        %481 = arith.mulf %479, %480 : vector<8x32xf32>
        %482 = arith.addf %476, %481 : vector<8x32xf32>
        %cst_29 = arith.constant 0.000000e+00 : f32
        %483 = vector.broadcast %cst_29 : f32 to vector<8x32xf32>
        %484 = arith.cmpf ogt, %482, %483 : vector<8x32xf32>
        %cst_30 = arith.constant 0.000000e+00 : f32
        %485 = vector.broadcast %cst_30 : f32 to vector<8x32xf32>
        %486 = arith.minimumf %482, %485 : vector<8x32xf32>
        %487 = math.exp %486 : vector<8x32xf32>
        %cst_31 = arith.constant 1.000000e+00 : f32
        %488 = vector.broadcast %cst_31 : f32 to vector<8x32xf32>
        %489 = arith.subf %487, %488 : vector<8x32xf32>
        %490 = arith.select %484, %482, %489 : vector<8x32xi1>, vector<8x32xf32>
        %491 = vector.extract_strided_slice %490 {offsets = [0, 0], sizes = [8, 1], strides = [1, 1]} : vector<8x32xf32> to vector<8x1xf32>
        %492 = vector.extract_strided_slice %1 {offsets = [0, 0], sizes = [1, 32], strides = [1, 1]} : vector<32x32xf32> to vector<1x32xf32>
        %493 = vector.broadcast %491 : vector<8x1xf32> to vector<8x32xf32>
        %494 = vector.broadcast %492 : vector<1x32xf32> to vector<8x32xf32>
        %495 = arith.mulf %493, %494 : vector<8x32xf32>
        %496 = arith.addf %8, %495 : vector<8x32xf32>
        %497 = vector.extract_strided_slice %490 {offsets = [0, 1], sizes = [8, 1], strides = [1, 1]} : vector<8x32xf32> to vector<8x1xf32>
        %498 = vector.extract_strided_slice %1 {offsets = [1, 0], sizes = [1, 32], strides = [1, 1]} : vector<32x32xf32> to vector<1x32xf32>
        %499 = vector.broadcast %497 : vector<8x1xf32> to vector<8x32xf32>
        %500 = vector.broadcast %498 : vector<1x32xf32> to vector<8x32xf32>
        %501 = arith.mulf %499, %500 : vector<8x32xf32>
        %502 = arith.addf %496, %501 : vector<8x32xf32>
        %503 = vector.extract_strided_slice %490 {offsets = [0, 2], sizes = [8, 1], strides = [1, 1]} : vector<8x32xf32> to vector<8x1xf32>
        %504 = vector.extract_strided_slice %1 {offsets = [2, 0], sizes = [1, 32], strides = [1, 1]} : vector<32x32xf32> to vector<1x32xf32>
        %505 = vector.broadcast %503 : vector<8x1xf32> to vector<8x32xf32>
        %506 = vector.broadcast %504 : vector<1x32xf32> to vector<8x32xf32>
        %507 = arith.mulf %505, %506 : vector<8x32xf32>
        %508 = arith.addf %502, %507 : vector<8x32xf32>
        %509 = vector.extract_strided_slice %490 {offsets = [0, 3], sizes = [8, 1], strides = [1, 1]} : vector<8x32xf32> to vector<8x1xf32>
        %510 = vector.extract_strided_slice %1 {offsets = [3, 0], sizes = [1, 32], strides = [1, 1]} : vector<32x32xf32> to vector<1x32xf32>
        %511 = vector.broadcast %509 : vector<8x1xf32> to vector<8x32xf32>
        %512 = vector.broadcast %510 : vector<1x32xf32> to vector<8x32xf32>
        %513 = arith.mulf %511, %512 : vector<8x32xf32>
        %514 = arith.addf %508, %513 : vector<8x32xf32>
        %515 = vector.extract_strided_slice %490 {offsets = [0, 4], sizes = [8, 1], strides = [1, 1]} : vector<8x32xf32> to vector<8x1xf32>
        %516 = vector.extract_strided_slice %1 {offsets = [4, 0], sizes = [1, 32], strides = [1, 1]} : vector<32x32xf32> to vector<1x32xf32>
        %517 = vector.broadcast %515 : vector<8x1xf32> to vector<8x32xf32>
        %518 = vector.broadcast %516 : vector<1x32xf32> to vector<8x32xf32>
        %519 = arith.mulf %517, %518 : vector<8x32xf32>
        %520 = arith.addf %514, %519 : vector<8x32xf32>
        %521 = vector.extract_strided_slice %490 {offsets = [0, 5], sizes = [8, 1], strides = [1, 1]} : vector<8x32xf32> to vector<8x1xf32>
        %522 = vector.extract_strided_slice %1 {offsets = [5, 0], sizes = [1, 32], strides = [1, 1]} : vector<32x32xf32> to vector<1x32xf32>
        %523 = vector.broadcast %521 : vector<8x1xf32> to vector<8x32xf32>
        %524 = vector.broadcast %522 : vector<1x32xf32> to vector<8x32xf32>
        %525 = arith.mulf %523, %524 : vector<8x32xf32>
        %526 = arith.addf %520, %525 : vector<8x32xf32>
        %527 = vector.extract_strided_slice %490 {offsets = [0, 6], sizes = [8, 1], strides = [1, 1]} : vector<8x32xf32> to vector<8x1xf32>
        %528 = vector.extract_strided_slice %1 {offsets = [6, 0], sizes = [1, 32], strides = [1, 1]} : vector<32x32xf32> to vector<1x32xf32>
        %529 = vector.broadcast %527 : vector<8x1xf32> to vector<8x32xf32>
        %530 = vector.broadcast %528 : vector<1x32xf32> to vector<8x32xf32>
        %531 = arith.mulf %529, %530 : vector<8x32xf32>
        %532 = arith.addf %526, %531 : vector<8x32xf32>
        %533 = vector.extract_strided_slice %490 {offsets = [0, 7], sizes = [8, 1], strides = [1, 1]} : vector<8x32xf32> to vector<8x1xf32>
        %534 = vector.extract_strided_slice %1 {offsets = [7, 0], sizes = [1, 32], strides = [1, 1]} : vector<32x32xf32> to vector<1x32xf32>
        %535 = vector.broadcast %533 : vector<8x1xf32> to vector<8x32xf32>
        %536 = vector.broadcast %534 : vector<1x32xf32> to vector<8x32xf32>
        %537 = arith.mulf %535, %536 : vector<8x32xf32>
        %538 = arith.addf %532, %537 : vector<8x32xf32>
        %539 = vector.extract_strided_slice %490 {offsets = [0, 8], sizes = [8, 1], strides = [1, 1]} : vector<8x32xf32> to vector<8x1xf32>
        %540 = vector.extract_strided_slice %1 {offsets = [8, 0], sizes = [1, 32], strides = [1, 1]} : vector<32x32xf32> to vector<1x32xf32>
        %541 = vector.broadcast %539 : vector<8x1xf32> to vector<8x32xf32>
        %542 = vector.broadcast %540 : vector<1x32xf32> to vector<8x32xf32>
        %543 = arith.mulf %541, %542 : vector<8x32xf32>
        %544 = arith.addf %538, %543 : vector<8x32xf32>
        %545 = vector.extract_strided_slice %490 {offsets = [0, 9], sizes = [8, 1], strides = [1, 1]} : vector<8x32xf32> to vector<8x1xf32>
        %546 = vector.extract_strided_slice %1 {offsets = [9, 0], sizes = [1, 32], strides = [1, 1]} : vector<32x32xf32> to vector<1x32xf32>
        %547 = vector.broadcast %545 : vector<8x1xf32> to vector<8x32xf32>
        %548 = vector.broadcast %546 : vector<1x32xf32> to vector<8x32xf32>
        %549 = arith.mulf %547, %548 : vector<8x32xf32>
        %550 = arith.addf %544, %549 : vector<8x32xf32>
        %551 = vector.extract_strided_slice %490 {offsets = [0, 10], sizes = [8, 1], strides = [1, 1]} : vector<8x32xf32> to vector<8x1xf32>
        %552 = vector.extract_strided_slice %1 {offsets = [10, 0], sizes = [1, 32], strides = [1, 1]} : vector<32x32xf32> to vector<1x32xf32>
        %553 = vector.broadcast %551 : vector<8x1xf32> to vector<8x32xf32>
        %554 = vector.broadcast %552 : vector<1x32xf32> to vector<8x32xf32>
        %555 = arith.mulf %553, %554 : vector<8x32xf32>
        %556 = arith.addf %550, %555 : vector<8x32xf32>
        %557 = vector.extract_strided_slice %490 {offsets = [0, 11], sizes = [8, 1], strides = [1, 1]} : vector<8x32xf32> to vector<8x1xf32>
        %558 = vector.extract_strided_slice %1 {offsets = [11, 0], sizes = [1, 32], strides = [1, 1]} : vector<32x32xf32> to vector<1x32xf32>
        %559 = vector.broadcast %557 : vector<8x1xf32> to vector<8x32xf32>
        %560 = vector.broadcast %558 : vector<1x32xf32> to vector<8x32xf32>
        %561 = arith.mulf %559, %560 : vector<8x32xf32>
        %562 = arith.addf %556, %561 : vector<8x32xf32>
        %563 = vector.extract_strided_slice %490 {offsets = [0, 12], sizes = [8, 1], strides = [1, 1]} : vector<8x32xf32> to vector<8x1xf32>
        %564 = vector.extract_strided_slice %1 {offsets = [12, 0], sizes = [1, 32], strides = [1, 1]} : vector<32x32xf32> to vector<1x32xf32>
        %565 = vector.broadcast %563 : vector<8x1xf32> to vector<8x32xf32>
        %566 = vector.broadcast %564 : vector<1x32xf32> to vector<8x32xf32>
        %567 = arith.mulf %565, %566 : vector<8x32xf32>
        %568 = arith.addf %562, %567 : vector<8x32xf32>
        %569 = vector.extract_strided_slice %490 {offsets = [0, 13], sizes = [8, 1], strides = [1, 1]} : vector<8x32xf32> to vector<8x1xf32>
        %570 = vector.extract_strided_slice %1 {offsets = [13, 0], sizes = [1, 32], strides = [1, 1]} : vector<32x32xf32> to vector<1x32xf32>
        %571 = vector.broadcast %569 : vector<8x1xf32> to vector<8x32xf32>
        %572 = vector.broadcast %570 : vector<1x32xf32> to vector<8x32xf32>
        %573 = arith.mulf %571, %572 : vector<8x32xf32>
        %574 = arith.addf %568, %573 : vector<8x32xf32>
        %575 = vector.extract_strided_slice %490 {offsets = [0, 14], sizes = [8, 1], strides = [1, 1]} : vector<8x32xf32> to vector<8x1xf32>
        %576 = vector.extract_strided_slice %1 {offsets = [14, 0], sizes = [1, 32], strides = [1, 1]} : vector<32x32xf32> to vector<1x32xf32>
        %577 = vector.broadcast %575 : vector<8x1xf32> to vector<8x32xf32>
        %578 = vector.broadcast %576 : vector<1x32xf32> to vector<8x32xf32>
        %579 = arith.mulf %577, %578 : vector<8x32xf32>
        %580 = arith.addf %574, %579 : vector<8x32xf32>
        %581 = vector.extract_strided_slice %490 {offsets = [0, 15], sizes = [8, 1], strides = [1, 1]} : vector<8x32xf32> to vector<8x1xf32>
        %582 = vector.extract_strided_slice %1 {offsets = [15, 0], sizes = [1, 32], strides = [1, 1]} : vector<32x32xf32> to vector<1x32xf32>
        %583 = vector.broadcast %581 : vector<8x1xf32> to vector<8x32xf32>
        %584 = vector.broadcast %582 : vector<1x32xf32> to vector<8x32xf32>
        %585 = arith.mulf %583, %584 : vector<8x32xf32>
        %586 = arith.addf %580, %585 : vector<8x32xf32>
        %587 = vector.extract_strided_slice %490 {offsets = [0, 16], sizes = [8, 1], strides = [1, 1]} : vector<8x32xf32> to vector<8x1xf32>
        %588 = vector.extract_strided_slice %1 {offsets = [16, 0], sizes = [1, 32], strides = [1, 1]} : vector<32x32xf32> to vector<1x32xf32>
        %589 = vector.broadcast %587 : vector<8x1xf32> to vector<8x32xf32>
        %590 = vector.broadcast %588 : vector<1x32xf32> to vector<8x32xf32>
        %591 = arith.mulf %589, %590 : vector<8x32xf32>
        %592 = arith.addf %586, %591 : vector<8x32xf32>
        %593 = vector.extract_strided_slice %490 {offsets = [0, 17], sizes = [8, 1], strides = [1, 1]} : vector<8x32xf32> to vector<8x1xf32>
        %594 = vector.extract_strided_slice %1 {offsets = [17, 0], sizes = [1, 32], strides = [1, 1]} : vector<32x32xf32> to vector<1x32xf32>
        %595 = vector.broadcast %593 : vector<8x1xf32> to vector<8x32xf32>
        %596 = vector.broadcast %594 : vector<1x32xf32> to vector<8x32xf32>
        %597 = arith.mulf %595, %596 : vector<8x32xf32>
        %598 = arith.addf %592, %597 : vector<8x32xf32>
        %599 = vector.extract_strided_slice %490 {offsets = [0, 18], sizes = [8, 1], strides = [1, 1]} : vector<8x32xf32> to vector<8x1xf32>
        %600 = vector.extract_strided_slice %1 {offsets = [18, 0], sizes = [1, 32], strides = [1, 1]} : vector<32x32xf32> to vector<1x32xf32>
        %601 = vector.broadcast %599 : vector<8x1xf32> to vector<8x32xf32>
        %602 = vector.broadcast %600 : vector<1x32xf32> to vector<8x32xf32>
        %603 = arith.mulf %601, %602 : vector<8x32xf32>
        %604 = arith.addf %598, %603 : vector<8x32xf32>
        %605 = vector.extract_strided_slice %490 {offsets = [0, 19], sizes = [8, 1], strides = [1, 1]} : vector<8x32xf32> to vector<8x1xf32>
        %606 = vector.extract_strided_slice %1 {offsets = [19, 0], sizes = [1, 32], strides = [1, 1]} : vector<32x32xf32> to vector<1x32xf32>
        %607 = vector.broadcast %605 : vector<8x1xf32> to vector<8x32xf32>
        %608 = vector.broadcast %606 : vector<1x32xf32> to vector<8x32xf32>
        %609 = arith.mulf %607, %608 : vector<8x32xf32>
        %610 = arith.addf %604, %609 : vector<8x32xf32>
        %611 = vector.extract_strided_slice %490 {offsets = [0, 20], sizes = [8, 1], strides = [1, 1]} : vector<8x32xf32> to vector<8x1xf32>
        %612 = vector.extract_strided_slice %1 {offsets = [20, 0], sizes = [1, 32], strides = [1, 1]} : vector<32x32xf32> to vector<1x32xf32>
        %613 = vector.broadcast %611 : vector<8x1xf32> to vector<8x32xf32>
        %614 = vector.broadcast %612 : vector<1x32xf32> to vector<8x32xf32>
        %615 = arith.mulf %613, %614 : vector<8x32xf32>
        %616 = arith.addf %610, %615 : vector<8x32xf32>
        %617 = vector.extract_strided_slice %490 {offsets = [0, 21], sizes = [8, 1], strides = [1, 1]} : vector<8x32xf32> to vector<8x1xf32>
        %618 = vector.extract_strided_slice %1 {offsets = [21, 0], sizes = [1, 32], strides = [1, 1]} : vector<32x32xf32> to vector<1x32xf32>
        %619 = vector.broadcast %617 : vector<8x1xf32> to vector<8x32xf32>
        %620 = vector.broadcast %618 : vector<1x32xf32> to vector<8x32xf32>
        %621 = arith.mulf %619, %620 : vector<8x32xf32>
        %622 = arith.addf %616, %621 : vector<8x32xf32>
        %623 = vector.extract_strided_slice %490 {offsets = [0, 22], sizes = [8, 1], strides = [1, 1]} : vector<8x32xf32> to vector<8x1xf32>
        %624 = vector.extract_strided_slice %1 {offsets = [22, 0], sizes = [1, 32], strides = [1, 1]} : vector<32x32xf32> to vector<1x32xf32>
        %625 = vector.broadcast %623 : vector<8x1xf32> to vector<8x32xf32>
        %626 = vector.broadcast %624 : vector<1x32xf32> to vector<8x32xf32>
        %627 = arith.mulf %625, %626 : vector<8x32xf32>
        %628 = arith.addf %622, %627 : vector<8x32xf32>
        %629 = vector.extract_strided_slice %490 {offsets = [0, 23], sizes = [8, 1], strides = [1, 1]} : vector<8x32xf32> to vector<8x1xf32>
        %630 = vector.extract_strided_slice %1 {offsets = [23, 0], sizes = [1, 32], strides = [1, 1]} : vector<32x32xf32> to vector<1x32xf32>
        %631 = vector.broadcast %629 : vector<8x1xf32> to vector<8x32xf32>
        %632 = vector.broadcast %630 : vector<1x32xf32> to vector<8x32xf32>
        %633 = arith.mulf %631, %632 : vector<8x32xf32>
        %634 = arith.addf %628, %633 : vector<8x32xf32>
        %635 = vector.extract_strided_slice %490 {offsets = [0, 24], sizes = [8, 1], strides = [1, 1]} : vector<8x32xf32> to vector<8x1xf32>
        %636 = vector.extract_strided_slice %1 {offsets = [24, 0], sizes = [1, 32], strides = [1, 1]} : vector<32x32xf32> to vector<1x32xf32>
        %637 = vector.broadcast %635 : vector<8x1xf32> to vector<8x32xf32>
        %638 = vector.broadcast %636 : vector<1x32xf32> to vector<8x32xf32>
        %639 = arith.mulf %637, %638 : vector<8x32xf32>
        %640 = arith.addf %634, %639 : vector<8x32xf32>
        %641 = vector.extract_strided_slice %490 {offsets = [0, 25], sizes = [8, 1], strides = [1, 1]} : vector<8x32xf32> to vector<8x1xf32>
        %642 = vector.extract_strided_slice %1 {offsets = [25, 0], sizes = [1, 32], strides = [1, 1]} : vector<32x32xf32> to vector<1x32xf32>
        %643 = vector.broadcast %641 : vector<8x1xf32> to vector<8x32xf32>
        %644 = vector.broadcast %642 : vector<1x32xf32> to vector<8x32xf32>
        %645 = arith.mulf %643, %644 : vector<8x32xf32>
        %646 = arith.addf %640, %645 : vector<8x32xf32>
        %647 = vector.extract_strided_slice %490 {offsets = [0, 26], sizes = [8, 1], strides = [1, 1]} : vector<8x32xf32> to vector<8x1xf32>
        %648 = vector.extract_strided_slice %1 {offsets = [26, 0], sizes = [1, 32], strides = [1, 1]} : vector<32x32xf32> to vector<1x32xf32>
        %649 = vector.broadcast %647 : vector<8x1xf32> to vector<8x32xf32>
        %650 = vector.broadcast %648 : vector<1x32xf32> to vector<8x32xf32>
        %651 = arith.mulf %649, %650 : vector<8x32xf32>
        %652 = arith.addf %646, %651 : vector<8x32xf32>
        %653 = vector.extract_strided_slice %490 {offsets = [0, 27], sizes = [8, 1], strides = [1, 1]} : vector<8x32xf32> to vector<8x1xf32>
        %654 = vector.extract_strided_slice %1 {offsets = [27, 0], sizes = [1, 32], strides = [1, 1]} : vector<32x32xf32> to vector<1x32xf32>
        %655 = vector.broadcast %653 : vector<8x1xf32> to vector<8x32xf32>
        %656 = vector.broadcast %654 : vector<1x32xf32> to vector<8x32xf32>
        %657 = arith.mulf %655, %656 : vector<8x32xf32>
        %658 = arith.addf %652, %657 : vector<8x32xf32>
        %659 = vector.extract_strided_slice %490 {offsets = [0, 28], sizes = [8, 1], strides = [1, 1]} : vector<8x32xf32> to vector<8x1xf32>
        %660 = vector.extract_strided_slice %1 {offsets = [28, 0], sizes = [1, 32], strides = [1, 1]} : vector<32x32xf32> to vector<1x32xf32>
        %661 = vector.broadcast %659 : vector<8x1xf32> to vector<8x32xf32>
        %662 = vector.broadcast %660 : vector<1x32xf32> to vector<8x32xf32>
        %663 = arith.mulf %661, %662 : vector<8x32xf32>
        %664 = arith.addf %658, %663 : vector<8x32xf32>
        %665 = vector.extract_strided_slice %490 {offsets = [0, 29], sizes = [8, 1], strides = [1, 1]} : vector<8x32xf32> to vector<8x1xf32>
        %666 = vector.extract_strided_slice %1 {offsets = [29, 0], sizes = [1, 32], strides = [1, 1]} : vector<32x32xf32> to vector<1x32xf32>
        %667 = vector.broadcast %665 : vector<8x1xf32> to vector<8x32xf32>
        %668 = vector.broadcast %666 : vector<1x32xf32> to vector<8x32xf32>
        %669 = arith.mulf %667, %668 : vector<8x32xf32>
        %670 = arith.addf %664, %669 : vector<8x32xf32>
        %671 = vector.extract_strided_slice %490 {offsets = [0, 30], sizes = [8, 1], strides = [1, 1]} : vector<8x32xf32> to vector<8x1xf32>
        %672 = vector.extract_strided_slice %1 {offsets = [30, 0], sizes = [1, 32], strides = [1, 1]} : vector<32x32xf32> to vector<1x32xf32>
        %673 = vector.broadcast %671 : vector<8x1xf32> to vector<8x32xf32>
        %674 = vector.broadcast %672 : vector<1x32xf32> to vector<8x32xf32>
        %675 = arith.mulf %673, %674 : vector<8x32xf32>
        %676 = arith.addf %670, %675 : vector<8x32xf32>
        %677 = vector.extract_strided_slice %490 {offsets = [0, 31], sizes = [8, 1], strides = [1, 1]} : vector<8x32xf32> to vector<8x1xf32>
        %678 = vector.extract_strided_slice %1 {offsets = [31, 0], sizes = [1, 32], strides = [1, 1]} : vector<32x32xf32> to vector<1x32xf32>
        %679 = vector.broadcast %677 : vector<8x1xf32> to vector<8x32xf32>
        %680 = vector.broadcast %678 : vector<1x32xf32> to vector<8x32xf32>
        %681 = arith.mulf %679, %680 : vector<8x32xf32>
        %682 = arith.addf %676, %681 : vector<8x32xf32>
        %cst_32 = arith.constant 0.000000e+00 : f32
        %683 = vector.broadcast %cst_32 : f32 to vector<8x32xf32>
        %684 = arith.cmpf ogt, %682, %683 : vector<8x32xf32>
        %cst_33 = arith.constant 0.000000e+00 : f32
        %685 = vector.broadcast %cst_33 : f32 to vector<8x32xf32>
        %686 = arith.minimumf %682, %685 : vector<8x32xf32>
        %687 = math.exp %686 : vector<8x32xf32>
        %cst_34 = arith.constant 1.000000e+00 : f32
        %688 = vector.broadcast %cst_34 : f32 to vector<8x32xf32>
        %689 = arith.subf %687, %688 : vector<8x32xf32>
        %690 = arith.select %684, %682, %689 : vector<8x32xi1>, vector<8x32xf32>
        %691 = vector.extract_strided_slice %690 {offsets = [0, 0], sizes = [8, 1], strides = [1, 1]} : vector<8x32xf32> to vector<8x1xf32>
        %692 = vector.extract_strided_slice %2 {offsets = [0, 0], sizes = [1, 4], strides = [1, 1]} : vector<32x4xf32> to vector<1x4xf32>
        %693 = vector.broadcast %691 : vector<8x1xf32> to vector<8x4xf32>
        %694 = vector.broadcast %692 : vector<1x4xf32> to vector<8x4xf32>
        %695 = arith.mulf %693, %694 : vector<8x4xf32>
        %696 = arith.addf %11, %695 : vector<8x4xf32>
        %697 = vector.extract_strided_slice %690 {offsets = [0, 1], sizes = [8, 1], strides = [1, 1]} : vector<8x32xf32> to vector<8x1xf32>
        %698 = vector.extract_strided_slice %2 {offsets = [1, 0], sizes = [1, 4], strides = [1, 1]} : vector<32x4xf32> to vector<1x4xf32>
        %699 = vector.broadcast %697 : vector<8x1xf32> to vector<8x4xf32>
        %700 = vector.broadcast %698 : vector<1x4xf32> to vector<8x4xf32>
        %701 = arith.mulf %699, %700 : vector<8x4xf32>
        %702 = arith.addf %696, %701 : vector<8x4xf32>
        %703 = vector.extract_strided_slice %690 {offsets = [0, 2], sizes = [8, 1], strides = [1, 1]} : vector<8x32xf32> to vector<8x1xf32>
        %704 = vector.extract_strided_slice %2 {offsets = [2, 0], sizes = [1, 4], strides = [1, 1]} : vector<32x4xf32> to vector<1x4xf32>
        %705 = vector.broadcast %703 : vector<8x1xf32> to vector<8x4xf32>
        %706 = vector.broadcast %704 : vector<1x4xf32> to vector<8x4xf32>
        %707 = arith.mulf %705, %706 : vector<8x4xf32>
        %708 = arith.addf %702, %707 : vector<8x4xf32>
        %709 = vector.extract_strided_slice %690 {offsets = [0, 3], sizes = [8, 1], strides = [1, 1]} : vector<8x32xf32> to vector<8x1xf32>
        %710 = vector.extract_strided_slice %2 {offsets = [3, 0], sizes = [1, 4], strides = [1, 1]} : vector<32x4xf32> to vector<1x4xf32>
        %711 = vector.broadcast %709 : vector<8x1xf32> to vector<8x4xf32>
        %712 = vector.broadcast %710 : vector<1x4xf32> to vector<8x4xf32>
        %713 = arith.mulf %711, %712 : vector<8x4xf32>
        %714 = arith.addf %708, %713 : vector<8x4xf32>
        %715 = vector.extract_strided_slice %690 {offsets = [0, 4], sizes = [8, 1], strides = [1, 1]} : vector<8x32xf32> to vector<8x1xf32>
        %716 = vector.extract_strided_slice %2 {offsets = [4, 0], sizes = [1, 4], strides = [1, 1]} : vector<32x4xf32> to vector<1x4xf32>
        %717 = vector.broadcast %715 : vector<8x1xf32> to vector<8x4xf32>
        %718 = vector.broadcast %716 : vector<1x4xf32> to vector<8x4xf32>
        %719 = arith.mulf %717, %718 : vector<8x4xf32>
        %720 = arith.addf %714, %719 : vector<8x4xf32>
        %721 = vector.extract_strided_slice %690 {offsets = [0, 5], sizes = [8, 1], strides = [1, 1]} : vector<8x32xf32> to vector<8x1xf32>
        %722 = vector.extract_strided_slice %2 {offsets = [5, 0], sizes = [1, 4], strides = [1, 1]} : vector<32x4xf32> to vector<1x4xf32>
        %723 = vector.broadcast %721 : vector<8x1xf32> to vector<8x4xf32>
        %724 = vector.broadcast %722 : vector<1x4xf32> to vector<8x4xf32>
        %725 = arith.mulf %723, %724 : vector<8x4xf32>
        %726 = arith.addf %720, %725 : vector<8x4xf32>
        %727 = vector.extract_strided_slice %690 {offsets = [0, 6], sizes = [8, 1], strides = [1, 1]} : vector<8x32xf32> to vector<8x1xf32>
        %728 = vector.extract_strided_slice %2 {offsets = [6, 0], sizes = [1, 4], strides = [1, 1]} : vector<32x4xf32> to vector<1x4xf32>
        %729 = vector.broadcast %727 : vector<8x1xf32> to vector<8x4xf32>
        %730 = vector.broadcast %728 : vector<1x4xf32> to vector<8x4xf32>
        %731 = arith.mulf %729, %730 : vector<8x4xf32>
        %732 = arith.addf %726, %731 : vector<8x4xf32>
        %733 = vector.extract_strided_slice %690 {offsets = [0, 7], sizes = [8, 1], strides = [1, 1]} : vector<8x32xf32> to vector<8x1xf32>
        %734 = vector.extract_strided_slice %2 {offsets = [7, 0], sizes = [1, 4], strides = [1, 1]} : vector<32x4xf32> to vector<1x4xf32>
        %735 = vector.broadcast %733 : vector<8x1xf32> to vector<8x4xf32>
        %736 = vector.broadcast %734 : vector<1x4xf32> to vector<8x4xf32>
        %737 = arith.mulf %735, %736 : vector<8x4xf32>
        %738 = arith.addf %732, %737 : vector<8x4xf32>
        %739 = vector.extract_strided_slice %690 {offsets = [0, 8], sizes = [8, 1], strides = [1, 1]} : vector<8x32xf32> to vector<8x1xf32>
        %740 = vector.extract_strided_slice %2 {offsets = [8, 0], sizes = [1, 4], strides = [1, 1]} : vector<32x4xf32> to vector<1x4xf32>
        %741 = vector.broadcast %739 : vector<8x1xf32> to vector<8x4xf32>
        %742 = vector.broadcast %740 : vector<1x4xf32> to vector<8x4xf32>
        %743 = arith.mulf %741, %742 : vector<8x4xf32>
        %744 = arith.addf %738, %743 : vector<8x4xf32>
        %745 = vector.extract_strided_slice %690 {offsets = [0, 9], sizes = [8, 1], strides = [1, 1]} : vector<8x32xf32> to vector<8x1xf32>
        %746 = vector.extract_strided_slice %2 {offsets = [9, 0], sizes = [1, 4], strides = [1, 1]} : vector<32x4xf32> to vector<1x4xf32>
        %747 = vector.broadcast %745 : vector<8x1xf32> to vector<8x4xf32>
        %748 = vector.broadcast %746 : vector<1x4xf32> to vector<8x4xf32>
        %749 = arith.mulf %747, %748 : vector<8x4xf32>
        %750 = arith.addf %744, %749 : vector<8x4xf32>
        %751 = vector.extract_strided_slice %690 {offsets = [0, 10], sizes = [8, 1], strides = [1, 1]} : vector<8x32xf32> to vector<8x1xf32>
        %752 = vector.extract_strided_slice %2 {offsets = [10, 0], sizes = [1, 4], strides = [1, 1]} : vector<32x4xf32> to vector<1x4xf32>
        %753 = vector.broadcast %751 : vector<8x1xf32> to vector<8x4xf32>
        %754 = vector.broadcast %752 : vector<1x4xf32> to vector<8x4xf32>
        %755 = arith.mulf %753, %754 : vector<8x4xf32>
        %756 = arith.addf %750, %755 : vector<8x4xf32>
        %757 = vector.extract_strided_slice %690 {offsets = [0, 11], sizes = [8, 1], strides = [1, 1]} : vector<8x32xf32> to vector<8x1xf32>
        %758 = vector.extract_strided_slice %2 {offsets = [11, 0], sizes = [1, 4], strides = [1, 1]} : vector<32x4xf32> to vector<1x4xf32>
        %759 = vector.broadcast %757 : vector<8x1xf32> to vector<8x4xf32>
        %760 = vector.broadcast %758 : vector<1x4xf32> to vector<8x4xf32>
        %761 = arith.mulf %759, %760 : vector<8x4xf32>
        %762 = arith.addf %756, %761 : vector<8x4xf32>
        %763 = vector.extract_strided_slice %690 {offsets = [0, 12], sizes = [8, 1], strides = [1, 1]} : vector<8x32xf32> to vector<8x1xf32>
        %764 = vector.extract_strided_slice %2 {offsets = [12, 0], sizes = [1, 4], strides = [1, 1]} : vector<32x4xf32> to vector<1x4xf32>
        %765 = vector.broadcast %763 : vector<8x1xf32> to vector<8x4xf32>
        %766 = vector.broadcast %764 : vector<1x4xf32> to vector<8x4xf32>
        %767 = arith.mulf %765, %766 : vector<8x4xf32>
        %768 = arith.addf %762, %767 : vector<8x4xf32>
        %769 = vector.extract_strided_slice %690 {offsets = [0, 13], sizes = [8, 1], strides = [1, 1]} : vector<8x32xf32> to vector<8x1xf32>
        %770 = vector.extract_strided_slice %2 {offsets = [13, 0], sizes = [1, 4], strides = [1, 1]} : vector<32x4xf32> to vector<1x4xf32>
        %771 = vector.broadcast %769 : vector<8x1xf32> to vector<8x4xf32>
        %772 = vector.broadcast %770 : vector<1x4xf32> to vector<8x4xf32>
        %773 = arith.mulf %771, %772 : vector<8x4xf32>
        %774 = arith.addf %768, %773 : vector<8x4xf32>
        %775 = vector.extract_strided_slice %690 {offsets = [0, 14], sizes = [8, 1], strides = [1, 1]} : vector<8x32xf32> to vector<8x1xf32>
        %776 = vector.extract_strided_slice %2 {offsets = [14, 0], sizes = [1, 4], strides = [1, 1]} : vector<32x4xf32> to vector<1x4xf32>
        %777 = vector.broadcast %775 : vector<8x1xf32> to vector<8x4xf32>
        %778 = vector.broadcast %776 : vector<1x4xf32> to vector<8x4xf32>
        %779 = arith.mulf %777, %778 : vector<8x4xf32>
        %780 = arith.addf %774, %779 : vector<8x4xf32>
        %781 = vector.extract_strided_slice %690 {offsets = [0, 15], sizes = [8, 1], strides = [1, 1]} : vector<8x32xf32> to vector<8x1xf32>
        %782 = vector.extract_strided_slice %2 {offsets = [15, 0], sizes = [1, 4], strides = [1, 1]} : vector<32x4xf32> to vector<1x4xf32>
        %783 = vector.broadcast %781 : vector<8x1xf32> to vector<8x4xf32>
        %784 = vector.broadcast %782 : vector<1x4xf32> to vector<8x4xf32>
        %785 = arith.mulf %783, %784 : vector<8x4xf32>
        %786 = arith.addf %780, %785 : vector<8x4xf32>
        %787 = vector.extract_strided_slice %690 {offsets = [0, 16], sizes = [8, 1], strides = [1, 1]} : vector<8x32xf32> to vector<8x1xf32>
        %788 = vector.extract_strided_slice %2 {offsets = [16, 0], sizes = [1, 4], strides = [1, 1]} : vector<32x4xf32> to vector<1x4xf32>
        %789 = vector.broadcast %787 : vector<8x1xf32> to vector<8x4xf32>
        %790 = vector.broadcast %788 : vector<1x4xf32> to vector<8x4xf32>
        %791 = arith.mulf %789, %790 : vector<8x4xf32>
        %792 = arith.addf %786, %791 : vector<8x4xf32>
        %793 = vector.extract_strided_slice %690 {offsets = [0, 17], sizes = [8, 1], strides = [1, 1]} : vector<8x32xf32> to vector<8x1xf32>
        %794 = vector.extract_strided_slice %2 {offsets = [17, 0], sizes = [1, 4], strides = [1, 1]} : vector<32x4xf32> to vector<1x4xf32>
        %795 = vector.broadcast %793 : vector<8x1xf32> to vector<8x4xf32>
        %796 = vector.broadcast %794 : vector<1x4xf32> to vector<8x4xf32>
        %797 = arith.mulf %795, %796 : vector<8x4xf32>
        %798 = arith.addf %792, %797 : vector<8x4xf32>
        %799 = vector.extract_strided_slice %690 {offsets = [0, 18], sizes = [8, 1], strides = [1, 1]} : vector<8x32xf32> to vector<8x1xf32>
        %800 = vector.extract_strided_slice %2 {offsets = [18, 0], sizes = [1, 4], strides = [1, 1]} : vector<32x4xf32> to vector<1x4xf32>
        %801 = vector.broadcast %799 : vector<8x1xf32> to vector<8x4xf32>
        %802 = vector.broadcast %800 : vector<1x4xf32> to vector<8x4xf32>
        %803 = arith.mulf %801, %802 : vector<8x4xf32>
        %804 = arith.addf %798, %803 : vector<8x4xf32>
        %805 = vector.extract_strided_slice %690 {offsets = [0, 19], sizes = [8, 1], strides = [1, 1]} : vector<8x32xf32> to vector<8x1xf32>
        %806 = vector.extract_strided_slice %2 {offsets = [19, 0], sizes = [1, 4], strides = [1, 1]} : vector<32x4xf32> to vector<1x4xf32>
        %807 = vector.broadcast %805 : vector<8x1xf32> to vector<8x4xf32>
        %808 = vector.broadcast %806 : vector<1x4xf32> to vector<8x4xf32>
        %809 = arith.mulf %807, %808 : vector<8x4xf32>
        %810 = arith.addf %804, %809 : vector<8x4xf32>
        %811 = vector.extract_strided_slice %690 {offsets = [0, 20], sizes = [8, 1], strides = [1, 1]} : vector<8x32xf32> to vector<8x1xf32>
        %812 = vector.extract_strided_slice %2 {offsets = [20, 0], sizes = [1, 4], strides = [1, 1]} : vector<32x4xf32> to vector<1x4xf32>
        %813 = vector.broadcast %811 : vector<8x1xf32> to vector<8x4xf32>
        %814 = vector.broadcast %812 : vector<1x4xf32> to vector<8x4xf32>
        %815 = arith.mulf %813, %814 : vector<8x4xf32>
        %816 = arith.addf %810, %815 : vector<8x4xf32>
        %817 = vector.extract_strided_slice %690 {offsets = [0, 21], sizes = [8, 1], strides = [1, 1]} : vector<8x32xf32> to vector<8x1xf32>
        %818 = vector.extract_strided_slice %2 {offsets = [21, 0], sizes = [1, 4], strides = [1, 1]} : vector<32x4xf32> to vector<1x4xf32>
        %819 = vector.broadcast %817 : vector<8x1xf32> to vector<8x4xf32>
        %820 = vector.broadcast %818 : vector<1x4xf32> to vector<8x4xf32>
        %821 = arith.mulf %819, %820 : vector<8x4xf32>
        %822 = arith.addf %816, %821 : vector<8x4xf32>
        %823 = vector.extract_strided_slice %690 {offsets = [0, 22], sizes = [8, 1], strides = [1, 1]} : vector<8x32xf32> to vector<8x1xf32>
        %824 = vector.extract_strided_slice %2 {offsets = [22, 0], sizes = [1, 4], strides = [1, 1]} : vector<32x4xf32> to vector<1x4xf32>
        %825 = vector.broadcast %823 : vector<8x1xf32> to vector<8x4xf32>
        %826 = vector.broadcast %824 : vector<1x4xf32> to vector<8x4xf32>
        %827 = arith.mulf %825, %826 : vector<8x4xf32>
        %828 = arith.addf %822, %827 : vector<8x4xf32>
        %829 = vector.extract_strided_slice %690 {offsets = [0, 23], sizes = [8, 1], strides = [1, 1]} : vector<8x32xf32> to vector<8x1xf32>
        %830 = vector.extract_strided_slice %2 {offsets = [23, 0], sizes = [1, 4], strides = [1, 1]} : vector<32x4xf32> to vector<1x4xf32>
        %831 = vector.broadcast %829 : vector<8x1xf32> to vector<8x4xf32>
        %832 = vector.broadcast %830 : vector<1x4xf32> to vector<8x4xf32>
        %833 = arith.mulf %831, %832 : vector<8x4xf32>
        %834 = arith.addf %828, %833 : vector<8x4xf32>
        %835 = vector.extract_strided_slice %690 {offsets = [0, 24], sizes = [8, 1], strides = [1, 1]} : vector<8x32xf32> to vector<8x1xf32>
        %836 = vector.extract_strided_slice %2 {offsets = [24, 0], sizes = [1, 4], strides = [1, 1]} : vector<32x4xf32> to vector<1x4xf32>
        %837 = vector.broadcast %835 : vector<8x1xf32> to vector<8x4xf32>
        %838 = vector.broadcast %836 : vector<1x4xf32> to vector<8x4xf32>
        %839 = arith.mulf %837, %838 : vector<8x4xf32>
        %840 = arith.addf %834, %839 : vector<8x4xf32>
        %841 = vector.extract_strided_slice %690 {offsets = [0, 25], sizes = [8, 1], strides = [1, 1]} : vector<8x32xf32> to vector<8x1xf32>
        %842 = vector.extract_strided_slice %2 {offsets = [25, 0], sizes = [1, 4], strides = [1, 1]} : vector<32x4xf32> to vector<1x4xf32>
        %843 = vector.broadcast %841 : vector<8x1xf32> to vector<8x4xf32>
        %844 = vector.broadcast %842 : vector<1x4xf32> to vector<8x4xf32>
        %845 = arith.mulf %843, %844 : vector<8x4xf32>
        %846 = arith.addf %840, %845 : vector<8x4xf32>
        %847 = vector.extract_strided_slice %690 {offsets = [0, 26], sizes = [8, 1], strides = [1, 1]} : vector<8x32xf32> to vector<8x1xf32>
        %848 = vector.extract_strided_slice %2 {offsets = [26, 0], sizes = [1, 4], strides = [1, 1]} : vector<32x4xf32> to vector<1x4xf32>
        %849 = vector.broadcast %847 : vector<8x1xf32> to vector<8x4xf32>
        %850 = vector.broadcast %848 : vector<1x4xf32> to vector<8x4xf32>
        %851 = arith.mulf %849, %850 : vector<8x4xf32>
        %852 = arith.addf %846, %851 : vector<8x4xf32>
        %853 = vector.extract_strided_slice %690 {offsets = [0, 27], sizes = [8, 1], strides = [1, 1]} : vector<8x32xf32> to vector<8x1xf32>
        %854 = vector.extract_strided_slice %2 {offsets = [27, 0], sizes = [1, 4], strides = [1, 1]} : vector<32x4xf32> to vector<1x4xf32>
        %855 = vector.broadcast %853 : vector<8x1xf32> to vector<8x4xf32>
        %856 = vector.broadcast %854 : vector<1x4xf32> to vector<8x4xf32>
        %857 = arith.mulf %855, %856 : vector<8x4xf32>
        %858 = arith.addf %852, %857 : vector<8x4xf32>
        %859 = vector.extract_strided_slice %690 {offsets = [0, 28], sizes = [8, 1], strides = [1, 1]} : vector<8x32xf32> to vector<8x1xf32>
        %860 = vector.extract_strided_slice %2 {offsets = [28, 0], sizes = [1, 4], strides = [1, 1]} : vector<32x4xf32> to vector<1x4xf32>
        %861 = vector.broadcast %859 : vector<8x1xf32> to vector<8x4xf32>
        %862 = vector.broadcast %860 : vector<1x4xf32> to vector<8x4xf32>
        %863 = arith.mulf %861, %862 : vector<8x4xf32>
        %864 = arith.addf %858, %863 : vector<8x4xf32>
        %865 = vector.extract_strided_slice %690 {offsets = [0, 29], sizes = [8, 1], strides = [1, 1]} : vector<8x32xf32> to vector<8x1xf32>
        %866 = vector.extract_strided_slice %2 {offsets = [29, 0], sizes = [1, 4], strides = [1, 1]} : vector<32x4xf32> to vector<1x4xf32>
        %867 = vector.broadcast %865 : vector<8x1xf32> to vector<8x4xf32>
        %868 = vector.broadcast %866 : vector<1x4xf32> to vector<8x4xf32>
        %869 = arith.mulf %867, %868 : vector<8x4xf32>
        %870 = arith.addf %864, %869 : vector<8x4xf32>
        %871 = vector.extract_strided_slice %690 {offsets = [0, 30], sizes = [8, 1], strides = [1, 1]} : vector<8x32xf32> to vector<8x1xf32>
        %872 = vector.extract_strided_slice %2 {offsets = [30, 0], sizes = [1, 4], strides = [1, 1]} : vector<32x4xf32> to vector<1x4xf32>
        %873 = vector.broadcast %871 : vector<8x1xf32> to vector<8x4xf32>
        %874 = vector.broadcast %872 : vector<1x4xf32> to vector<8x4xf32>
        %875 = arith.mulf %873, %874 : vector<8x4xf32>
        %876 = arith.addf %870, %875 : vector<8x4xf32>
        %877 = vector.extract_strided_slice %690 {offsets = [0, 31], sizes = [8, 1], strides = [1, 1]} : vector<8x32xf32> to vector<8x1xf32>
        %878 = vector.extract_strided_slice %2 {offsets = [31, 0], sizes = [1, 4], strides = [1, 1]} : vector<32x4xf32> to vector<1x4xf32>
        %879 = vector.broadcast %877 : vector<8x1xf32> to vector<8x4xf32>
        %880 = vector.broadcast %878 : vector<1x4xf32> to vector<8x4xf32>
        %881 = arith.mulf %879, %880 : vector<8x4xf32>
        %882 = arith.addf %876, %881 : vector<8x4xf32>
        %cst_35 = arith.constant 5.000000e-01 : f32
        %883 = arith.mulf %cst_35, %24 : f32
        %884 = vector.broadcast %883 : f32 to vector<8x4xf32>
        %885 = arith.mulf %884, %882 : vector<8x4xf32>
        %886 = arith.addf %arg13, %885 : vector<8x4xf32>
        %887 = vector.extract_strided_slice %886 {offsets = [0, 0], sizes = [8, 1], strides = [1, 1]} : vector<8x4xf32> to vector<8x1xf32>
        %888 = vector.extract_strided_slice %0 {offsets = [0, 0], sizes = [1, 32], strides = [1, 1]} : vector<4x32xf32> to vector<1x32xf32>
        %889 = vector.broadcast %887 : vector<8x1xf32> to vector<8x32xf32>
        %890 = vector.broadcast %888 : vector<1x32xf32> to vector<8x32xf32>
        %891 = arith.mulf %889, %890 : vector<8x32xf32>
        %892 = arith.addf %5, %891 : vector<8x32xf32>
        %893 = vector.extract_strided_slice %886 {offsets = [0, 1], sizes = [8, 1], strides = [1, 1]} : vector<8x4xf32> to vector<8x1xf32>
        %894 = vector.extract_strided_slice %0 {offsets = [1, 0], sizes = [1, 32], strides = [1, 1]} : vector<4x32xf32> to vector<1x32xf32>
        %895 = vector.broadcast %893 : vector<8x1xf32> to vector<8x32xf32>
        %896 = vector.broadcast %894 : vector<1x32xf32> to vector<8x32xf32>
        %897 = arith.mulf %895, %896 : vector<8x32xf32>
        %898 = arith.addf %892, %897 : vector<8x32xf32>
        %899 = vector.extract_strided_slice %886 {offsets = [0, 2], sizes = [8, 1], strides = [1, 1]} : vector<8x4xf32> to vector<8x1xf32>
        %900 = vector.extract_strided_slice %0 {offsets = [2, 0], sizes = [1, 32], strides = [1, 1]} : vector<4x32xf32> to vector<1x32xf32>
        %901 = vector.broadcast %899 : vector<8x1xf32> to vector<8x32xf32>
        %902 = vector.broadcast %900 : vector<1x32xf32> to vector<8x32xf32>
        %903 = arith.mulf %901, %902 : vector<8x32xf32>
        %904 = arith.addf %898, %903 : vector<8x32xf32>
        %905 = vector.extract_strided_slice %886 {offsets = [0, 3], sizes = [8, 1], strides = [1, 1]} : vector<8x4xf32> to vector<8x1xf32>
        %906 = vector.extract_strided_slice %0 {offsets = [3, 0], sizes = [1, 32], strides = [1, 1]} : vector<4x32xf32> to vector<1x32xf32>
        %907 = vector.broadcast %905 : vector<8x1xf32> to vector<8x32xf32>
        %908 = vector.broadcast %906 : vector<1x32xf32> to vector<8x32xf32>
        %909 = arith.mulf %907, %908 : vector<8x32xf32>
        %910 = arith.addf %904, %909 : vector<8x32xf32>
        %cst_36 = arith.constant 0.000000e+00 : f32
        %911 = vector.broadcast %cst_36 : f32 to vector<8x32xf32>
        %912 = arith.cmpf ogt, %910, %911 : vector<8x32xf32>
        %cst_37 = arith.constant 0.000000e+00 : f32
        %913 = vector.broadcast %cst_37 : f32 to vector<8x32xf32>
        %914 = arith.minimumf %910, %913 : vector<8x32xf32>
        %915 = math.exp %914 : vector<8x32xf32>
        %cst_38 = arith.constant 1.000000e+00 : f32
        %916 = vector.broadcast %cst_38 : f32 to vector<8x32xf32>
        %917 = arith.subf %915, %916 : vector<8x32xf32>
        %918 = arith.select %912, %910, %917 : vector<8x32xi1>, vector<8x32xf32>
        %919 = vector.extract_strided_slice %918 {offsets = [0, 0], sizes = [8, 1], strides = [1, 1]} : vector<8x32xf32> to vector<8x1xf32>
        %920 = vector.extract_strided_slice %1 {offsets = [0, 0], sizes = [1, 32], strides = [1, 1]} : vector<32x32xf32> to vector<1x32xf32>
        %921 = vector.broadcast %919 : vector<8x1xf32> to vector<8x32xf32>
        %922 = vector.broadcast %920 : vector<1x32xf32> to vector<8x32xf32>
        %923 = arith.mulf %921, %922 : vector<8x32xf32>
        %924 = arith.addf %8, %923 : vector<8x32xf32>
        %925 = vector.extract_strided_slice %918 {offsets = [0, 1], sizes = [8, 1], strides = [1, 1]} : vector<8x32xf32> to vector<8x1xf32>
        %926 = vector.extract_strided_slice %1 {offsets = [1, 0], sizes = [1, 32], strides = [1, 1]} : vector<32x32xf32> to vector<1x32xf32>
        %927 = vector.broadcast %925 : vector<8x1xf32> to vector<8x32xf32>
        %928 = vector.broadcast %926 : vector<1x32xf32> to vector<8x32xf32>
        %929 = arith.mulf %927, %928 : vector<8x32xf32>
        %930 = arith.addf %924, %929 : vector<8x32xf32>
        %931 = vector.extract_strided_slice %918 {offsets = [0, 2], sizes = [8, 1], strides = [1, 1]} : vector<8x32xf32> to vector<8x1xf32>
        %932 = vector.extract_strided_slice %1 {offsets = [2, 0], sizes = [1, 32], strides = [1, 1]} : vector<32x32xf32> to vector<1x32xf32>
        %933 = vector.broadcast %931 : vector<8x1xf32> to vector<8x32xf32>
        %934 = vector.broadcast %932 : vector<1x32xf32> to vector<8x32xf32>
        %935 = arith.mulf %933, %934 : vector<8x32xf32>
        %936 = arith.addf %930, %935 : vector<8x32xf32>
        %937 = vector.extract_strided_slice %918 {offsets = [0, 3], sizes = [8, 1], strides = [1, 1]} : vector<8x32xf32> to vector<8x1xf32>
        %938 = vector.extract_strided_slice %1 {offsets = [3, 0], sizes = [1, 32], strides = [1, 1]} : vector<32x32xf32> to vector<1x32xf32>
        %939 = vector.broadcast %937 : vector<8x1xf32> to vector<8x32xf32>
        %940 = vector.broadcast %938 : vector<1x32xf32> to vector<8x32xf32>
        %941 = arith.mulf %939, %940 : vector<8x32xf32>
        %942 = arith.addf %936, %941 : vector<8x32xf32>
        %943 = vector.extract_strided_slice %918 {offsets = [0, 4], sizes = [8, 1], strides = [1, 1]} : vector<8x32xf32> to vector<8x1xf32>
        %944 = vector.extract_strided_slice %1 {offsets = [4, 0], sizes = [1, 32], strides = [1, 1]} : vector<32x32xf32> to vector<1x32xf32>
        %945 = vector.broadcast %943 : vector<8x1xf32> to vector<8x32xf32>
        %946 = vector.broadcast %944 : vector<1x32xf32> to vector<8x32xf32>
        %947 = arith.mulf %945, %946 : vector<8x32xf32>
        %948 = arith.addf %942, %947 : vector<8x32xf32>
        %949 = vector.extract_strided_slice %918 {offsets = [0, 5], sizes = [8, 1], strides = [1, 1]} : vector<8x32xf32> to vector<8x1xf32>
        %950 = vector.extract_strided_slice %1 {offsets = [5, 0], sizes = [1, 32], strides = [1, 1]} : vector<32x32xf32> to vector<1x32xf32>
        %951 = vector.broadcast %949 : vector<8x1xf32> to vector<8x32xf32>
        %952 = vector.broadcast %950 : vector<1x32xf32> to vector<8x32xf32>
        %953 = arith.mulf %951, %952 : vector<8x32xf32>
        %954 = arith.addf %948, %953 : vector<8x32xf32>
        %955 = vector.extract_strided_slice %918 {offsets = [0, 6], sizes = [8, 1], strides = [1, 1]} : vector<8x32xf32> to vector<8x1xf32>
        %956 = vector.extract_strided_slice %1 {offsets = [6, 0], sizes = [1, 32], strides = [1, 1]} : vector<32x32xf32> to vector<1x32xf32>
        %957 = vector.broadcast %955 : vector<8x1xf32> to vector<8x32xf32>
        %958 = vector.broadcast %956 : vector<1x32xf32> to vector<8x32xf32>
        %959 = arith.mulf %957, %958 : vector<8x32xf32>
        %960 = arith.addf %954, %959 : vector<8x32xf32>
        %961 = vector.extract_strided_slice %918 {offsets = [0, 7], sizes = [8, 1], strides = [1, 1]} : vector<8x32xf32> to vector<8x1xf32>
        %962 = vector.extract_strided_slice %1 {offsets = [7, 0], sizes = [1, 32], strides = [1, 1]} : vector<32x32xf32> to vector<1x32xf32>
        %963 = vector.broadcast %961 : vector<8x1xf32> to vector<8x32xf32>
        %964 = vector.broadcast %962 : vector<1x32xf32> to vector<8x32xf32>
        %965 = arith.mulf %963, %964 : vector<8x32xf32>
        %966 = arith.addf %960, %965 : vector<8x32xf32>
        %967 = vector.extract_strided_slice %918 {offsets = [0, 8], sizes = [8, 1], strides = [1, 1]} : vector<8x32xf32> to vector<8x1xf32>
        %968 = vector.extract_strided_slice %1 {offsets = [8, 0], sizes = [1, 32], strides = [1, 1]} : vector<32x32xf32> to vector<1x32xf32>
        %969 = vector.broadcast %967 : vector<8x1xf32> to vector<8x32xf32>
        %970 = vector.broadcast %968 : vector<1x32xf32> to vector<8x32xf32>
        %971 = arith.mulf %969, %970 : vector<8x32xf32>
        %972 = arith.addf %966, %971 : vector<8x32xf32>
        %973 = vector.extract_strided_slice %918 {offsets = [0, 9], sizes = [8, 1], strides = [1, 1]} : vector<8x32xf32> to vector<8x1xf32>
        %974 = vector.extract_strided_slice %1 {offsets = [9, 0], sizes = [1, 32], strides = [1, 1]} : vector<32x32xf32> to vector<1x32xf32>
        %975 = vector.broadcast %973 : vector<8x1xf32> to vector<8x32xf32>
        %976 = vector.broadcast %974 : vector<1x32xf32> to vector<8x32xf32>
        %977 = arith.mulf %975, %976 : vector<8x32xf32>
        %978 = arith.addf %972, %977 : vector<8x32xf32>
        %979 = vector.extract_strided_slice %918 {offsets = [0, 10], sizes = [8, 1], strides = [1, 1]} : vector<8x32xf32> to vector<8x1xf32>
        %980 = vector.extract_strided_slice %1 {offsets = [10, 0], sizes = [1, 32], strides = [1, 1]} : vector<32x32xf32> to vector<1x32xf32>
        %981 = vector.broadcast %979 : vector<8x1xf32> to vector<8x32xf32>
        %982 = vector.broadcast %980 : vector<1x32xf32> to vector<8x32xf32>
        %983 = arith.mulf %981, %982 : vector<8x32xf32>
        %984 = arith.addf %978, %983 : vector<8x32xf32>
        %985 = vector.extract_strided_slice %918 {offsets = [0, 11], sizes = [8, 1], strides = [1, 1]} : vector<8x32xf32> to vector<8x1xf32>
        %986 = vector.extract_strided_slice %1 {offsets = [11, 0], sizes = [1, 32], strides = [1, 1]} : vector<32x32xf32> to vector<1x32xf32>
        %987 = vector.broadcast %985 : vector<8x1xf32> to vector<8x32xf32>
        %988 = vector.broadcast %986 : vector<1x32xf32> to vector<8x32xf32>
        %989 = arith.mulf %987, %988 : vector<8x32xf32>
        %990 = arith.addf %984, %989 : vector<8x32xf32>
        %991 = vector.extract_strided_slice %918 {offsets = [0, 12], sizes = [8, 1], strides = [1, 1]} : vector<8x32xf32> to vector<8x1xf32>
        %992 = vector.extract_strided_slice %1 {offsets = [12, 0], sizes = [1, 32], strides = [1, 1]} : vector<32x32xf32> to vector<1x32xf32>
        %993 = vector.broadcast %991 : vector<8x1xf32> to vector<8x32xf32>
        %994 = vector.broadcast %992 : vector<1x32xf32> to vector<8x32xf32>
        %995 = arith.mulf %993, %994 : vector<8x32xf32>
        %996 = arith.addf %990, %995 : vector<8x32xf32>
        %997 = vector.extract_strided_slice %918 {offsets = [0, 13], sizes = [8, 1], strides = [1, 1]} : vector<8x32xf32> to vector<8x1xf32>
        %998 = vector.extract_strided_slice %1 {offsets = [13, 0], sizes = [1, 32], strides = [1, 1]} : vector<32x32xf32> to vector<1x32xf32>
        %999 = vector.broadcast %997 : vector<8x1xf32> to vector<8x32xf32>
        %1000 = vector.broadcast %998 : vector<1x32xf32> to vector<8x32xf32>
        %1001 = arith.mulf %999, %1000 : vector<8x32xf32>
        %1002 = arith.addf %996, %1001 : vector<8x32xf32>
        %1003 = vector.extract_strided_slice %918 {offsets = [0, 14], sizes = [8, 1], strides = [1, 1]} : vector<8x32xf32> to vector<8x1xf32>
        %1004 = vector.extract_strided_slice %1 {offsets = [14, 0], sizes = [1, 32], strides = [1, 1]} : vector<32x32xf32> to vector<1x32xf32>
        %1005 = vector.broadcast %1003 : vector<8x1xf32> to vector<8x32xf32>
        %1006 = vector.broadcast %1004 : vector<1x32xf32> to vector<8x32xf32>
        %1007 = arith.mulf %1005, %1006 : vector<8x32xf32>
        %1008 = arith.addf %1002, %1007 : vector<8x32xf32>
        %1009 = vector.extract_strided_slice %918 {offsets = [0, 15], sizes = [8, 1], strides = [1, 1]} : vector<8x32xf32> to vector<8x1xf32>
        %1010 = vector.extract_strided_slice %1 {offsets = [15, 0], sizes = [1, 32], strides = [1, 1]} : vector<32x32xf32> to vector<1x32xf32>
        %1011 = vector.broadcast %1009 : vector<8x1xf32> to vector<8x32xf32>
        %1012 = vector.broadcast %1010 : vector<1x32xf32> to vector<8x32xf32>
        %1013 = arith.mulf %1011, %1012 : vector<8x32xf32>
        %1014 = arith.addf %1008, %1013 : vector<8x32xf32>
        %1015 = vector.extract_strided_slice %918 {offsets = [0, 16], sizes = [8, 1], strides = [1, 1]} : vector<8x32xf32> to vector<8x1xf32>
        %1016 = vector.extract_strided_slice %1 {offsets = [16, 0], sizes = [1, 32], strides = [1, 1]} : vector<32x32xf32> to vector<1x32xf32>
        %1017 = vector.broadcast %1015 : vector<8x1xf32> to vector<8x32xf32>
        %1018 = vector.broadcast %1016 : vector<1x32xf32> to vector<8x32xf32>
        %1019 = arith.mulf %1017, %1018 : vector<8x32xf32>
        %1020 = arith.addf %1014, %1019 : vector<8x32xf32>
        %1021 = vector.extract_strided_slice %918 {offsets = [0, 17], sizes = [8, 1], strides = [1, 1]} : vector<8x32xf32> to vector<8x1xf32>
        %1022 = vector.extract_strided_slice %1 {offsets = [17, 0], sizes = [1, 32], strides = [1, 1]} : vector<32x32xf32> to vector<1x32xf32>
        %1023 = vector.broadcast %1021 : vector<8x1xf32> to vector<8x32xf32>
        %1024 = vector.broadcast %1022 : vector<1x32xf32> to vector<8x32xf32>
        %1025 = arith.mulf %1023, %1024 : vector<8x32xf32>
        %1026 = arith.addf %1020, %1025 : vector<8x32xf32>
        %1027 = vector.extract_strided_slice %918 {offsets = [0, 18], sizes = [8, 1], strides = [1, 1]} : vector<8x32xf32> to vector<8x1xf32>
        %1028 = vector.extract_strided_slice %1 {offsets = [18, 0], sizes = [1, 32], strides = [1, 1]} : vector<32x32xf32> to vector<1x32xf32>
        %1029 = vector.broadcast %1027 : vector<8x1xf32> to vector<8x32xf32>
        %1030 = vector.broadcast %1028 : vector<1x32xf32> to vector<8x32xf32>
        %1031 = arith.mulf %1029, %1030 : vector<8x32xf32>
        %1032 = arith.addf %1026, %1031 : vector<8x32xf32>
        %1033 = vector.extract_strided_slice %918 {offsets = [0, 19], sizes = [8, 1], strides = [1, 1]} : vector<8x32xf32> to vector<8x1xf32>
        %1034 = vector.extract_strided_slice %1 {offsets = [19, 0], sizes = [1, 32], strides = [1, 1]} : vector<32x32xf32> to vector<1x32xf32>
        %1035 = vector.broadcast %1033 : vector<8x1xf32> to vector<8x32xf32>
        %1036 = vector.broadcast %1034 : vector<1x32xf32> to vector<8x32xf32>
        %1037 = arith.mulf %1035, %1036 : vector<8x32xf32>
        %1038 = arith.addf %1032, %1037 : vector<8x32xf32>
        %1039 = vector.extract_strided_slice %918 {offsets = [0, 20], sizes = [8, 1], strides = [1, 1]} : vector<8x32xf32> to vector<8x1xf32>
        %1040 = vector.extract_strided_slice %1 {offsets = [20, 0], sizes = [1, 32], strides = [1, 1]} : vector<32x32xf32> to vector<1x32xf32>
        %1041 = vector.broadcast %1039 : vector<8x1xf32> to vector<8x32xf32>
        %1042 = vector.broadcast %1040 : vector<1x32xf32> to vector<8x32xf32>
        %1043 = arith.mulf %1041, %1042 : vector<8x32xf32>
        %1044 = arith.addf %1038, %1043 : vector<8x32xf32>
        %1045 = vector.extract_strided_slice %918 {offsets = [0, 21], sizes = [8, 1], strides = [1, 1]} : vector<8x32xf32> to vector<8x1xf32>
        %1046 = vector.extract_strided_slice %1 {offsets = [21, 0], sizes = [1, 32], strides = [1, 1]} : vector<32x32xf32> to vector<1x32xf32>
        %1047 = vector.broadcast %1045 : vector<8x1xf32> to vector<8x32xf32>
        %1048 = vector.broadcast %1046 : vector<1x32xf32> to vector<8x32xf32>
        %1049 = arith.mulf %1047, %1048 : vector<8x32xf32>
        %1050 = arith.addf %1044, %1049 : vector<8x32xf32>
        %1051 = vector.extract_strided_slice %918 {offsets = [0, 22], sizes = [8, 1], strides = [1, 1]} : vector<8x32xf32> to vector<8x1xf32>
        %1052 = vector.extract_strided_slice %1 {offsets = [22, 0], sizes = [1, 32], strides = [1, 1]} : vector<32x32xf32> to vector<1x32xf32>
        %1053 = vector.broadcast %1051 : vector<8x1xf32> to vector<8x32xf32>
        %1054 = vector.broadcast %1052 : vector<1x32xf32> to vector<8x32xf32>
        %1055 = arith.mulf %1053, %1054 : vector<8x32xf32>
        %1056 = arith.addf %1050, %1055 : vector<8x32xf32>
        %1057 = vector.extract_strided_slice %918 {offsets = [0, 23], sizes = [8, 1], strides = [1, 1]} : vector<8x32xf32> to vector<8x1xf32>
        %1058 = vector.extract_strided_slice %1 {offsets = [23, 0], sizes = [1, 32], strides = [1, 1]} : vector<32x32xf32> to vector<1x32xf32>
        %1059 = vector.broadcast %1057 : vector<8x1xf32> to vector<8x32xf32>
        %1060 = vector.broadcast %1058 : vector<1x32xf32> to vector<8x32xf32>
        %1061 = arith.mulf %1059, %1060 : vector<8x32xf32>
        %1062 = arith.addf %1056, %1061 : vector<8x32xf32>
        %1063 = vector.extract_strided_slice %918 {offsets = [0, 24], sizes = [8, 1], strides = [1, 1]} : vector<8x32xf32> to vector<8x1xf32>
        %1064 = vector.extract_strided_slice %1 {offsets = [24, 0], sizes = [1, 32], strides = [1, 1]} : vector<32x32xf32> to vector<1x32xf32>
        %1065 = vector.broadcast %1063 : vector<8x1xf32> to vector<8x32xf32>
        %1066 = vector.broadcast %1064 : vector<1x32xf32> to vector<8x32xf32>
        %1067 = arith.mulf %1065, %1066 : vector<8x32xf32>
        %1068 = arith.addf %1062, %1067 : vector<8x32xf32>
        %1069 = vector.extract_strided_slice %918 {offsets = [0, 25], sizes = [8, 1], strides = [1, 1]} : vector<8x32xf32> to vector<8x1xf32>
        %1070 = vector.extract_strided_slice %1 {offsets = [25, 0], sizes = [1, 32], strides = [1, 1]} : vector<32x32xf32> to vector<1x32xf32>
        %1071 = vector.broadcast %1069 : vector<8x1xf32> to vector<8x32xf32>
        %1072 = vector.broadcast %1070 : vector<1x32xf32> to vector<8x32xf32>
        %1073 = arith.mulf %1071, %1072 : vector<8x32xf32>
        %1074 = arith.addf %1068, %1073 : vector<8x32xf32>
        %1075 = vector.extract_strided_slice %918 {offsets = [0, 26], sizes = [8, 1], strides = [1, 1]} : vector<8x32xf32> to vector<8x1xf32>
        %1076 = vector.extract_strided_slice %1 {offsets = [26, 0], sizes = [1, 32], strides = [1, 1]} : vector<32x32xf32> to vector<1x32xf32>
        %1077 = vector.broadcast %1075 : vector<8x1xf32> to vector<8x32xf32>
        %1078 = vector.broadcast %1076 : vector<1x32xf32> to vector<8x32xf32>
        %1079 = arith.mulf %1077, %1078 : vector<8x32xf32>
        %1080 = arith.addf %1074, %1079 : vector<8x32xf32>
        %1081 = vector.extract_strided_slice %918 {offsets = [0, 27], sizes = [8, 1], strides = [1, 1]} : vector<8x32xf32> to vector<8x1xf32>
        %1082 = vector.extract_strided_slice %1 {offsets = [27, 0], sizes = [1, 32], strides = [1, 1]} : vector<32x32xf32> to vector<1x32xf32>
        %1083 = vector.broadcast %1081 : vector<8x1xf32> to vector<8x32xf32>
        %1084 = vector.broadcast %1082 : vector<1x32xf32> to vector<8x32xf32>
        %1085 = arith.mulf %1083, %1084 : vector<8x32xf32>
        %1086 = arith.addf %1080, %1085 : vector<8x32xf32>
        %1087 = vector.extract_strided_slice %918 {offsets = [0, 28], sizes = [8, 1], strides = [1, 1]} : vector<8x32xf32> to vector<8x1xf32>
        %1088 = vector.extract_strided_slice %1 {offsets = [28, 0], sizes = [1, 32], strides = [1, 1]} : vector<32x32xf32> to vector<1x32xf32>
        %1089 = vector.broadcast %1087 : vector<8x1xf32> to vector<8x32xf32>
        %1090 = vector.broadcast %1088 : vector<1x32xf32> to vector<8x32xf32>
        %1091 = arith.mulf %1089, %1090 : vector<8x32xf32>
        %1092 = arith.addf %1086, %1091 : vector<8x32xf32>
        %1093 = vector.extract_strided_slice %918 {offsets = [0, 29], sizes = [8, 1], strides = [1, 1]} : vector<8x32xf32> to vector<8x1xf32>
        %1094 = vector.extract_strided_slice %1 {offsets = [29, 0], sizes = [1, 32], strides = [1, 1]} : vector<32x32xf32> to vector<1x32xf32>
        %1095 = vector.broadcast %1093 : vector<8x1xf32> to vector<8x32xf32>
        %1096 = vector.broadcast %1094 : vector<1x32xf32> to vector<8x32xf32>
        %1097 = arith.mulf %1095, %1096 : vector<8x32xf32>
        %1098 = arith.addf %1092, %1097 : vector<8x32xf32>
        %1099 = vector.extract_strided_slice %918 {offsets = [0, 30], sizes = [8, 1], strides = [1, 1]} : vector<8x32xf32> to vector<8x1xf32>
        %1100 = vector.extract_strided_slice %1 {offsets = [30, 0], sizes = [1, 32], strides = [1, 1]} : vector<32x32xf32> to vector<1x32xf32>
        %1101 = vector.broadcast %1099 : vector<8x1xf32> to vector<8x32xf32>
        %1102 = vector.broadcast %1100 : vector<1x32xf32> to vector<8x32xf32>
        %1103 = arith.mulf %1101, %1102 : vector<8x32xf32>
        %1104 = arith.addf %1098, %1103 : vector<8x32xf32>
        %1105 = vector.extract_strided_slice %918 {offsets = [0, 31], sizes = [8, 1], strides = [1, 1]} : vector<8x32xf32> to vector<8x1xf32>
        %1106 = vector.extract_strided_slice %1 {offsets = [31, 0], sizes = [1, 32], strides = [1, 1]} : vector<32x32xf32> to vector<1x32xf32>
        %1107 = vector.broadcast %1105 : vector<8x1xf32> to vector<8x32xf32>
        %1108 = vector.broadcast %1106 : vector<1x32xf32> to vector<8x32xf32>
        %1109 = arith.mulf %1107, %1108 : vector<8x32xf32>
        %1110 = arith.addf %1104, %1109 : vector<8x32xf32>
        %cst_39 = arith.constant 0.000000e+00 : f32
        %1111 = vector.broadcast %cst_39 : f32 to vector<8x32xf32>
        %1112 = arith.cmpf ogt, %1110, %1111 : vector<8x32xf32>
        %cst_40 = arith.constant 0.000000e+00 : f32
        %1113 = vector.broadcast %cst_40 : f32 to vector<8x32xf32>
        %1114 = arith.minimumf %1110, %1113 : vector<8x32xf32>
        %1115 = math.exp %1114 : vector<8x32xf32>
        %cst_41 = arith.constant 1.000000e+00 : f32
        %1116 = vector.broadcast %cst_41 : f32 to vector<8x32xf32>
        %1117 = arith.subf %1115, %1116 : vector<8x32xf32>
        %1118 = arith.select %1112, %1110, %1117 : vector<8x32xi1>, vector<8x32xf32>
        %1119 = vector.extract_strided_slice %1118 {offsets = [0, 0], sizes = [8, 1], strides = [1, 1]} : vector<8x32xf32> to vector<8x1xf32>
        %1120 = vector.extract_strided_slice %2 {offsets = [0, 0], sizes = [1, 4], strides = [1, 1]} : vector<32x4xf32> to vector<1x4xf32>
        %1121 = vector.broadcast %1119 : vector<8x1xf32> to vector<8x4xf32>
        %1122 = vector.broadcast %1120 : vector<1x4xf32> to vector<8x4xf32>
        %1123 = arith.mulf %1121, %1122 : vector<8x4xf32>
        %1124 = arith.addf %11, %1123 : vector<8x4xf32>
        %1125 = vector.extract_strided_slice %1118 {offsets = [0, 1], sizes = [8, 1], strides = [1, 1]} : vector<8x32xf32> to vector<8x1xf32>
        %1126 = vector.extract_strided_slice %2 {offsets = [1, 0], sizes = [1, 4], strides = [1, 1]} : vector<32x4xf32> to vector<1x4xf32>
        %1127 = vector.broadcast %1125 : vector<8x1xf32> to vector<8x4xf32>
        %1128 = vector.broadcast %1126 : vector<1x4xf32> to vector<8x4xf32>
        %1129 = arith.mulf %1127, %1128 : vector<8x4xf32>
        %1130 = arith.addf %1124, %1129 : vector<8x4xf32>
        %1131 = vector.extract_strided_slice %1118 {offsets = [0, 2], sizes = [8, 1], strides = [1, 1]} : vector<8x32xf32> to vector<8x1xf32>
        %1132 = vector.extract_strided_slice %2 {offsets = [2, 0], sizes = [1, 4], strides = [1, 1]} : vector<32x4xf32> to vector<1x4xf32>
        %1133 = vector.broadcast %1131 : vector<8x1xf32> to vector<8x4xf32>
        %1134 = vector.broadcast %1132 : vector<1x4xf32> to vector<8x4xf32>
        %1135 = arith.mulf %1133, %1134 : vector<8x4xf32>
        %1136 = arith.addf %1130, %1135 : vector<8x4xf32>
        %1137 = vector.extract_strided_slice %1118 {offsets = [0, 3], sizes = [8, 1], strides = [1, 1]} : vector<8x32xf32> to vector<8x1xf32>
        %1138 = vector.extract_strided_slice %2 {offsets = [3, 0], sizes = [1, 4], strides = [1, 1]} : vector<32x4xf32> to vector<1x4xf32>
        %1139 = vector.broadcast %1137 : vector<8x1xf32> to vector<8x4xf32>
        %1140 = vector.broadcast %1138 : vector<1x4xf32> to vector<8x4xf32>
        %1141 = arith.mulf %1139, %1140 : vector<8x4xf32>
        %1142 = arith.addf %1136, %1141 : vector<8x4xf32>
        %1143 = vector.extract_strided_slice %1118 {offsets = [0, 4], sizes = [8, 1], strides = [1, 1]} : vector<8x32xf32> to vector<8x1xf32>
        %1144 = vector.extract_strided_slice %2 {offsets = [4, 0], sizes = [1, 4], strides = [1, 1]} : vector<32x4xf32> to vector<1x4xf32>
        %1145 = vector.broadcast %1143 : vector<8x1xf32> to vector<8x4xf32>
        %1146 = vector.broadcast %1144 : vector<1x4xf32> to vector<8x4xf32>
        %1147 = arith.mulf %1145, %1146 : vector<8x4xf32>
        %1148 = arith.addf %1142, %1147 : vector<8x4xf32>
        %1149 = vector.extract_strided_slice %1118 {offsets = [0, 5], sizes = [8, 1], strides = [1, 1]} : vector<8x32xf32> to vector<8x1xf32>
        %1150 = vector.extract_strided_slice %2 {offsets = [5, 0], sizes = [1, 4], strides = [1, 1]} : vector<32x4xf32> to vector<1x4xf32>
        %1151 = vector.broadcast %1149 : vector<8x1xf32> to vector<8x4xf32>
        %1152 = vector.broadcast %1150 : vector<1x4xf32> to vector<8x4xf32>
        %1153 = arith.mulf %1151, %1152 : vector<8x4xf32>
        %1154 = arith.addf %1148, %1153 : vector<8x4xf32>
        %1155 = vector.extract_strided_slice %1118 {offsets = [0, 6], sizes = [8, 1], strides = [1, 1]} : vector<8x32xf32> to vector<8x1xf32>
        %1156 = vector.extract_strided_slice %2 {offsets = [6, 0], sizes = [1, 4], strides = [1, 1]} : vector<32x4xf32> to vector<1x4xf32>
        %1157 = vector.broadcast %1155 : vector<8x1xf32> to vector<8x4xf32>
        %1158 = vector.broadcast %1156 : vector<1x4xf32> to vector<8x4xf32>
        %1159 = arith.mulf %1157, %1158 : vector<8x4xf32>
        %1160 = arith.addf %1154, %1159 : vector<8x4xf32>
        %1161 = vector.extract_strided_slice %1118 {offsets = [0, 7], sizes = [8, 1], strides = [1, 1]} : vector<8x32xf32> to vector<8x1xf32>
        %1162 = vector.extract_strided_slice %2 {offsets = [7, 0], sizes = [1, 4], strides = [1, 1]} : vector<32x4xf32> to vector<1x4xf32>
        %1163 = vector.broadcast %1161 : vector<8x1xf32> to vector<8x4xf32>
        %1164 = vector.broadcast %1162 : vector<1x4xf32> to vector<8x4xf32>
        %1165 = arith.mulf %1163, %1164 : vector<8x4xf32>
        %1166 = arith.addf %1160, %1165 : vector<8x4xf32>
        %1167 = vector.extract_strided_slice %1118 {offsets = [0, 8], sizes = [8, 1], strides = [1, 1]} : vector<8x32xf32> to vector<8x1xf32>
        %1168 = vector.extract_strided_slice %2 {offsets = [8, 0], sizes = [1, 4], strides = [1, 1]} : vector<32x4xf32> to vector<1x4xf32>
        %1169 = vector.broadcast %1167 : vector<8x1xf32> to vector<8x4xf32>
        %1170 = vector.broadcast %1168 : vector<1x4xf32> to vector<8x4xf32>
        %1171 = arith.mulf %1169, %1170 : vector<8x4xf32>
        %1172 = arith.addf %1166, %1171 : vector<8x4xf32>
        %1173 = vector.extract_strided_slice %1118 {offsets = [0, 9], sizes = [8, 1], strides = [1, 1]} : vector<8x32xf32> to vector<8x1xf32>
        %1174 = vector.extract_strided_slice %2 {offsets = [9, 0], sizes = [1, 4], strides = [1, 1]} : vector<32x4xf32> to vector<1x4xf32>
        %1175 = vector.broadcast %1173 : vector<8x1xf32> to vector<8x4xf32>
        %1176 = vector.broadcast %1174 : vector<1x4xf32> to vector<8x4xf32>
        %1177 = arith.mulf %1175, %1176 : vector<8x4xf32>
        %1178 = arith.addf %1172, %1177 : vector<8x4xf32>
        %1179 = vector.extract_strided_slice %1118 {offsets = [0, 10], sizes = [8, 1], strides = [1, 1]} : vector<8x32xf32> to vector<8x1xf32>
        %1180 = vector.extract_strided_slice %2 {offsets = [10, 0], sizes = [1, 4], strides = [1, 1]} : vector<32x4xf32> to vector<1x4xf32>
        %1181 = vector.broadcast %1179 : vector<8x1xf32> to vector<8x4xf32>
        %1182 = vector.broadcast %1180 : vector<1x4xf32> to vector<8x4xf32>
        %1183 = arith.mulf %1181, %1182 : vector<8x4xf32>
        %1184 = arith.addf %1178, %1183 : vector<8x4xf32>
        %1185 = vector.extract_strided_slice %1118 {offsets = [0, 11], sizes = [8, 1], strides = [1, 1]} : vector<8x32xf32> to vector<8x1xf32>
        %1186 = vector.extract_strided_slice %2 {offsets = [11, 0], sizes = [1, 4], strides = [1, 1]} : vector<32x4xf32> to vector<1x4xf32>
        %1187 = vector.broadcast %1185 : vector<8x1xf32> to vector<8x4xf32>
        %1188 = vector.broadcast %1186 : vector<1x4xf32> to vector<8x4xf32>
        %1189 = arith.mulf %1187, %1188 : vector<8x4xf32>
        %1190 = arith.addf %1184, %1189 : vector<8x4xf32>
        %1191 = vector.extract_strided_slice %1118 {offsets = [0, 12], sizes = [8, 1], strides = [1, 1]} : vector<8x32xf32> to vector<8x1xf32>
        %1192 = vector.extract_strided_slice %2 {offsets = [12, 0], sizes = [1, 4], strides = [1, 1]} : vector<32x4xf32> to vector<1x4xf32>
        %1193 = vector.broadcast %1191 : vector<8x1xf32> to vector<8x4xf32>
        %1194 = vector.broadcast %1192 : vector<1x4xf32> to vector<8x4xf32>
        %1195 = arith.mulf %1193, %1194 : vector<8x4xf32>
        %1196 = arith.addf %1190, %1195 : vector<8x4xf32>
        %1197 = vector.extract_strided_slice %1118 {offsets = [0, 13], sizes = [8, 1], strides = [1, 1]} : vector<8x32xf32> to vector<8x1xf32>
        %1198 = vector.extract_strided_slice %2 {offsets = [13, 0], sizes = [1, 4], strides = [1, 1]} : vector<32x4xf32> to vector<1x4xf32>
        %1199 = vector.broadcast %1197 : vector<8x1xf32> to vector<8x4xf32>
        %1200 = vector.broadcast %1198 : vector<1x4xf32> to vector<8x4xf32>
        %1201 = arith.mulf %1199, %1200 : vector<8x4xf32>
        %1202 = arith.addf %1196, %1201 : vector<8x4xf32>
        %1203 = vector.extract_strided_slice %1118 {offsets = [0, 14], sizes = [8, 1], strides = [1, 1]} : vector<8x32xf32> to vector<8x1xf32>
        %1204 = vector.extract_strided_slice %2 {offsets = [14, 0], sizes = [1, 4], strides = [1, 1]} : vector<32x4xf32> to vector<1x4xf32>
        %1205 = vector.broadcast %1203 : vector<8x1xf32> to vector<8x4xf32>
        %1206 = vector.broadcast %1204 : vector<1x4xf32> to vector<8x4xf32>
        %1207 = arith.mulf %1205, %1206 : vector<8x4xf32>
        %1208 = arith.addf %1202, %1207 : vector<8x4xf32>
        %1209 = vector.extract_strided_slice %1118 {offsets = [0, 15], sizes = [8, 1], strides = [1, 1]} : vector<8x32xf32> to vector<8x1xf32>
        %1210 = vector.extract_strided_slice %2 {offsets = [15, 0], sizes = [1, 4], strides = [1, 1]} : vector<32x4xf32> to vector<1x4xf32>
        %1211 = vector.broadcast %1209 : vector<8x1xf32> to vector<8x4xf32>
        %1212 = vector.broadcast %1210 : vector<1x4xf32> to vector<8x4xf32>
        %1213 = arith.mulf %1211, %1212 : vector<8x4xf32>
        %1214 = arith.addf %1208, %1213 : vector<8x4xf32>
        %1215 = vector.extract_strided_slice %1118 {offsets = [0, 16], sizes = [8, 1], strides = [1, 1]} : vector<8x32xf32> to vector<8x1xf32>
        %1216 = vector.extract_strided_slice %2 {offsets = [16, 0], sizes = [1, 4], strides = [1, 1]} : vector<32x4xf32> to vector<1x4xf32>
        %1217 = vector.broadcast %1215 : vector<8x1xf32> to vector<8x4xf32>
        %1218 = vector.broadcast %1216 : vector<1x4xf32> to vector<8x4xf32>
        %1219 = arith.mulf %1217, %1218 : vector<8x4xf32>
        %1220 = arith.addf %1214, %1219 : vector<8x4xf32>
        %1221 = vector.extract_strided_slice %1118 {offsets = [0, 17], sizes = [8, 1], strides = [1, 1]} : vector<8x32xf32> to vector<8x1xf32>
        %1222 = vector.extract_strided_slice %2 {offsets = [17, 0], sizes = [1, 4], strides = [1, 1]} : vector<32x4xf32> to vector<1x4xf32>
        %1223 = vector.broadcast %1221 : vector<8x1xf32> to vector<8x4xf32>
        %1224 = vector.broadcast %1222 : vector<1x4xf32> to vector<8x4xf32>
        %1225 = arith.mulf %1223, %1224 : vector<8x4xf32>
        %1226 = arith.addf %1220, %1225 : vector<8x4xf32>
        %1227 = vector.extract_strided_slice %1118 {offsets = [0, 18], sizes = [8, 1], strides = [1, 1]} : vector<8x32xf32> to vector<8x1xf32>
        %1228 = vector.extract_strided_slice %2 {offsets = [18, 0], sizes = [1, 4], strides = [1, 1]} : vector<32x4xf32> to vector<1x4xf32>
        %1229 = vector.broadcast %1227 : vector<8x1xf32> to vector<8x4xf32>
        %1230 = vector.broadcast %1228 : vector<1x4xf32> to vector<8x4xf32>
        %1231 = arith.mulf %1229, %1230 : vector<8x4xf32>
        %1232 = arith.addf %1226, %1231 : vector<8x4xf32>
        %1233 = vector.extract_strided_slice %1118 {offsets = [0, 19], sizes = [8, 1], strides = [1, 1]} : vector<8x32xf32> to vector<8x1xf32>
        %1234 = vector.extract_strided_slice %2 {offsets = [19, 0], sizes = [1, 4], strides = [1, 1]} : vector<32x4xf32> to vector<1x4xf32>
        %1235 = vector.broadcast %1233 : vector<8x1xf32> to vector<8x4xf32>
        %1236 = vector.broadcast %1234 : vector<1x4xf32> to vector<8x4xf32>
        %1237 = arith.mulf %1235, %1236 : vector<8x4xf32>
        %1238 = arith.addf %1232, %1237 : vector<8x4xf32>
        %1239 = vector.extract_strided_slice %1118 {offsets = [0, 20], sizes = [8, 1], strides = [1, 1]} : vector<8x32xf32> to vector<8x1xf32>
        %1240 = vector.extract_strided_slice %2 {offsets = [20, 0], sizes = [1, 4], strides = [1, 1]} : vector<32x4xf32> to vector<1x4xf32>
        %1241 = vector.broadcast %1239 : vector<8x1xf32> to vector<8x4xf32>
        %1242 = vector.broadcast %1240 : vector<1x4xf32> to vector<8x4xf32>
        %1243 = arith.mulf %1241, %1242 : vector<8x4xf32>
        %1244 = arith.addf %1238, %1243 : vector<8x4xf32>
        %1245 = vector.extract_strided_slice %1118 {offsets = [0, 21], sizes = [8, 1], strides = [1, 1]} : vector<8x32xf32> to vector<8x1xf32>
        %1246 = vector.extract_strided_slice %2 {offsets = [21, 0], sizes = [1, 4], strides = [1, 1]} : vector<32x4xf32> to vector<1x4xf32>
        %1247 = vector.broadcast %1245 : vector<8x1xf32> to vector<8x4xf32>
        %1248 = vector.broadcast %1246 : vector<1x4xf32> to vector<8x4xf32>
        %1249 = arith.mulf %1247, %1248 : vector<8x4xf32>
        %1250 = arith.addf %1244, %1249 : vector<8x4xf32>
        %1251 = vector.extract_strided_slice %1118 {offsets = [0, 22], sizes = [8, 1], strides = [1, 1]} : vector<8x32xf32> to vector<8x1xf32>
        %1252 = vector.extract_strided_slice %2 {offsets = [22, 0], sizes = [1, 4], strides = [1, 1]} : vector<32x4xf32> to vector<1x4xf32>
        %1253 = vector.broadcast %1251 : vector<8x1xf32> to vector<8x4xf32>
        %1254 = vector.broadcast %1252 : vector<1x4xf32> to vector<8x4xf32>
        %1255 = arith.mulf %1253, %1254 : vector<8x4xf32>
        %1256 = arith.addf %1250, %1255 : vector<8x4xf32>
        %1257 = vector.extract_strided_slice %1118 {offsets = [0, 23], sizes = [8, 1], strides = [1, 1]} : vector<8x32xf32> to vector<8x1xf32>
        %1258 = vector.extract_strided_slice %2 {offsets = [23, 0], sizes = [1, 4], strides = [1, 1]} : vector<32x4xf32> to vector<1x4xf32>
        %1259 = vector.broadcast %1257 : vector<8x1xf32> to vector<8x4xf32>
        %1260 = vector.broadcast %1258 : vector<1x4xf32> to vector<8x4xf32>
        %1261 = arith.mulf %1259, %1260 : vector<8x4xf32>
        %1262 = arith.addf %1256, %1261 : vector<8x4xf32>
        %1263 = vector.extract_strided_slice %1118 {offsets = [0, 24], sizes = [8, 1], strides = [1, 1]} : vector<8x32xf32> to vector<8x1xf32>
        %1264 = vector.extract_strided_slice %2 {offsets = [24, 0], sizes = [1, 4], strides = [1, 1]} : vector<32x4xf32> to vector<1x4xf32>
        %1265 = vector.broadcast %1263 : vector<8x1xf32> to vector<8x4xf32>
        %1266 = vector.broadcast %1264 : vector<1x4xf32> to vector<8x4xf32>
        %1267 = arith.mulf %1265, %1266 : vector<8x4xf32>
        %1268 = arith.addf %1262, %1267 : vector<8x4xf32>
        %1269 = vector.extract_strided_slice %1118 {offsets = [0, 25], sizes = [8, 1], strides = [1, 1]} : vector<8x32xf32> to vector<8x1xf32>
        %1270 = vector.extract_strided_slice %2 {offsets = [25, 0], sizes = [1, 4], strides = [1, 1]} : vector<32x4xf32> to vector<1x4xf32>
        %1271 = vector.broadcast %1269 : vector<8x1xf32> to vector<8x4xf32>
        %1272 = vector.broadcast %1270 : vector<1x4xf32> to vector<8x4xf32>
        %1273 = arith.mulf %1271, %1272 : vector<8x4xf32>
        %1274 = arith.addf %1268, %1273 : vector<8x4xf32>
        %1275 = vector.extract_strided_slice %1118 {offsets = [0, 26], sizes = [8, 1], strides = [1, 1]} : vector<8x32xf32> to vector<8x1xf32>
        %1276 = vector.extract_strided_slice %2 {offsets = [26, 0], sizes = [1, 4], strides = [1, 1]} : vector<32x4xf32> to vector<1x4xf32>
        %1277 = vector.broadcast %1275 : vector<8x1xf32> to vector<8x4xf32>
        %1278 = vector.broadcast %1276 : vector<1x4xf32> to vector<8x4xf32>
        %1279 = arith.mulf %1277, %1278 : vector<8x4xf32>
        %1280 = arith.addf %1274, %1279 : vector<8x4xf32>
        %1281 = vector.extract_strided_slice %1118 {offsets = [0, 27], sizes = [8, 1], strides = [1, 1]} : vector<8x32xf32> to vector<8x1xf32>
        %1282 = vector.extract_strided_slice %2 {offsets = [27, 0], sizes = [1, 4], strides = [1, 1]} : vector<32x4xf32> to vector<1x4xf32>
        %1283 = vector.broadcast %1281 : vector<8x1xf32> to vector<8x4xf32>
        %1284 = vector.broadcast %1282 : vector<1x4xf32> to vector<8x4xf32>
        %1285 = arith.mulf %1283, %1284 : vector<8x4xf32>
        %1286 = arith.addf %1280, %1285 : vector<8x4xf32>
        %1287 = vector.extract_strided_slice %1118 {offsets = [0, 28], sizes = [8, 1], strides = [1, 1]} : vector<8x32xf32> to vector<8x1xf32>
        %1288 = vector.extract_strided_slice %2 {offsets = [28, 0], sizes = [1, 4], strides = [1, 1]} : vector<32x4xf32> to vector<1x4xf32>
        %1289 = vector.broadcast %1287 : vector<8x1xf32> to vector<8x4xf32>
        %1290 = vector.broadcast %1288 : vector<1x4xf32> to vector<8x4xf32>
        %1291 = arith.mulf %1289, %1290 : vector<8x4xf32>
        %1292 = arith.addf %1286, %1291 : vector<8x4xf32>
        %1293 = vector.extract_strided_slice %1118 {offsets = [0, 29], sizes = [8, 1], strides = [1, 1]} : vector<8x32xf32> to vector<8x1xf32>
        %1294 = vector.extract_strided_slice %2 {offsets = [29, 0], sizes = [1, 4], strides = [1, 1]} : vector<32x4xf32> to vector<1x4xf32>
        %1295 = vector.broadcast %1293 : vector<8x1xf32> to vector<8x4xf32>
        %1296 = vector.broadcast %1294 : vector<1x4xf32> to vector<8x4xf32>
        %1297 = arith.mulf %1295, %1296 : vector<8x4xf32>
        %1298 = arith.addf %1292, %1297 : vector<8x4xf32>
        %1299 = vector.extract_strided_slice %1118 {offsets = [0, 30], sizes = [8, 1], strides = [1, 1]} : vector<8x32xf32> to vector<8x1xf32>
        %1300 = vector.extract_strided_slice %2 {offsets = [30, 0], sizes = [1, 4], strides = [1, 1]} : vector<32x4xf32> to vector<1x4xf32>
        %1301 = vector.broadcast %1299 : vector<8x1xf32> to vector<8x4xf32>
        %1302 = vector.broadcast %1300 : vector<1x4xf32> to vector<8x4xf32>
        %1303 = arith.mulf %1301, %1302 : vector<8x4xf32>
        %1304 = arith.addf %1298, %1303 : vector<8x4xf32>
        %1305 = vector.extract_strided_slice %1118 {offsets = [0, 31], sizes = [8, 1], strides = [1, 1]} : vector<8x32xf32> to vector<8x1xf32>
        %1306 = vector.extract_strided_slice %2 {offsets = [31, 0], sizes = [1, 4], strides = [1, 1]} : vector<32x4xf32> to vector<1x4xf32>
        %1307 = vector.broadcast %1305 : vector<8x1xf32> to vector<8x4xf32>
        %1308 = vector.broadcast %1306 : vector<1x4xf32> to vector<8x4xf32>
        %1309 = arith.mulf %1307, %1308 : vector<8x4xf32>
        %1310 = arith.addf %1304, %1309 : vector<8x4xf32>
        %1311 = vector.broadcast %24 : f32 to vector<8x4xf32>
        %1312 = arith.mulf %1311, %1310 : vector<8x4xf32>
        %1313 = arith.addf %arg13, %1312 : vector<8x4xf32>
        %1314 = vector.extract_strided_slice %1313 {offsets = [0, 0], sizes = [8, 1], strides = [1, 1]} : vector<8x4xf32> to vector<8x1xf32>
        %1315 = vector.extract_strided_slice %0 {offsets = [0, 0], sizes = [1, 32], strides = [1, 1]} : vector<4x32xf32> to vector<1x32xf32>
        %1316 = vector.broadcast %1314 : vector<8x1xf32> to vector<8x32xf32>
        %1317 = vector.broadcast %1315 : vector<1x32xf32> to vector<8x32xf32>
        %1318 = arith.mulf %1316, %1317 : vector<8x32xf32>
        %1319 = arith.addf %5, %1318 : vector<8x32xf32>
        %1320 = vector.extract_strided_slice %1313 {offsets = [0, 1], sizes = [8, 1], strides = [1, 1]} : vector<8x4xf32> to vector<8x1xf32>
        %1321 = vector.extract_strided_slice %0 {offsets = [1, 0], sizes = [1, 32], strides = [1, 1]} : vector<4x32xf32> to vector<1x32xf32>
        %1322 = vector.broadcast %1320 : vector<8x1xf32> to vector<8x32xf32>
        %1323 = vector.broadcast %1321 : vector<1x32xf32> to vector<8x32xf32>
        %1324 = arith.mulf %1322, %1323 : vector<8x32xf32>
        %1325 = arith.addf %1319, %1324 : vector<8x32xf32>
        %1326 = vector.extract_strided_slice %1313 {offsets = [0, 2], sizes = [8, 1], strides = [1, 1]} : vector<8x4xf32> to vector<8x1xf32>
        %1327 = vector.extract_strided_slice %0 {offsets = [2, 0], sizes = [1, 32], strides = [1, 1]} : vector<4x32xf32> to vector<1x32xf32>
        %1328 = vector.broadcast %1326 : vector<8x1xf32> to vector<8x32xf32>
        %1329 = vector.broadcast %1327 : vector<1x32xf32> to vector<8x32xf32>
        %1330 = arith.mulf %1328, %1329 : vector<8x32xf32>
        %1331 = arith.addf %1325, %1330 : vector<8x32xf32>
        %1332 = vector.extract_strided_slice %1313 {offsets = [0, 3], sizes = [8, 1], strides = [1, 1]} : vector<8x4xf32> to vector<8x1xf32>
        %1333 = vector.extract_strided_slice %0 {offsets = [3, 0], sizes = [1, 32], strides = [1, 1]} : vector<4x32xf32> to vector<1x32xf32>
        %1334 = vector.broadcast %1332 : vector<8x1xf32> to vector<8x32xf32>
        %1335 = vector.broadcast %1333 : vector<1x32xf32> to vector<8x32xf32>
        %1336 = arith.mulf %1334, %1335 : vector<8x32xf32>
        %1337 = arith.addf %1331, %1336 : vector<8x32xf32>
        %cst_42 = arith.constant 0.000000e+00 : f32
        %1338 = vector.broadcast %cst_42 : f32 to vector<8x32xf32>
        %1339 = arith.cmpf ogt, %1337, %1338 : vector<8x32xf32>
        %cst_43 = arith.constant 0.000000e+00 : f32
        %1340 = vector.broadcast %cst_43 : f32 to vector<8x32xf32>
        %1341 = arith.minimumf %1337, %1340 : vector<8x32xf32>
        %1342 = math.exp %1341 : vector<8x32xf32>
        %cst_44 = arith.constant 1.000000e+00 : f32
        %1343 = vector.broadcast %cst_44 : f32 to vector<8x32xf32>
        %1344 = arith.subf %1342, %1343 : vector<8x32xf32>
        %1345 = arith.select %1339, %1337, %1344 : vector<8x32xi1>, vector<8x32xf32>
        %1346 = vector.extract_strided_slice %1345 {offsets = [0, 0], sizes = [8, 1], strides = [1, 1]} : vector<8x32xf32> to vector<8x1xf32>
        %1347 = vector.extract_strided_slice %1 {offsets = [0, 0], sizes = [1, 32], strides = [1, 1]} : vector<32x32xf32> to vector<1x32xf32>
        %1348 = vector.broadcast %1346 : vector<8x1xf32> to vector<8x32xf32>
        %1349 = vector.broadcast %1347 : vector<1x32xf32> to vector<8x32xf32>
        %1350 = arith.mulf %1348, %1349 : vector<8x32xf32>
        %1351 = arith.addf %8, %1350 : vector<8x32xf32>
        %1352 = vector.extract_strided_slice %1345 {offsets = [0, 1], sizes = [8, 1], strides = [1, 1]} : vector<8x32xf32> to vector<8x1xf32>
        %1353 = vector.extract_strided_slice %1 {offsets = [1, 0], sizes = [1, 32], strides = [1, 1]} : vector<32x32xf32> to vector<1x32xf32>
        %1354 = vector.broadcast %1352 : vector<8x1xf32> to vector<8x32xf32>
        %1355 = vector.broadcast %1353 : vector<1x32xf32> to vector<8x32xf32>
        %1356 = arith.mulf %1354, %1355 : vector<8x32xf32>
        %1357 = arith.addf %1351, %1356 : vector<8x32xf32>
        %1358 = vector.extract_strided_slice %1345 {offsets = [0, 2], sizes = [8, 1], strides = [1, 1]} : vector<8x32xf32> to vector<8x1xf32>
        %1359 = vector.extract_strided_slice %1 {offsets = [2, 0], sizes = [1, 32], strides = [1, 1]} : vector<32x32xf32> to vector<1x32xf32>
        %1360 = vector.broadcast %1358 : vector<8x1xf32> to vector<8x32xf32>
        %1361 = vector.broadcast %1359 : vector<1x32xf32> to vector<8x32xf32>
        %1362 = arith.mulf %1360, %1361 : vector<8x32xf32>
        %1363 = arith.addf %1357, %1362 : vector<8x32xf32>
        %1364 = vector.extract_strided_slice %1345 {offsets = [0, 3], sizes = [8, 1], strides = [1, 1]} : vector<8x32xf32> to vector<8x1xf32>
        %1365 = vector.extract_strided_slice %1 {offsets = [3, 0], sizes = [1, 32], strides = [1, 1]} : vector<32x32xf32> to vector<1x32xf32>
        %1366 = vector.broadcast %1364 : vector<8x1xf32> to vector<8x32xf32>
        %1367 = vector.broadcast %1365 : vector<1x32xf32> to vector<8x32xf32>
        %1368 = arith.mulf %1366, %1367 : vector<8x32xf32>
        %1369 = arith.addf %1363, %1368 : vector<8x32xf32>
        %1370 = vector.extract_strided_slice %1345 {offsets = [0, 4], sizes = [8, 1], strides = [1, 1]} : vector<8x32xf32> to vector<8x1xf32>
        %1371 = vector.extract_strided_slice %1 {offsets = [4, 0], sizes = [1, 32], strides = [1, 1]} : vector<32x32xf32> to vector<1x32xf32>
        %1372 = vector.broadcast %1370 : vector<8x1xf32> to vector<8x32xf32>
        %1373 = vector.broadcast %1371 : vector<1x32xf32> to vector<8x32xf32>
        %1374 = arith.mulf %1372, %1373 : vector<8x32xf32>
        %1375 = arith.addf %1369, %1374 : vector<8x32xf32>
        %1376 = vector.extract_strided_slice %1345 {offsets = [0, 5], sizes = [8, 1], strides = [1, 1]} : vector<8x32xf32> to vector<8x1xf32>
        %1377 = vector.extract_strided_slice %1 {offsets = [5, 0], sizes = [1, 32], strides = [1, 1]} : vector<32x32xf32> to vector<1x32xf32>
        %1378 = vector.broadcast %1376 : vector<8x1xf32> to vector<8x32xf32>
        %1379 = vector.broadcast %1377 : vector<1x32xf32> to vector<8x32xf32>
        %1380 = arith.mulf %1378, %1379 : vector<8x32xf32>
        %1381 = arith.addf %1375, %1380 : vector<8x32xf32>
        %1382 = vector.extract_strided_slice %1345 {offsets = [0, 6], sizes = [8, 1], strides = [1, 1]} : vector<8x32xf32> to vector<8x1xf32>
        %1383 = vector.extract_strided_slice %1 {offsets = [6, 0], sizes = [1, 32], strides = [1, 1]} : vector<32x32xf32> to vector<1x32xf32>
        %1384 = vector.broadcast %1382 : vector<8x1xf32> to vector<8x32xf32>
        %1385 = vector.broadcast %1383 : vector<1x32xf32> to vector<8x32xf32>
        %1386 = arith.mulf %1384, %1385 : vector<8x32xf32>
        %1387 = arith.addf %1381, %1386 : vector<8x32xf32>
        %1388 = vector.extract_strided_slice %1345 {offsets = [0, 7], sizes = [8, 1], strides = [1, 1]} : vector<8x32xf32> to vector<8x1xf32>
        %1389 = vector.extract_strided_slice %1 {offsets = [7, 0], sizes = [1, 32], strides = [1, 1]} : vector<32x32xf32> to vector<1x32xf32>
        %1390 = vector.broadcast %1388 : vector<8x1xf32> to vector<8x32xf32>
        %1391 = vector.broadcast %1389 : vector<1x32xf32> to vector<8x32xf32>
        %1392 = arith.mulf %1390, %1391 : vector<8x32xf32>
        %1393 = arith.addf %1387, %1392 : vector<8x32xf32>
        %1394 = vector.extract_strided_slice %1345 {offsets = [0, 8], sizes = [8, 1], strides = [1, 1]} : vector<8x32xf32> to vector<8x1xf32>
        %1395 = vector.extract_strided_slice %1 {offsets = [8, 0], sizes = [1, 32], strides = [1, 1]} : vector<32x32xf32> to vector<1x32xf32>
        %1396 = vector.broadcast %1394 : vector<8x1xf32> to vector<8x32xf32>
        %1397 = vector.broadcast %1395 : vector<1x32xf32> to vector<8x32xf32>
        %1398 = arith.mulf %1396, %1397 : vector<8x32xf32>
        %1399 = arith.addf %1393, %1398 : vector<8x32xf32>
        %1400 = vector.extract_strided_slice %1345 {offsets = [0, 9], sizes = [8, 1], strides = [1, 1]} : vector<8x32xf32> to vector<8x1xf32>
        %1401 = vector.extract_strided_slice %1 {offsets = [9, 0], sizes = [1, 32], strides = [1, 1]} : vector<32x32xf32> to vector<1x32xf32>
        %1402 = vector.broadcast %1400 : vector<8x1xf32> to vector<8x32xf32>
        %1403 = vector.broadcast %1401 : vector<1x32xf32> to vector<8x32xf32>
        %1404 = arith.mulf %1402, %1403 : vector<8x32xf32>
        %1405 = arith.addf %1399, %1404 : vector<8x32xf32>
        %1406 = vector.extract_strided_slice %1345 {offsets = [0, 10], sizes = [8, 1], strides = [1, 1]} : vector<8x32xf32> to vector<8x1xf32>
        %1407 = vector.extract_strided_slice %1 {offsets = [10, 0], sizes = [1, 32], strides = [1, 1]} : vector<32x32xf32> to vector<1x32xf32>
        %1408 = vector.broadcast %1406 : vector<8x1xf32> to vector<8x32xf32>
        %1409 = vector.broadcast %1407 : vector<1x32xf32> to vector<8x32xf32>
        %1410 = arith.mulf %1408, %1409 : vector<8x32xf32>
        %1411 = arith.addf %1405, %1410 : vector<8x32xf32>
        %1412 = vector.extract_strided_slice %1345 {offsets = [0, 11], sizes = [8, 1], strides = [1, 1]} : vector<8x32xf32> to vector<8x1xf32>
        %1413 = vector.extract_strided_slice %1 {offsets = [11, 0], sizes = [1, 32], strides = [1, 1]} : vector<32x32xf32> to vector<1x32xf32>
        %1414 = vector.broadcast %1412 : vector<8x1xf32> to vector<8x32xf32>
        %1415 = vector.broadcast %1413 : vector<1x32xf32> to vector<8x32xf32>
        %1416 = arith.mulf %1414, %1415 : vector<8x32xf32>
        %1417 = arith.addf %1411, %1416 : vector<8x32xf32>
        %1418 = vector.extract_strided_slice %1345 {offsets = [0, 12], sizes = [8, 1], strides = [1, 1]} : vector<8x32xf32> to vector<8x1xf32>
        %1419 = vector.extract_strided_slice %1 {offsets = [12, 0], sizes = [1, 32], strides = [1, 1]} : vector<32x32xf32> to vector<1x32xf32>
        %1420 = vector.broadcast %1418 : vector<8x1xf32> to vector<8x32xf32>
        %1421 = vector.broadcast %1419 : vector<1x32xf32> to vector<8x32xf32>
        %1422 = arith.mulf %1420, %1421 : vector<8x32xf32>
        %1423 = arith.addf %1417, %1422 : vector<8x32xf32>
        %1424 = vector.extract_strided_slice %1345 {offsets = [0, 13], sizes = [8, 1], strides = [1, 1]} : vector<8x32xf32> to vector<8x1xf32>
        %1425 = vector.extract_strided_slice %1 {offsets = [13, 0], sizes = [1, 32], strides = [1, 1]} : vector<32x32xf32> to vector<1x32xf32>
        %1426 = vector.broadcast %1424 : vector<8x1xf32> to vector<8x32xf32>
        %1427 = vector.broadcast %1425 : vector<1x32xf32> to vector<8x32xf32>
        %1428 = arith.mulf %1426, %1427 : vector<8x32xf32>
        %1429 = arith.addf %1423, %1428 : vector<8x32xf32>
        %1430 = vector.extract_strided_slice %1345 {offsets = [0, 14], sizes = [8, 1], strides = [1, 1]} : vector<8x32xf32> to vector<8x1xf32>
        %1431 = vector.extract_strided_slice %1 {offsets = [14, 0], sizes = [1, 32], strides = [1, 1]} : vector<32x32xf32> to vector<1x32xf32>
        %1432 = vector.broadcast %1430 : vector<8x1xf32> to vector<8x32xf32>
        %1433 = vector.broadcast %1431 : vector<1x32xf32> to vector<8x32xf32>
        %1434 = arith.mulf %1432, %1433 : vector<8x32xf32>
        %1435 = arith.addf %1429, %1434 : vector<8x32xf32>
        %1436 = vector.extract_strided_slice %1345 {offsets = [0, 15], sizes = [8, 1], strides = [1, 1]} : vector<8x32xf32> to vector<8x1xf32>
        %1437 = vector.extract_strided_slice %1 {offsets = [15, 0], sizes = [1, 32], strides = [1, 1]} : vector<32x32xf32> to vector<1x32xf32>
        %1438 = vector.broadcast %1436 : vector<8x1xf32> to vector<8x32xf32>
        %1439 = vector.broadcast %1437 : vector<1x32xf32> to vector<8x32xf32>
        %1440 = arith.mulf %1438, %1439 : vector<8x32xf32>
        %1441 = arith.addf %1435, %1440 : vector<8x32xf32>
        %1442 = vector.extract_strided_slice %1345 {offsets = [0, 16], sizes = [8, 1], strides = [1, 1]} : vector<8x32xf32> to vector<8x1xf32>
        %1443 = vector.extract_strided_slice %1 {offsets = [16, 0], sizes = [1, 32], strides = [1, 1]} : vector<32x32xf32> to vector<1x32xf32>
        %1444 = vector.broadcast %1442 : vector<8x1xf32> to vector<8x32xf32>
        %1445 = vector.broadcast %1443 : vector<1x32xf32> to vector<8x32xf32>
        %1446 = arith.mulf %1444, %1445 : vector<8x32xf32>
        %1447 = arith.addf %1441, %1446 : vector<8x32xf32>
        %1448 = vector.extract_strided_slice %1345 {offsets = [0, 17], sizes = [8, 1], strides = [1, 1]} : vector<8x32xf32> to vector<8x1xf32>
        %1449 = vector.extract_strided_slice %1 {offsets = [17, 0], sizes = [1, 32], strides = [1, 1]} : vector<32x32xf32> to vector<1x32xf32>
        %1450 = vector.broadcast %1448 : vector<8x1xf32> to vector<8x32xf32>
        %1451 = vector.broadcast %1449 : vector<1x32xf32> to vector<8x32xf32>
        %1452 = arith.mulf %1450, %1451 : vector<8x32xf32>
        %1453 = arith.addf %1447, %1452 : vector<8x32xf32>
        %1454 = vector.extract_strided_slice %1345 {offsets = [0, 18], sizes = [8, 1], strides = [1, 1]} : vector<8x32xf32> to vector<8x1xf32>
        %1455 = vector.extract_strided_slice %1 {offsets = [18, 0], sizes = [1, 32], strides = [1, 1]} : vector<32x32xf32> to vector<1x32xf32>
        %1456 = vector.broadcast %1454 : vector<8x1xf32> to vector<8x32xf32>
        %1457 = vector.broadcast %1455 : vector<1x32xf32> to vector<8x32xf32>
        %1458 = arith.mulf %1456, %1457 : vector<8x32xf32>
        %1459 = arith.addf %1453, %1458 : vector<8x32xf32>
        %1460 = vector.extract_strided_slice %1345 {offsets = [0, 19], sizes = [8, 1], strides = [1, 1]} : vector<8x32xf32> to vector<8x1xf32>
        %1461 = vector.extract_strided_slice %1 {offsets = [19, 0], sizes = [1, 32], strides = [1, 1]} : vector<32x32xf32> to vector<1x32xf32>
        %1462 = vector.broadcast %1460 : vector<8x1xf32> to vector<8x32xf32>
        %1463 = vector.broadcast %1461 : vector<1x32xf32> to vector<8x32xf32>
        %1464 = arith.mulf %1462, %1463 : vector<8x32xf32>
        %1465 = arith.addf %1459, %1464 : vector<8x32xf32>
        %1466 = vector.extract_strided_slice %1345 {offsets = [0, 20], sizes = [8, 1], strides = [1, 1]} : vector<8x32xf32> to vector<8x1xf32>
        %1467 = vector.extract_strided_slice %1 {offsets = [20, 0], sizes = [1, 32], strides = [1, 1]} : vector<32x32xf32> to vector<1x32xf32>
        %1468 = vector.broadcast %1466 : vector<8x1xf32> to vector<8x32xf32>
        %1469 = vector.broadcast %1467 : vector<1x32xf32> to vector<8x32xf32>
        %1470 = arith.mulf %1468, %1469 : vector<8x32xf32>
        %1471 = arith.addf %1465, %1470 : vector<8x32xf32>
        %1472 = vector.extract_strided_slice %1345 {offsets = [0, 21], sizes = [8, 1], strides = [1, 1]} : vector<8x32xf32> to vector<8x1xf32>
        %1473 = vector.extract_strided_slice %1 {offsets = [21, 0], sizes = [1, 32], strides = [1, 1]} : vector<32x32xf32> to vector<1x32xf32>
        %1474 = vector.broadcast %1472 : vector<8x1xf32> to vector<8x32xf32>
        %1475 = vector.broadcast %1473 : vector<1x32xf32> to vector<8x32xf32>
        %1476 = arith.mulf %1474, %1475 : vector<8x32xf32>
        %1477 = arith.addf %1471, %1476 : vector<8x32xf32>
        %1478 = vector.extract_strided_slice %1345 {offsets = [0, 22], sizes = [8, 1], strides = [1, 1]} : vector<8x32xf32> to vector<8x1xf32>
        %1479 = vector.extract_strided_slice %1 {offsets = [22, 0], sizes = [1, 32], strides = [1, 1]} : vector<32x32xf32> to vector<1x32xf32>
        %1480 = vector.broadcast %1478 : vector<8x1xf32> to vector<8x32xf32>
        %1481 = vector.broadcast %1479 : vector<1x32xf32> to vector<8x32xf32>
        %1482 = arith.mulf %1480, %1481 : vector<8x32xf32>
        %1483 = arith.addf %1477, %1482 : vector<8x32xf32>
        %1484 = vector.extract_strided_slice %1345 {offsets = [0, 23], sizes = [8, 1], strides = [1, 1]} : vector<8x32xf32> to vector<8x1xf32>
        %1485 = vector.extract_strided_slice %1 {offsets = [23, 0], sizes = [1, 32], strides = [1, 1]} : vector<32x32xf32> to vector<1x32xf32>
        %1486 = vector.broadcast %1484 : vector<8x1xf32> to vector<8x32xf32>
        %1487 = vector.broadcast %1485 : vector<1x32xf32> to vector<8x32xf32>
        %1488 = arith.mulf %1486, %1487 : vector<8x32xf32>
        %1489 = arith.addf %1483, %1488 : vector<8x32xf32>
        %1490 = vector.extract_strided_slice %1345 {offsets = [0, 24], sizes = [8, 1], strides = [1, 1]} : vector<8x32xf32> to vector<8x1xf32>
        %1491 = vector.extract_strided_slice %1 {offsets = [24, 0], sizes = [1, 32], strides = [1, 1]} : vector<32x32xf32> to vector<1x32xf32>
        %1492 = vector.broadcast %1490 : vector<8x1xf32> to vector<8x32xf32>
        %1493 = vector.broadcast %1491 : vector<1x32xf32> to vector<8x32xf32>
        %1494 = arith.mulf %1492, %1493 : vector<8x32xf32>
        %1495 = arith.addf %1489, %1494 : vector<8x32xf32>
        %1496 = vector.extract_strided_slice %1345 {offsets = [0, 25], sizes = [8, 1], strides = [1, 1]} : vector<8x32xf32> to vector<8x1xf32>
        %1497 = vector.extract_strided_slice %1 {offsets = [25, 0], sizes = [1, 32], strides = [1, 1]} : vector<32x32xf32> to vector<1x32xf32>
        %1498 = vector.broadcast %1496 : vector<8x1xf32> to vector<8x32xf32>
        %1499 = vector.broadcast %1497 : vector<1x32xf32> to vector<8x32xf32>
        %1500 = arith.mulf %1498, %1499 : vector<8x32xf32>
        %1501 = arith.addf %1495, %1500 : vector<8x32xf32>
        %1502 = vector.extract_strided_slice %1345 {offsets = [0, 26], sizes = [8, 1], strides = [1, 1]} : vector<8x32xf32> to vector<8x1xf32>
        %1503 = vector.extract_strided_slice %1 {offsets = [26, 0], sizes = [1, 32], strides = [1, 1]} : vector<32x32xf32> to vector<1x32xf32>
        %1504 = vector.broadcast %1502 : vector<8x1xf32> to vector<8x32xf32>
        %1505 = vector.broadcast %1503 : vector<1x32xf32> to vector<8x32xf32>
        %1506 = arith.mulf %1504, %1505 : vector<8x32xf32>
        %1507 = arith.addf %1501, %1506 : vector<8x32xf32>
        %1508 = vector.extract_strided_slice %1345 {offsets = [0, 27], sizes = [8, 1], strides = [1, 1]} : vector<8x32xf32> to vector<8x1xf32>
        %1509 = vector.extract_strided_slice %1 {offsets = [27, 0], sizes = [1, 32], strides = [1, 1]} : vector<32x32xf32> to vector<1x32xf32>
        %1510 = vector.broadcast %1508 : vector<8x1xf32> to vector<8x32xf32>
        %1511 = vector.broadcast %1509 : vector<1x32xf32> to vector<8x32xf32>
        %1512 = arith.mulf %1510, %1511 : vector<8x32xf32>
        %1513 = arith.addf %1507, %1512 : vector<8x32xf32>
        %1514 = vector.extract_strided_slice %1345 {offsets = [0, 28], sizes = [8, 1], strides = [1, 1]} : vector<8x32xf32> to vector<8x1xf32>
        %1515 = vector.extract_strided_slice %1 {offsets = [28, 0], sizes = [1, 32], strides = [1, 1]} : vector<32x32xf32> to vector<1x32xf32>
        %1516 = vector.broadcast %1514 : vector<8x1xf32> to vector<8x32xf32>
        %1517 = vector.broadcast %1515 : vector<1x32xf32> to vector<8x32xf32>
        %1518 = arith.mulf %1516, %1517 : vector<8x32xf32>
        %1519 = arith.addf %1513, %1518 : vector<8x32xf32>
        %1520 = vector.extract_strided_slice %1345 {offsets = [0, 29], sizes = [8, 1], strides = [1, 1]} : vector<8x32xf32> to vector<8x1xf32>
        %1521 = vector.extract_strided_slice %1 {offsets = [29, 0], sizes = [1, 32], strides = [1, 1]} : vector<32x32xf32> to vector<1x32xf32>
        %1522 = vector.broadcast %1520 : vector<8x1xf32> to vector<8x32xf32>
        %1523 = vector.broadcast %1521 : vector<1x32xf32> to vector<8x32xf32>
        %1524 = arith.mulf %1522, %1523 : vector<8x32xf32>
        %1525 = arith.addf %1519, %1524 : vector<8x32xf32>
        %1526 = vector.extract_strided_slice %1345 {offsets = [0, 30], sizes = [8, 1], strides = [1, 1]} : vector<8x32xf32> to vector<8x1xf32>
        %1527 = vector.extract_strided_slice %1 {offsets = [30, 0], sizes = [1, 32], strides = [1, 1]} : vector<32x32xf32> to vector<1x32xf32>
        %1528 = vector.broadcast %1526 : vector<8x1xf32> to vector<8x32xf32>
        %1529 = vector.broadcast %1527 : vector<1x32xf32> to vector<8x32xf32>
        %1530 = arith.mulf %1528, %1529 : vector<8x32xf32>
        %1531 = arith.addf %1525, %1530 : vector<8x32xf32>
        %1532 = vector.extract_strided_slice %1345 {offsets = [0, 31], sizes = [8, 1], strides = [1, 1]} : vector<8x32xf32> to vector<8x1xf32>
        %1533 = vector.extract_strided_slice %1 {offsets = [31, 0], sizes = [1, 32], strides = [1, 1]} : vector<32x32xf32> to vector<1x32xf32>
        %1534 = vector.broadcast %1532 : vector<8x1xf32> to vector<8x32xf32>
        %1535 = vector.broadcast %1533 : vector<1x32xf32> to vector<8x32xf32>
        %1536 = arith.mulf %1534, %1535 : vector<8x32xf32>
        %1537 = arith.addf %1531, %1536 : vector<8x32xf32>
        %cst_45 = arith.constant 0.000000e+00 : f32
        %1538 = vector.broadcast %cst_45 : f32 to vector<8x32xf32>
        %1539 = arith.cmpf ogt, %1537, %1538 : vector<8x32xf32>
        %cst_46 = arith.constant 0.000000e+00 : f32
        %1540 = vector.broadcast %cst_46 : f32 to vector<8x32xf32>
        %1541 = arith.minimumf %1537, %1540 : vector<8x32xf32>
        %1542 = math.exp %1541 : vector<8x32xf32>
        %cst_47 = arith.constant 1.000000e+00 : f32
        %1543 = vector.broadcast %cst_47 : f32 to vector<8x32xf32>
        %1544 = arith.subf %1542, %1543 : vector<8x32xf32>
        %1545 = arith.select %1539, %1537, %1544 : vector<8x32xi1>, vector<8x32xf32>
        %1546 = vector.extract_strided_slice %1545 {offsets = [0, 0], sizes = [8, 1], strides = [1, 1]} : vector<8x32xf32> to vector<8x1xf32>
        %1547 = vector.extract_strided_slice %2 {offsets = [0, 0], sizes = [1, 4], strides = [1, 1]} : vector<32x4xf32> to vector<1x4xf32>
        %1548 = vector.broadcast %1546 : vector<8x1xf32> to vector<8x4xf32>
        %1549 = vector.broadcast %1547 : vector<1x4xf32> to vector<8x4xf32>
        %1550 = arith.mulf %1548, %1549 : vector<8x4xf32>
        %1551 = arith.addf %11, %1550 : vector<8x4xf32>
        %1552 = vector.extract_strided_slice %1545 {offsets = [0, 1], sizes = [8, 1], strides = [1, 1]} : vector<8x32xf32> to vector<8x1xf32>
        %1553 = vector.extract_strided_slice %2 {offsets = [1, 0], sizes = [1, 4], strides = [1, 1]} : vector<32x4xf32> to vector<1x4xf32>
        %1554 = vector.broadcast %1552 : vector<8x1xf32> to vector<8x4xf32>
        %1555 = vector.broadcast %1553 : vector<1x4xf32> to vector<8x4xf32>
        %1556 = arith.mulf %1554, %1555 : vector<8x4xf32>
        %1557 = arith.addf %1551, %1556 : vector<8x4xf32>
        %1558 = vector.extract_strided_slice %1545 {offsets = [0, 2], sizes = [8, 1], strides = [1, 1]} : vector<8x32xf32> to vector<8x1xf32>
        %1559 = vector.extract_strided_slice %2 {offsets = [2, 0], sizes = [1, 4], strides = [1, 1]} : vector<32x4xf32> to vector<1x4xf32>
        %1560 = vector.broadcast %1558 : vector<8x1xf32> to vector<8x4xf32>
        %1561 = vector.broadcast %1559 : vector<1x4xf32> to vector<8x4xf32>
        %1562 = arith.mulf %1560, %1561 : vector<8x4xf32>
        %1563 = arith.addf %1557, %1562 : vector<8x4xf32>
        %1564 = vector.extract_strided_slice %1545 {offsets = [0, 3], sizes = [8, 1], strides = [1, 1]} : vector<8x32xf32> to vector<8x1xf32>
        %1565 = vector.extract_strided_slice %2 {offsets = [3, 0], sizes = [1, 4], strides = [1, 1]} : vector<32x4xf32> to vector<1x4xf32>
        %1566 = vector.broadcast %1564 : vector<8x1xf32> to vector<8x4xf32>
        %1567 = vector.broadcast %1565 : vector<1x4xf32> to vector<8x4xf32>
        %1568 = arith.mulf %1566, %1567 : vector<8x4xf32>
        %1569 = arith.addf %1563, %1568 : vector<8x4xf32>
        %1570 = vector.extract_strided_slice %1545 {offsets = [0, 4], sizes = [8, 1], strides = [1, 1]} : vector<8x32xf32> to vector<8x1xf32>
        %1571 = vector.extract_strided_slice %2 {offsets = [4, 0], sizes = [1, 4], strides = [1, 1]} : vector<32x4xf32> to vector<1x4xf32>
        %1572 = vector.broadcast %1570 : vector<8x1xf32> to vector<8x4xf32>
        %1573 = vector.broadcast %1571 : vector<1x4xf32> to vector<8x4xf32>
        %1574 = arith.mulf %1572, %1573 : vector<8x4xf32>
        %1575 = arith.addf %1569, %1574 : vector<8x4xf32>
        %1576 = vector.extract_strided_slice %1545 {offsets = [0, 5], sizes = [8, 1], strides = [1, 1]} : vector<8x32xf32> to vector<8x1xf32>
        %1577 = vector.extract_strided_slice %2 {offsets = [5, 0], sizes = [1, 4], strides = [1, 1]} : vector<32x4xf32> to vector<1x4xf32>
        %1578 = vector.broadcast %1576 : vector<8x1xf32> to vector<8x4xf32>
        %1579 = vector.broadcast %1577 : vector<1x4xf32> to vector<8x4xf32>
        %1580 = arith.mulf %1578, %1579 : vector<8x4xf32>
        %1581 = arith.addf %1575, %1580 : vector<8x4xf32>
        %1582 = vector.extract_strided_slice %1545 {offsets = [0, 6], sizes = [8, 1], strides = [1, 1]} : vector<8x32xf32> to vector<8x1xf32>
        %1583 = vector.extract_strided_slice %2 {offsets = [6, 0], sizes = [1, 4], strides = [1, 1]} : vector<32x4xf32> to vector<1x4xf32>
        %1584 = vector.broadcast %1582 : vector<8x1xf32> to vector<8x4xf32>
        %1585 = vector.broadcast %1583 : vector<1x4xf32> to vector<8x4xf32>
        %1586 = arith.mulf %1584, %1585 : vector<8x4xf32>
        %1587 = arith.addf %1581, %1586 : vector<8x4xf32>
        %1588 = vector.extract_strided_slice %1545 {offsets = [0, 7], sizes = [8, 1], strides = [1, 1]} : vector<8x32xf32> to vector<8x1xf32>
        %1589 = vector.extract_strided_slice %2 {offsets = [7, 0], sizes = [1, 4], strides = [1, 1]} : vector<32x4xf32> to vector<1x4xf32>
        %1590 = vector.broadcast %1588 : vector<8x1xf32> to vector<8x4xf32>
        %1591 = vector.broadcast %1589 : vector<1x4xf32> to vector<8x4xf32>
        %1592 = arith.mulf %1590, %1591 : vector<8x4xf32>
        %1593 = arith.addf %1587, %1592 : vector<8x4xf32>
        %1594 = vector.extract_strided_slice %1545 {offsets = [0, 8], sizes = [8, 1], strides = [1, 1]} : vector<8x32xf32> to vector<8x1xf32>
        %1595 = vector.extract_strided_slice %2 {offsets = [8, 0], sizes = [1, 4], strides = [1, 1]} : vector<32x4xf32> to vector<1x4xf32>
        %1596 = vector.broadcast %1594 : vector<8x1xf32> to vector<8x4xf32>
        %1597 = vector.broadcast %1595 : vector<1x4xf32> to vector<8x4xf32>
        %1598 = arith.mulf %1596, %1597 : vector<8x4xf32>
        %1599 = arith.addf %1593, %1598 : vector<8x4xf32>
        %1600 = vector.extract_strided_slice %1545 {offsets = [0, 9], sizes = [8, 1], strides = [1, 1]} : vector<8x32xf32> to vector<8x1xf32>
        %1601 = vector.extract_strided_slice %2 {offsets = [9, 0], sizes = [1, 4], strides = [1, 1]} : vector<32x4xf32> to vector<1x4xf32>
        %1602 = vector.broadcast %1600 : vector<8x1xf32> to vector<8x4xf32>
        %1603 = vector.broadcast %1601 : vector<1x4xf32> to vector<8x4xf32>
        %1604 = arith.mulf %1602, %1603 : vector<8x4xf32>
        %1605 = arith.addf %1599, %1604 : vector<8x4xf32>
        %1606 = vector.extract_strided_slice %1545 {offsets = [0, 10], sizes = [8, 1], strides = [1, 1]} : vector<8x32xf32> to vector<8x1xf32>
        %1607 = vector.extract_strided_slice %2 {offsets = [10, 0], sizes = [1, 4], strides = [1, 1]} : vector<32x4xf32> to vector<1x4xf32>
        %1608 = vector.broadcast %1606 : vector<8x1xf32> to vector<8x4xf32>
        %1609 = vector.broadcast %1607 : vector<1x4xf32> to vector<8x4xf32>
        %1610 = arith.mulf %1608, %1609 : vector<8x4xf32>
        %1611 = arith.addf %1605, %1610 : vector<8x4xf32>
        %1612 = vector.extract_strided_slice %1545 {offsets = [0, 11], sizes = [8, 1], strides = [1, 1]} : vector<8x32xf32> to vector<8x1xf32>
        %1613 = vector.extract_strided_slice %2 {offsets = [11, 0], sizes = [1, 4], strides = [1, 1]} : vector<32x4xf32> to vector<1x4xf32>
        %1614 = vector.broadcast %1612 : vector<8x1xf32> to vector<8x4xf32>
        %1615 = vector.broadcast %1613 : vector<1x4xf32> to vector<8x4xf32>
        %1616 = arith.mulf %1614, %1615 : vector<8x4xf32>
        %1617 = arith.addf %1611, %1616 : vector<8x4xf32>
        %1618 = vector.extract_strided_slice %1545 {offsets = [0, 12], sizes = [8, 1], strides = [1, 1]} : vector<8x32xf32> to vector<8x1xf32>
        %1619 = vector.extract_strided_slice %2 {offsets = [12, 0], sizes = [1, 4], strides = [1, 1]} : vector<32x4xf32> to vector<1x4xf32>
        %1620 = vector.broadcast %1618 : vector<8x1xf32> to vector<8x4xf32>
        %1621 = vector.broadcast %1619 : vector<1x4xf32> to vector<8x4xf32>
        %1622 = arith.mulf %1620, %1621 : vector<8x4xf32>
        %1623 = arith.addf %1617, %1622 : vector<8x4xf32>
        %1624 = vector.extract_strided_slice %1545 {offsets = [0, 13], sizes = [8, 1], strides = [1, 1]} : vector<8x32xf32> to vector<8x1xf32>
        %1625 = vector.extract_strided_slice %2 {offsets = [13, 0], sizes = [1, 4], strides = [1, 1]} : vector<32x4xf32> to vector<1x4xf32>
        %1626 = vector.broadcast %1624 : vector<8x1xf32> to vector<8x4xf32>
        %1627 = vector.broadcast %1625 : vector<1x4xf32> to vector<8x4xf32>
        %1628 = arith.mulf %1626, %1627 : vector<8x4xf32>
        %1629 = arith.addf %1623, %1628 : vector<8x4xf32>
        %1630 = vector.extract_strided_slice %1545 {offsets = [0, 14], sizes = [8, 1], strides = [1, 1]} : vector<8x32xf32> to vector<8x1xf32>
        %1631 = vector.extract_strided_slice %2 {offsets = [14, 0], sizes = [1, 4], strides = [1, 1]} : vector<32x4xf32> to vector<1x4xf32>
        %1632 = vector.broadcast %1630 : vector<8x1xf32> to vector<8x4xf32>
        %1633 = vector.broadcast %1631 : vector<1x4xf32> to vector<8x4xf32>
        %1634 = arith.mulf %1632, %1633 : vector<8x4xf32>
        %1635 = arith.addf %1629, %1634 : vector<8x4xf32>
        %1636 = vector.extract_strided_slice %1545 {offsets = [0, 15], sizes = [8, 1], strides = [1, 1]} : vector<8x32xf32> to vector<8x1xf32>
        %1637 = vector.extract_strided_slice %2 {offsets = [15, 0], sizes = [1, 4], strides = [1, 1]} : vector<32x4xf32> to vector<1x4xf32>
        %1638 = vector.broadcast %1636 : vector<8x1xf32> to vector<8x4xf32>
        %1639 = vector.broadcast %1637 : vector<1x4xf32> to vector<8x4xf32>
        %1640 = arith.mulf %1638, %1639 : vector<8x4xf32>
        %1641 = arith.addf %1635, %1640 : vector<8x4xf32>
        %1642 = vector.extract_strided_slice %1545 {offsets = [0, 16], sizes = [8, 1], strides = [1, 1]} : vector<8x32xf32> to vector<8x1xf32>
        %1643 = vector.extract_strided_slice %2 {offsets = [16, 0], sizes = [1, 4], strides = [1, 1]} : vector<32x4xf32> to vector<1x4xf32>
        %1644 = vector.broadcast %1642 : vector<8x1xf32> to vector<8x4xf32>
        %1645 = vector.broadcast %1643 : vector<1x4xf32> to vector<8x4xf32>
        %1646 = arith.mulf %1644, %1645 : vector<8x4xf32>
        %1647 = arith.addf %1641, %1646 : vector<8x4xf32>
        %1648 = vector.extract_strided_slice %1545 {offsets = [0, 17], sizes = [8, 1], strides = [1, 1]} : vector<8x32xf32> to vector<8x1xf32>
        %1649 = vector.extract_strided_slice %2 {offsets = [17, 0], sizes = [1, 4], strides = [1, 1]} : vector<32x4xf32> to vector<1x4xf32>
        %1650 = vector.broadcast %1648 : vector<8x1xf32> to vector<8x4xf32>
        %1651 = vector.broadcast %1649 : vector<1x4xf32> to vector<8x4xf32>
        %1652 = arith.mulf %1650, %1651 : vector<8x4xf32>
        %1653 = arith.addf %1647, %1652 : vector<8x4xf32>
        %1654 = vector.extract_strided_slice %1545 {offsets = [0, 18], sizes = [8, 1], strides = [1, 1]} : vector<8x32xf32> to vector<8x1xf32>
        %1655 = vector.extract_strided_slice %2 {offsets = [18, 0], sizes = [1, 4], strides = [1, 1]} : vector<32x4xf32> to vector<1x4xf32>
        %1656 = vector.broadcast %1654 : vector<8x1xf32> to vector<8x4xf32>
        %1657 = vector.broadcast %1655 : vector<1x4xf32> to vector<8x4xf32>
        %1658 = arith.mulf %1656, %1657 : vector<8x4xf32>
        %1659 = arith.addf %1653, %1658 : vector<8x4xf32>
        %1660 = vector.extract_strided_slice %1545 {offsets = [0, 19], sizes = [8, 1], strides = [1, 1]} : vector<8x32xf32> to vector<8x1xf32>
        %1661 = vector.extract_strided_slice %2 {offsets = [19, 0], sizes = [1, 4], strides = [1, 1]} : vector<32x4xf32> to vector<1x4xf32>
        %1662 = vector.broadcast %1660 : vector<8x1xf32> to vector<8x4xf32>
        %1663 = vector.broadcast %1661 : vector<1x4xf32> to vector<8x4xf32>
        %1664 = arith.mulf %1662, %1663 : vector<8x4xf32>
        %1665 = arith.addf %1659, %1664 : vector<8x4xf32>
        %1666 = vector.extract_strided_slice %1545 {offsets = [0, 20], sizes = [8, 1], strides = [1, 1]} : vector<8x32xf32> to vector<8x1xf32>
        %1667 = vector.extract_strided_slice %2 {offsets = [20, 0], sizes = [1, 4], strides = [1, 1]} : vector<32x4xf32> to vector<1x4xf32>
        %1668 = vector.broadcast %1666 : vector<8x1xf32> to vector<8x4xf32>
        %1669 = vector.broadcast %1667 : vector<1x4xf32> to vector<8x4xf32>
        %1670 = arith.mulf %1668, %1669 : vector<8x4xf32>
        %1671 = arith.addf %1665, %1670 : vector<8x4xf32>
        %1672 = vector.extract_strided_slice %1545 {offsets = [0, 21], sizes = [8, 1], strides = [1, 1]} : vector<8x32xf32> to vector<8x1xf32>
        %1673 = vector.extract_strided_slice %2 {offsets = [21, 0], sizes = [1, 4], strides = [1, 1]} : vector<32x4xf32> to vector<1x4xf32>
        %1674 = vector.broadcast %1672 : vector<8x1xf32> to vector<8x4xf32>
        %1675 = vector.broadcast %1673 : vector<1x4xf32> to vector<8x4xf32>
        %1676 = arith.mulf %1674, %1675 : vector<8x4xf32>
        %1677 = arith.addf %1671, %1676 : vector<8x4xf32>
        %1678 = vector.extract_strided_slice %1545 {offsets = [0, 22], sizes = [8, 1], strides = [1, 1]} : vector<8x32xf32> to vector<8x1xf32>
        %1679 = vector.extract_strided_slice %2 {offsets = [22, 0], sizes = [1, 4], strides = [1, 1]} : vector<32x4xf32> to vector<1x4xf32>
        %1680 = vector.broadcast %1678 : vector<8x1xf32> to vector<8x4xf32>
        %1681 = vector.broadcast %1679 : vector<1x4xf32> to vector<8x4xf32>
        %1682 = arith.mulf %1680, %1681 : vector<8x4xf32>
        %1683 = arith.addf %1677, %1682 : vector<8x4xf32>
        %1684 = vector.extract_strided_slice %1545 {offsets = [0, 23], sizes = [8, 1], strides = [1, 1]} : vector<8x32xf32> to vector<8x1xf32>
        %1685 = vector.extract_strided_slice %2 {offsets = [23, 0], sizes = [1, 4], strides = [1, 1]} : vector<32x4xf32> to vector<1x4xf32>
        %1686 = vector.broadcast %1684 : vector<8x1xf32> to vector<8x4xf32>
        %1687 = vector.broadcast %1685 : vector<1x4xf32> to vector<8x4xf32>
        %1688 = arith.mulf %1686, %1687 : vector<8x4xf32>
        %1689 = arith.addf %1683, %1688 : vector<8x4xf32>
        %1690 = vector.extract_strided_slice %1545 {offsets = [0, 24], sizes = [8, 1], strides = [1, 1]} : vector<8x32xf32> to vector<8x1xf32>
        %1691 = vector.extract_strided_slice %2 {offsets = [24, 0], sizes = [1, 4], strides = [1, 1]} : vector<32x4xf32> to vector<1x4xf32>
        %1692 = vector.broadcast %1690 : vector<8x1xf32> to vector<8x4xf32>
        %1693 = vector.broadcast %1691 : vector<1x4xf32> to vector<8x4xf32>
        %1694 = arith.mulf %1692, %1693 : vector<8x4xf32>
        %1695 = arith.addf %1689, %1694 : vector<8x4xf32>
        %1696 = vector.extract_strided_slice %1545 {offsets = [0, 25], sizes = [8, 1], strides = [1, 1]} : vector<8x32xf32> to vector<8x1xf32>
        %1697 = vector.extract_strided_slice %2 {offsets = [25, 0], sizes = [1, 4], strides = [1, 1]} : vector<32x4xf32> to vector<1x4xf32>
        %1698 = vector.broadcast %1696 : vector<8x1xf32> to vector<8x4xf32>
        %1699 = vector.broadcast %1697 : vector<1x4xf32> to vector<8x4xf32>
        %1700 = arith.mulf %1698, %1699 : vector<8x4xf32>
        %1701 = arith.addf %1695, %1700 : vector<8x4xf32>
        %1702 = vector.extract_strided_slice %1545 {offsets = [0, 26], sizes = [8, 1], strides = [1, 1]} : vector<8x32xf32> to vector<8x1xf32>
        %1703 = vector.extract_strided_slice %2 {offsets = [26, 0], sizes = [1, 4], strides = [1, 1]} : vector<32x4xf32> to vector<1x4xf32>
        %1704 = vector.broadcast %1702 : vector<8x1xf32> to vector<8x4xf32>
        %1705 = vector.broadcast %1703 : vector<1x4xf32> to vector<8x4xf32>
        %1706 = arith.mulf %1704, %1705 : vector<8x4xf32>
        %1707 = arith.addf %1701, %1706 : vector<8x4xf32>
        %1708 = vector.extract_strided_slice %1545 {offsets = [0, 27], sizes = [8, 1], strides = [1, 1]} : vector<8x32xf32> to vector<8x1xf32>
        %1709 = vector.extract_strided_slice %2 {offsets = [27, 0], sizes = [1, 4], strides = [1, 1]} : vector<32x4xf32> to vector<1x4xf32>
        %1710 = vector.broadcast %1708 : vector<8x1xf32> to vector<8x4xf32>
        %1711 = vector.broadcast %1709 : vector<1x4xf32> to vector<8x4xf32>
        %1712 = arith.mulf %1710, %1711 : vector<8x4xf32>
        %1713 = arith.addf %1707, %1712 : vector<8x4xf32>
        %1714 = vector.extract_strided_slice %1545 {offsets = [0, 28], sizes = [8, 1], strides = [1, 1]} : vector<8x32xf32> to vector<8x1xf32>
        %1715 = vector.extract_strided_slice %2 {offsets = [28, 0], sizes = [1, 4], strides = [1, 1]} : vector<32x4xf32> to vector<1x4xf32>
        %1716 = vector.broadcast %1714 : vector<8x1xf32> to vector<8x4xf32>
        %1717 = vector.broadcast %1715 : vector<1x4xf32> to vector<8x4xf32>
        %1718 = arith.mulf %1716, %1717 : vector<8x4xf32>
        %1719 = arith.addf %1713, %1718 : vector<8x4xf32>
        %1720 = vector.extract_strided_slice %1545 {offsets = [0, 29], sizes = [8, 1], strides = [1, 1]} : vector<8x32xf32> to vector<8x1xf32>
        %1721 = vector.extract_strided_slice %2 {offsets = [29, 0], sizes = [1, 4], strides = [1, 1]} : vector<32x4xf32> to vector<1x4xf32>
        %1722 = vector.broadcast %1720 : vector<8x1xf32> to vector<8x4xf32>
        %1723 = vector.broadcast %1721 : vector<1x4xf32> to vector<8x4xf32>
        %1724 = arith.mulf %1722, %1723 : vector<8x4xf32>
        %1725 = arith.addf %1719, %1724 : vector<8x4xf32>
        %1726 = vector.extract_strided_slice %1545 {offsets = [0, 30], sizes = [8, 1], strides = [1, 1]} : vector<8x32xf32> to vector<8x1xf32>
        %1727 = vector.extract_strided_slice %2 {offsets = [30, 0], sizes = [1, 4], strides = [1, 1]} : vector<32x4xf32> to vector<1x4xf32>
        %1728 = vector.broadcast %1726 : vector<8x1xf32> to vector<8x4xf32>
        %1729 = vector.broadcast %1727 : vector<1x4xf32> to vector<8x4xf32>
        %1730 = arith.mulf %1728, %1729 : vector<8x4xf32>
        %1731 = arith.addf %1725, %1730 : vector<8x4xf32>
        %1732 = vector.extract_strided_slice %1545 {offsets = [0, 31], sizes = [8, 1], strides = [1, 1]} : vector<8x32xf32> to vector<8x1xf32>
        %1733 = vector.extract_strided_slice %2 {offsets = [31, 0], sizes = [1, 4], strides = [1, 1]} : vector<32x4xf32> to vector<1x4xf32>
        %1734 = vector.broadcast %1732 : vector<8x1xf32> to vector<8x4xf32>
        %1735 = vector.broadcast %1733 : vector<1x4xf32> to vector<8x4xf32>
        %1736 = arith.mulf %1734, %1735 : vector<8x4xf32>
        %1737 = arith.addf %1731, %1736 : vector<8x4xf32>
        %cst_48 = arith.constant 6.000000e+00 : f32
        %1738 = arith.divf %24, %cst_48 : f32
        %cst_49 = arith.constant 2.000000e+00 : f32
        %1739 = vector.broadcast %cst_49 : f32 to vector<8x4xf32>
        %1740 = arith.mulf %1739, %882 : vector<8x4xf32>
        %1741 = arith.addf %454, %1740 : vector<8x4xf32>
        %cst_50 = arith.constant 2.000000e+00 : f32
        %1742 = vector.broadcast %cst_50 : f32 to vector<8x4xf32>
        %1743 = arith.mulf %1742, %1310 : vector<8x4xf32>
        %1744 = arith.addf %1741, %1743 : vector<8x4xf32>
        %1745 = arith.addf %1744, %1737 : vector<8x4xf32>
        %1746 = vector.broadcast %1738 : f32 to vector<8x4xf32>
        %1747 = arith.mulf %1746, %1745 : vector<8x4xf32>
        %1748 = arith.addf %arg13, %1747 : vector<8x4xf32>
        scf.yield %1748 : vector<8x4xf32>
      }
      %27 = arith.index_cast %arg10 : i32 to index
      %c0_20 = arith.constant 0 : index
      %c0_21 = arith.constant 0 : index
      %28 = vector.load %arg9[%27, %c0_20, %c0_21] : memref<5x8x4xf32, #tpu.memory_space<vmem>>, vector<1x8x4xf32>
      %29 = vector.shape_cast %28 : vector<1x8x4xf32> to vector<8x4xf32>
      %30 = vector.shape_cast %26 : vector<8x4xf32> to vector<1x8x4xf32>
      tpu.vector_store %arg9[%27, %c0_20, %c0_21], %30 {strides = array<i32>} : memref<5x8x4xf32, #tpu.memory_space<vmem>>, vector<1x8x4xf32>,
      scf.yield %26 : vector<8x4xf32>
    }
    %c4_i32_17 = arith.constant 4 : i32
    return
  }
  func.func @transform_0(%arg0: i32, %arg1: memref<5xf32, #tpu.memory_space<smem>>) -> (i32, i32) {
    %c0_i32 = arith.constant 0 : i32
    %c0_i32_0 = arith.constant 0 : i32
    %c0_i32_1 = arith.constant 0 : i32
    return %c0_i32, %c0_i32_0 : i32, i32
  }
  func.func @transform_1(%arg0: i32, %arg1: memref<5xf32, #tpu.memory_space<smem>>) -> (i32, i32) {
    %c0_i32 = arith.constant 0 : i32
    %c0_i32_0 = arith.constant 0 : i32
    %c0_i32_1 = arith.constant 0 : i32
    return %c0_i32, %c0_i32_0 : i32, i32
  }
  func.func @transform_2(%arg0: i32, %arg1: memref<5xf32, #tpu.memory_space<smem>>) -> (i32, i32) {
    %c0_i32 = arith.constant 0 : i32
    %c0_i32_0 = arith.constant 0 : i32
    %c0_i32_1 = arith.constant 0 : i32
    return %c0_i32, %c0_i32_0 : i32, i32
  }
  func.func @transform_3(%arg0: i32, %arg1: memref<5xf32, #tpu.memory_space<smem>>) -> (i32, i32) {
    %c0_i32 = arith.constant 0 : i32
    %c0_i32_0 = arith.constant 0 : i32
    %c0_i32_1 = arith.constant 0 : i32
    return %c0_i32, %c0_i32_0 : i32, i32
  }
  func.func @transform_4(%arg0: i32, %arg1: memref<5xf32, #tpu.memory_space<smem>>) -> (i32, i32) {
    %c0_i32 = arith.constant 0 : i32
    %c0_i32_0 = arith.constant 0 : i32
    %c0_i32_1 = arith.constant 0 : i32
    return %c0_i32, %c0_i32_0 : i32, i32
  }
  func.func @transform_5(%arg0: i32, %arg1: memref<5xf32, #tpu.memory_space<smem>>) -> (i32, i32) {
    %c0_i32 = arith.constant 0 : i32
    %c0_i32_0 = arith.constant 0 : i32
    %c0_i32_1 = arith.constant 0 : i32
    return %c0_i32, %c0_i32_0 : i32, i32
  }
  func.func @transform_6(%arg0: i32, %arg1: memref<5xf32, #tpu.memory_space<smem>>) -> (i32, i32) {
    %c0_i32 = arith.constant 0 : i32
    %c0_i32_0 = arith.constant 0 : i32
    %c0_i32_1 = arith.constant 0 : i32
    return %c0_i32, %c0_i32_0 : i32, i32
  }
  func.func @transform_7(%arg0: i32, %arg1: memref<5xf32, #tpu.memory_space<smem>>) -> (i32, i32, i32) {
    %c0_i32 = arith.constant 0 : i32
    %c0_i32_0 = arith.constant 0 : i32
    %c0_i32_1 = arith.constant 0 : i32
    %c0_i32_2 = arith.constant 0 : i32
    return %c0_i32, %c0_i32_0, %c0_i32_1 : i32, i32, i32
  }
}

</mosaic_0001>

<llo_original>
// kernel: tpu_custom_call.1
$region0: #{tpu_custom_call.1}
  #allocation0 [shape = 'u32[]', space=smem, size = 0x4, offset = 0x4, fixed_abs, tag = 'smem constant byte address 0x4 - core index']
  #allocation1 [shape = 'u32[144,128]{1,0:T(1,128)}', space=vmem, size = 0x12000, scoped, tag = 'internal scratch']
  #allocation2 [shape = 's32[1]{0}', space=sflag, size = 0x4, scoped, tag = 'scoped memory for tpu_custom_call.1']
  #allocation3 [shape = 'u8[512]{0}', space=smem, size = 0x200, scoped, tag = 'prefetched SMEM operand 0']
  %s0 = inlined_call_operand.vmem [shape: f32[5], index: 0, kind: input, shape index: {}]
  %s1 = inlined_call_operand.vmem [shape: f32[8,4], index: 1, kind: input, shape index: {}]
  %s2 = inlined_call_operand.vmem [shape: f32[4,32], index: 2, kind: input, shape index: {}]
  %s3 = inlined_call_operand.vmem [shape: f32[1,32], index: 3, kind: input, shape index: {}]
  %s4 = inlined_call_operand.vmem [shape: f32[32,32], index: 4, kind: input, shape index: {}]
  %s5 = inlined_call_operand.vmem [shape: f32[1,32], index: 5, kind: input, shape index: {}]
  %s6 = inlined_call_operand.vmem [shape: f32[32,4], index: 6, kind: input, shape index: {}]
  %s7 = inlined_call_operand.vmem [shape: f32[1,4], index: 7, kind: input, shape index: {}]
  %s8 = inlined_call_operand.vmem [shape: f32[5,8,4], index: 8, kind: output, shape index: {}]
  %s9 = sld [smem:[#allocation0]]
  $region52: #{tpu_custom_call.1} parent=0
    _
  %s11 = ssub.s32 1, %s9
  %s12 = scalar_select 0, %s11, %s9
  %s13 = sshll.u32 %s0, 4
  %s14 = int_to_ptr.vmem [resolvable:$true] %s13
  %16 = dma.vmem_to_smem %s14, 16, [#allocation3], [#allocation2]
  %17 = dma.done [#allocation2], 16
  %18 = sfence
  // Predicated region
  $region2: #{tpu_custom_call.1} parent=0 // pred_check
    _
  $region3: #{tpu_custom_call.1} parent=0 // pred_check_branch
    %20 = sbr.rel (0) target = $region5
  $region4: #{tpu_custom_call.1} parent=0 // pred_region
    _
  $region5: #{tpu_custom_call.1} parent=0 // pred_fallthru
    _
  // Predicated region
  $region6: #{tpu_custom_call.1} parent=0 // pred_check
    _
  $region7: #{tpu_custom_call.1} parent=0 // pred_check_branch
    %22 = sbr.rel (0) target = $region9
  $region8: #{tpu_custom_call.1} parent=0 // pred_region
    _
  $region9: #{tpu_custom_call.1} parent=0 // pred_fallthru
    _
  // Predicated region
  $region10: #{tpu_custom_call.1} parent=0 // pred_check
    _
  $region11: #{tpu_custom_call.1} parent=0 // pred_check_branch
    %24 = sbr.rel (0) target = $region13
  $region12: #{tpu_custom_call.1} parent=0 // pred_region
    _
  $region13: #{tpu_custom_call.1} parent=0 // pred_fallthru
    _
  // Predicated region
  $region14: #{tpu_custom_call.1} parent=0 // pred_check
    _
  $region15: #{tpu_custom_call.1} parent=0 // pred_check_branch
    %26 = sbr.rel (0) target = $region17
  $region16: #{tpu_custom_call.1} parent=0 // pred_region
    _
  $region17: #{tpu_custom_call.1} parent=0 // pred_fallthru
    _
  // Predicated region
  $region18: #{tpu_custom_call.1} parent=0 // pred_check
    _
  $region19: #{tpu_custom_call.1} parent=0 // pred_check_branch
    %28 = sbr.rel (0) target = $region21
  $region20: #{tpu_custom_call.1} parent=0 // pred_region
    _
  $region21: #{tpu_custom_call.1} parent=0 // pred_fallthru
    _
  // Predicated region
  $region22: #{tpu_custom_call.1} parent=0 // pred_check
    _
  $region23: #{tpu_custom_call.1} parent=0 // pred_check_branch
    %30 = sbr.rel (0) target = $region25
  $region24: #{tpu_custom_call.1} parent=0 // pred_region
    _
  $region25: #{tpu_custom_call.1} parent=0 // pred_fallthru
    _
  // Predicated region
  $region26: #{tpu_custom_call.1} parent=0 // pred_check
    _
  $region27: #{tpu_custom_call.1} parent=0 // pred_check_branch
    %32 = sbr.rel (0) target = $region29
  $region28: #{tpu_custom_call.1} parent=0 // pred_region
    _
  $region29: #{tpu_custom_call.1} parent=0 // pred_fallthru
    _
  %v33 = vld [vmem:[%s2] sm:$0xf]
  %v34 = vld [vmem:[%s4] sm:$0xff]
  %v35 = vld [vmem:[%s4 + $0x8] sm:$0xff]
  %v36 = vld [vmem:[%s4 + $0x10] sm:$0xff]
  %v37 = vld [vmem:[%s4 + $0x18] sm:$0xff]
  %v38 = vld [vmem:[%s6] sm:$0xff]
  %v39 = vld [vmem:[%s6 + $0x8] sm:$0xff]
  %v40 = vld [vmem:[%s6 + $0x10] sm:$0xff]
  %v41 = vld [vmem:[%s6 + $0x18] sm:$0xff]
  %v42 = vld [vmem:[%s3] sm:$0x1]
  %v44 = vlaneseq
  %v45 = vshrl.u32 %v44, 7
  %v46 = vsub.s32 0, %v45
  %v47 = vrot.slane %v42, %v46
  %v49 = vld [vmem:[%s5] sm:$0x1]
  %v51 = vlaneseq
  %v52 = vshrl.u32 %v51, 7
  %v53 = vsub.s32 0, %v52
  %v54 = vrot.slane %v49, %v53
  %v56 = vld [vmem:[%s7] sm:$0x1]
  %v58 = vlaneseq
  %v59 = vshrl.u32 %v58, 7
  %v60 = vsub.s32 0, %v59
  %v61 = vrot.slane %v56, %v60
  %v63 = vld [vmem:[%s1] sm:$0xff]
  %vm64 = vcmask 31744
  %65 = vst.msk [vmem:[%s8] sm:$0xff] %vm64, %v63
  loop: start=1, step=1, limit=5
  $region30: #{tpu_custom_call.1} parent=0 // loop_pre_header
    _
  $region31: #{tpu_custom_call.1} parent=0 // loop_header
    %s67 = sphi 1, %s71
    %p68 = scmp.ge.s32.totalorder %s67, 5
    %v72 = vphi %v63, %v86
  $region32: #{tpu_custom_call.1} parent=0 // loop_header_branch
    %70 = sbr.rel (%p68) target = $region36
  $region33: #{tpu_custom_call.1} parent=0 // loop_body
    %s73 = ssub.s32 %s67, 1
    %s74 = sld [smem:[#allocation3 + %s73]]
    %s75 = sld [smem:[#allocation3 + %s67]]
    %s76 = ssub.f32 %s75, %s74
    %v77 = vrcp.pop 8.0
    %s78 = vtos %v77
    %s79 = smul.f32 %s76, %s78
    loop: start=0, step=1, limit=8
    $region37: #{tpu_custom_call.1} parent=33 // loop_pre_header
      _
    $region38: #{tpu_custom_call.1} parent=33 // loop_header
      %s81 = sphi 0, %s85
      %p82 = scmp.ge.s32.totalorder %s81, 8
      %v86 = vphi %v72, %v2070
    $region39: #{tpu_custom_call.1} parent=33 // loop_header_branch
      %84 = sbr.rel (%p82) target = $region43
    $region40: #{tpu_custom_call.1} parent=33 // loop_body
      %88 = vset.pattern.permute.xlu0 0
      %89 = vperm.xlu0 %88, %v86
      %v90 = vpop.permute.xlu0 %89
      %v92 = vlaneseq
      %v93 = vshrl.u32 %v92, 7
      %v94 = vsub.s32 0, %v93
      %v95 = vrot.slane %v33, %v94
      %v96 = vmul.f32 %v90, %v95
      %v97 = vadd.f32 %v47, %v96
      %98 = vset.pattern.permute.xlu0 1
      %99 = vperm.xlu0 %98, %v86
      %v100 = vpop.permute.xlu0 %99
      %v102 = vlaneseq
      %v103 = vshrl.u32 %v102, 7
      %v104 = vsub.s32 1, %v103
      %v105 = vrot.slane %v33, %v104
      %v106 = vmul.f32 %v100, %v105
      %v107 = vadd.f32 %v97, %v106
      %108 = vset.pattern.permute.xlu0 2
      %109 = vperm.xlu0 %108, %v86
      %v110 = vpop.permute.xlu0 %109
      %v112 = vlaneseq
      %v113 = vshrl.u32 %v112, 7
      %v114 = vsub.s32 2, %v113
      %v115 = vrot.slane %v33, %v114
      %v116 = vmul.f32 %v110, %v115
      %v117 = vadd.f32 %v107, %v116
      %118 = vset.pattern.permute.xlu0 3
      %119 = vperm.xlu0 %118, %v86
      %v120 = vpop.permute.xlu0 %119
      %v122 = vlaneseq
      %v123 = vshrl.u32 %v122, 7
      %v124 = vsub.s32 3, %v123
      %v125 = vrot.slane %v33, %v124
      %v126 = vmul.f32 %v120, %v125
      %v127 = vadd.f32 %v117, %v126
      %vm128 = vcmp.gt.f32.partialorder %v127, 0.0
      %v129 = vmin.f32 %v127, 0.0
      %v130 = vmul.f32 %v129, 1.442695
      %v131 = vpow.pop %v130
      %v132 = vsub.f32 %v131, 1.0
      %v133 = vsel %vm128, %v127, %v132
      %135 = vset.pattern.permute.xlu0 0
      %136 = vperm.xlu0 %135, %v133
      %v137 = vpop.permute.xlu0 %136
      %v139 = vlaneseq
      %v140 = vshrl.u32 %v139, 7
      %v141 = vsub.s32 0, %v140
      %v142 = vrot.slane %v34, %v141
      %v143 = vmul.f32 %v137, %v142
      %v144 = vadd.f32 %v54, %v143
      %145 = vset.pattern.permute.xlu0 1
      %146 = vperm.xlu0 %145, %v133
      %v147 = vpop.permute.xlu0 %146
      %v149 = vlaneseq
      %v150 = vshrl.u32 %v149, 7
      %v151 = vsub.s32 1, %v150
      %v152 = vrot.slane %v34, %v151
      %v153 = vmul.f32 %v147, %v152
      %v154 = vadd.f32 %v144, %v153
      %155 = vset.pattern.permute.xlu0 2
      %156 = vperm.xlu0 %155, %v133
      %v157 = vpop.permute.xlu0 %156
      %v159 = vlaneseq
      %v160 = vshrl.u32 %v159, 7
      %v161 = vsub.s32 2, %v160
      %v162 = vrot.slane %v34, %v161
      %v163 = vmul.f32 %v157, %v162
      %v164 = vadd.f32 %v154, %v163
      %165 = vset.pattern.permute.xlu0 3
      %166 = vperm.xlu0 %165, %v133
      %v167 = vpop.permute.xlu0 %166
      %v169 = vlaneseq
      %v170 = vshrl.u32 %v169, 7
      %v171 = vsub.s32 3, %v170
      %v172 = vrot.slane %v34, %v171
      %v173 = vmul.f32 %v167, %v172
      %v174 = vadd.f32 %v164, %v173
      %175 = vset.pattern.permute.xlu0 4
      %176 = vperm.xlu0 %175, %v133
      %v177 = vpop.permute.xlu0 %176
      %v179 = vlaneseq
      %v180 = vshrl.u32 %v179, 7
      %v181 = vsub.s32 4, %v180
      %v182 = vrot.slane %v34, %v181
      %v183 = vmul.f32 %v177, %v182
      %v184 = vadd.f32 %v174, %v183
      %185 = vset.pattern.permute.xlu0 5
      %186 = vperm.xlu0 %185, %v133
      %v187 = vpop.permute.xlu0 %186
      %v189 = vlaneseq
      %v190 = vshrl.u32 %v189, 7
      %v191 = vsub.s32 5, %v190
      %v192 = vrot.slane %v34, %v191
      %v193 = vmul.f32 %v187, %v192
      %v194 = vadd.f32 %v184, %v193
      %195 = vset.pattern.permute.xlu0 6
      %196 = vperm.xlu0 %195, %v133
      %v197 = vpop.permute.xlu0 %196
      %v199 = vlaneseq
      %v200 = vshrl.u32 %v199, 7
      %v201 = vsub.s32 6, %v200
      %v202 = vrot.slane %v34, %v201
      %v203 = vmul.f32 %v197, %v202
      %v204 = vadd.f32 %v194, %v203
      %205 = vset.pattern.permute.xlu0 7
      %206 = vperm.xlu0 %205, %v133
      %v207 = vpop.permute.xlu0 %206
      %v209 = vlaneseq
      %v210 = vshrl.u32 %v209, 7
      %v211 = vsub.s32 7, %v210
      %v212 = vrot.slane %v34, %v211
      %v213 = vmul.f32 %v207, %v212
      %v214 = vadd.f32 %v204, %v213
      %215 = vset.pattern.permute.xlu0 8
      %216 = vperm.xlu0 %215, %v133
      %v217 = vpop.permute.xlu0 %216
      %v219 = vlaneseq
      %v220 = vshrl.u32 %v219, 7
      %v221 = vsub.s32 0, %v220
      %v222 = vrot.slane %v35, %v221
      %v223 = vmul.f32 %v217, %v222
      %v224 = vadd.f32 %v214, %v223
      %225 = vset.pattern.permute.xlu0 9
      %226 = vperm.xlu0 %225, %v133
      %v227 = vpop.permute.xlu0 %226
      %v229 = vlaneseq
      %v230 = vshrl.u32 %v229, 7
      %v231 = vsub.s32 1, %v230
      %v232 = vrot.slane %v35, %v231
      %v233 = vmul.f32 %v227, %v232
      %v234 = vadd.f32 %v224, %v233
      %235 = vset.pattern.permute.xlu0 10
      %236 = vperm.xlu0 %235, %v133
      %v237 = vpop.permute.xlu0 %236
      %v239 = vlaneseq
      %v240 = vshrl.u32 %v239, 7
      %v241 = vsub.s32 2, %v240
      %v242 = vrot.slane %v35, %v241
      %v243 = vmul.f32 %v237, %v242
      %v244 = vadd.f32 %v234, %v243
      %245 = vset.pattern.permute.xlu0 11
      %246 = vperm.xlu0 %245, %v133
      %v247 = vpop.permute.xlu0 %246
      %v249 = vlaneseq
      %v250 = vshrl.u32 %v249, 7
      %v251 = vsub.s32 3, %v250
      %v252 = vrot.slane %v35, %v251
      %v253 = vmul.f32 %v247, %v252
      %v254 = vadd.f32 %v244, %v253
      %255 = vset.pattern.permute.xlu0 12
      %256 = vperm.xlu0 %255, %v133
      %v257 = vpop.permute.xlu0 %256
      %v259 = vlaneseq
      %v260 = vshrl.u32 %v259, 7
      %v261 = vsub.s32 4, %v260
      %v262 = vrot.slane %v35, %v261
      %v263 = vmul.f32 %v257, %v262
      %v264 = vadd.f32 %v254, %v263
      %265 = vset.pattern.permute.xlu0 13
      %266 = vperm.xlu0 %265, %v133
      %v267 = vpop.permute.xlu0 %266
      %v269 = vlaneseq
      %v270 = vshrl.u32 %v269, 7
      %v271 = vsub.s32 5, %v270
      %v272 = vrot.slane %v35, %v271
      %v273 = vmul.f32 %v267, %v272
      %v274 = vadd.f32 %v264, %v273
      %275 = vset.pattern.permute.xlu0 14
      %276 = vperm.xlu0 %275, %v133
      %v277 = vpop.permute.xlu0 %276
      %v279 = vlaneseq
      %v280 = vshrl.u32 %v279, 7
      %v281 = vsub.s32 6, %v280
      %v282 = vrot.slane %v35, %v281
      %v283 = vmul.f32 %v277, %v282
      %v284 = vadd.f32 %v274, %v283
      %285 = vset.pattern.permute.xlu0 15
      %286 = vperm.xlu0 %285, %v133
      %v287 = vpop.permute.xlu0 %286
      %v289 = vlaneseq
      %v290 = vshrl.u32 %v289, 7
      %v291 = vsub.s32 7, %v290
      %v292 = vrot.slane %v35, %v291
      %v293 = vmul.f32 %v287, %v292
      %v294 = vadd.f32 %v284, %v293
      %295 = vset.pattern.permute.xlu0 16
      %296 = vperm.xlu0 %295, %v133
      %v297 = vpop.permute.xlu0 %296
      %v299 = vlaneseq
      %v300 = vshrl.u32 %v299, 7
      %v301 = vsub.s32 0, %v300
      %v302 = vrot.slane %v36, %v301
      %v303 = vmul.f32 %v297, %v302
      %v304 = vadd.f32 %v294, %v303
      %305 = vset.pattern.permute.xlu0 17
      %306 = vperm.xlu0 %305, %v133
      %v307 = vpop.permute.xlu0 %306
      %v309 = vlaneseq
      %v310 = vshrl.u32 %v309, 7
      %v311 = vsub.s32 1, %v310
      %v312 = vrot.slane %v36, %v311
      %v313 = vmul.f32 %v307, %v312
      %v314 = vadd.f32 %v304, %v313
      %315 = vset.pattern.permute.xlu0 18
      %316 = vperm.xlu0 %315, %v133
      %v317 = vpop.permute.xlu0 %316
      %v319 = vlaneseq
      %v320 = vshrl.u32 %v319, 7
      %v321 = vsub.s32 2, %v320
      %v322 = vrot.slane %v36, %v321
      %v323 = vmul.f32 %v317, %v322
      %v324 = vadd.f32 %v314, %v323
      %325 = vset.pattern.permute.xlu0 19
      %326 = vperm.xlu0 %325, %v133
      %v327 = vpop.permute.xlu0 %326
      %v329 = vlaneseq
      %v330 = vshrl.u32 %v329, 7
      %v331 = vsub.s32 3, %v330
      %v332 = vrot.slane %v36, %v331
      %v333 = vmul.f32 %v327, %v332
      %v334 = vadd.f32 %v324, %v333
      %335 = vset.pattern.permute.xlu0 20
      %336 = vperm.xlu0 %335, %v133
      %v337 = vpop.permute.xlu0 %336
      %v339 = vlaneseq
      %v340 = vshrl.u32 %v339, 7
      %v341 = vsub.s32 4, %v340
      %v342 = vrot.slane %v36, %v341
      %v343 = vmul.f32 %v337, %v342
      %v344 = vadd.f32 %v334, %v343
      %345 = vset.pattern.permute.xlu0 21
      %346 = vperm.xlu0 %345, %v133
      %v347 = vpop.permute.xlu0 %346
      %v349 = vlaneseq
      %v350 = vshrl.u32 %v349, 7
      %v351 = vsub.s32 5, %v350
      %v352 = vrot.slane %v36, %v351
      %v353 = vmul.f32 %v347, %v352
      %v354 = vadd.f32 %v344, %v353
      %355 = vset.pattern.permute.xlu0 22
      %356 = vperm.xlu0 %355, %v133
      %v357 = vpop.permute.xlu0 %356
      %v359 = vlaneseq
      %v360 = vshrl.u32 %v359, 7
      %v361 = vsub.s32 6, %v360
      %v362 = vrot.slane %v36, %v361
      %v363 = vmul.f32 %v357, %v362
      %v364 = vadd.f32 %v354, %v363
      %365 = vset.pattern.permute.xlu0 23
      %366 = vperm.xlu0 %365, %v133
      %v367 = vpop.permute.xlu0 %366
      %v369 = vlaneseq
      %v370 = vshrl.u32 %v369, 7
      %v371 = vsub.s32 7, %v370
      %v372 = vrot.slane %v36, %v371
      %v373 = vmul.f32 %v367, %v372
      %v374 = vadd.f32 %v364, %v373
      %375 = vset.pattern.permute.xlu0 24
      %376 = vperm.xlu0 %375, %v133
      %v377 = vpop.permute.xlu0 %376
      %v379 = vlaneseq
      %v380 = vshrl.u32 %v379, 7
      %v381 = vsub.s32 0, %v380
      %v382 = vrot.slane %v37, %v381
      %v383 = vmul.f32 %v377, %v382
      %v384 = vadd.f32 %v374, %v383
      %385 = vset.pattern.permute.xlu0 25
      %386 = vperm.xlu0 %385, %v133
      %v387 = vpop.permute.xlu0 %386
      %v389 = vlaneseq
      %v390 = vshrl.u32 %v389, 7
      %v391 = vsub.s32 1, %v390
      %v392 = vrot.slane %v37, %v391
      %v393 = vmul.f32 %v387, %v392
      %v394 = vadd.f32 %v384, %v393
      %395 = vset.pattern.permute.xlu0 26
      %396 = vperm.xlu0 %395, %v133
      %v397 = vpop.permute.xlu0 %396
      %v399 = vlaneseq
      %v400 = vshrl.u32 %v399, 7
      %v401 = vsub.s32 2, %v400
      %v402 = vrot.slane %v37, %v401
      %v403 = vmul.f32 %v397, %v402
      %v404 = vadd.f32 %v394, %v403
      %405 = vset.pattern.permute.xlu0 27
      %406 = vperm.xlu0 %405, %v133
      %v407 = vpop.permute.xlu0 %406
      %v409 = vlaneseq
      %v410 = vshrl.u32 %v409, 7
      %v411 = vsub.s32 3, %v410
      %v412 = vrot.slane %v37, %v411
      %v413 = vmul.f32 %v407, %v412
      %v414 = vadd.f32 %v404, %v413
      %415 = vset.pattern.permute.xlu0 28
      %416 = vperm.xlu0 %415, %v133
      %v417 = vpop.permute.xlu0 %416
      %v419 = vlaneseq
      %v420 = vshrl.u32 %v419, 7
      %v421 = vsub.s32 4, %v420
      %v422 = vrot.slane %v37, %v421
      %v423 = vmul.f32 %v417, %v422
      %v424 = vadd.f32 %v414, %v423
      %425 = vset.pattern.permute.xlu0 29
      %426 = vperm.xlu0 %425, %v133
      %v427 = vpop.permute.xlu0 %426
      %v429 = vlaneseq
      %v430 = vshrl.u32 %v429, 7
      %v431 = vsub.s32 5, %v430
      %v432 = vrot.slane %v37, %v431
      %v433 = vmul.f32 %v427, %v432
      %v434 = vadd.f32 %v424, %v433
      %435 = vset.pattern.permute.xlu0 30
      %436 = vperm.xlu0 %435, %v133
      %v437 = vpop.permute.xlu0 %436
      %v439 = vlaneseq
      %v440 = vshrl.u32 %v439, 7
      %v441 = vsub.s32 6, %v440
      %v442 = vrot.slane %v37, %v441
      %v443 = vmul.f32 %v437, %v442
      %v444 = vadd.f32 %v434, %v443
      %445 = vset.pattern.permute.xlu0 31
      %446 = vperm.xlu0 %445, %v133
      %v447 = vpop.permute.xlu0 %446
      %v449 = vlaneseq
      %v450 = vshrl.u32 %v449, 7
      %v451 = vsub.s32 7, %v450
      %v452 = vrot.slane %v37, %v451
      %v453 = vmul.f32 %v447, %v452
      %v454 = vadd.f32 %v444, %v453
      %vm455 = vcmp.gt.f32.partialorder %v454, 0.0
      %v456 = vmin.f32 %v454, 0.0
      %v457 = vmul.f32 %v456, 1.442695
      %v458 = vpow.pop %v457
      %v459 = vsub.f32 %v458, 1.0
      %v460 = vsel %vm455, %v454, %v459
      %462 = vset.pattern.permute.xlu0 0
      %463 = vperm.xlu0 %462, %v460
      %v464 = vpop.permute.xlu0 %463
      %v466 = vlaneseq
      %v467 = vshrl.u32 %v466, 7
      %v468 = vsub.s32 0, %v467
      %v469 = vrot.slane %v38, %v468
      %v470 = vmul.f32 %v464, %v469
      %v471 = vadd.f32 %v61, %v470
      %472 = vset.pattern.permute.xlu0 1
      %473 = vperm.xlu0 %472, %v460
      %v474 = vpop.permute.xlu0 %473
      %v476 = vlaneseq
      %v477 = vshrl.u32 %v476, 7
      %v478 = vsub.s32 1, %v477
      %v479 = vrot.slane %v38, %v478
      %v480 = vmul.f32 %v474, %v479
      %v481 = vadd.f32 %v471, %v480
      %482 = vset.pattern.permute.xlu0 2
      %483 = vperm.xlu0 %482, %v460
      %v484 = vpop.permute.xlu0 %483
      %v486 = vlaneseq
      %v487 = vshrl.u32 %v486, 7
      %v488 = vsub.s32 2, %v487
      %v489 = vrot.slane %v38, %v488
      %v490 = vmul.f32 %v484, %v489
      %v491 = vadd.f32 %v481, %v490
      %492 = vset.pattern.permute.xlu0 3
      %493 = vperm.xlu0 %492, %v460
      %v494 = vpop.permute.xlu0 %493
      %v496 = vlaneseq
      %v497 = vshrl.u32 %v496, 7
      %v498 = vsub.s32 3, %v497
      %v499 = vrot.slane %v38, %v498
      %v500 = vmul.f32 %v494, %v499
      %v501 = vadd.f32 %v491, %v500
      %502 = vset.pattern.permute.xlu0 4
      %503 = vperm.xlu0 %502, %v460
      %v504 = vpop.permute.xlu0 %503
      %v506 = vlaneseq
      %v507 = vshrl.u32 %v506, 7
      %v508 = vsub.s32 4, %v507
      %v509 = vrot.slane %v38, %v508
      %v510 = vmul.f32 %v504, %v509
      %v511 = vadd.f32 %v501, %v510
      %512 = vset.pattern.permute.xlu0 5
      %513 = vperm.xlu0 %512, %v460
      %v514 = vpop.permute.xlu0 %513
      %v516 = vlaneseq
      %v517 = vshrl.u32 %v516, 7
      %v518 = vsub.s32 5, %v517
      %v519 = vrot.slane %v38, %v518
      %v520 = vmul.f32 %v514, %v519
      %v521 = vadd.f32 %v511, %v520
      %522 = vset.pattern.permute.xlu0 6
      %523 = vperm.xlu0 %522, %v460
      %v524 = vpop.permute.xlu0 %523
      %v526 = vlaneseq
      %v527 = vshrl.u32 %v526, 7
      %v528 = vsub.s32 6, %v527
      %v529 = vrot.slane %v38, %v528
      %v530 = vmul.f32 %v524, %v529
      %v531 = vadd.f32 %v521, %v530
      %532 = vset.pattern.permute.xlu0 7
      %533 = vperm.xlu0 %532, %v460
      %v534 = vpop.permute.xlu0 %533
      %v536 = vlaneseq
      %v537 = vshrl.u32 %v536, 7
      %v538 = vsub.s32 7, %v537
      %v539 = vrot.slane %v38, %v538
      %v540 = vmul.f32 %v534, %v539
      %v541 = vadd.f32 %v531, %v540
      %542 = vset.pattern.permute.xlu0 8
      %543 = vperm.xlu0 %542, %v460
      %v544 = vpop.permute.xlu0 %543
      %v546 = vlaneseq
      %v547 = vshrl.u32 %v546, 7
      %v548 = vsub.s32 0, %v547
      %v549 = vrot.slane %v39, %v548
      %v550 = vmul.f32 %v544, %v549
      %v551 = vadd.f32 %v541, %v550
      %552 = vset.pattern.permute.xlu0 9
      %553 = vperm.xlu0 %552, %v460
      %v554 = vpop.permute.xlu0 %553
      %v556 = vlaneseq
      %v557 = vshrl.u32 %v556, 7
      %v558 = vsub.s32 1, %v557
      %v559 = vrot.slane %v39, %v558
      %v560 = vmul.f32 %v554, %v559
      %v561 = vadd.f32 %v551, %v560
      %562 = vset.pattern.permute.xlu0 10
      %563 = vperm.xlu0 %562, %v460
      %v564 = vpop.permute.xlu0 %563
      %v566 = vlaneseq
      %v567 = vshrl.u32 %v566, 7
      %v568 = vsub.s32 2, %v567
      %v569 = vrot.slane %v39, %v568
      %v570 = vmul.f32 %v564, %v569
      %v571 = vadd.f32 %v561, %v570
      %572 = vset.pattern.permute.xlu0 11
      %573 = vperm.xlu0 %572, %v460
      %v574 = vpop.permute.xlu0 %573
      %v576 = vlaneseq
      %v577 = vshrl.u32 %v576, 7
      %v578 = vsub.s32 3, %v577
      %v579 = vrot.slane %v39, %v578
      %v580 = vmul.f32 %v574, %v579
      %v581 = vadd.f32 %v571, %v580
      %582 = vset.pattern.permute.xlu0 12
      %583 = vperm.xlu0 %582, %v460
      %v584 = vpop.permute.xlu0 %583
      %v586 = vlaneseq
      %v587 = vshrl.u32 %v586, 7
      %v588 = vsub.s32 4, %v587
      %v589 = vrot.slane %v39, %v588
      %v590 = vmul.f32 %v584, %v589
      %v591 = vadd.f32 %v581, %v590
      %592 = vset.pattern.permute.xlu0 13
      %593 = vperm.xlu0 %592, %v460
      %v594 = vpop.permute.xlu0 %593
      %v596 = vlaneseq
      %v597 = vshrl.u32 %v596, 7
      %v598 = vsub.s32 5, %v597
      %v599 = vrot.slane %v39, %v598
      %v600 = vmul.f32 %v594, %v599
      %v601 = vadd.f32 %v591, %v600
      %602 = vset.pattern.permute.xlu0 14
      %603 = vperm.xlu0 %602, %v460
      %v604 = vpop.permute.xlu0 %603
      %v606 = vlaneseq
      %v607 = vshrl.u32 %v606, 7
      %v608 = vsub.s32 6, %v607
      %v609 = vrot.slane %v39, %v608
      %v610 = vmul.f32 %v604, %v609
      %v611 = vadd.f32 %v601, %v610
      %612 = vset.pattern.permute.xlu0 15
      %613 = vperm.xlu0 %612, %v460
      %v614 = vpop.permute.xlu0 %613
      %v616 = vlaneseq
      %v617 = vshrl.u32 %v616, 7
      %v618 = vsub.s32 7, %v617
      %v619 = vrot.slane %v39, %v618
      %v620 = vmul.f32 %v614, %v619
      %v621 = vadd.f32 %v611, %v620
      %622 = vset.pattern.permute.xlu0 16
      %623 = vperm.xlu0 %622, %v460
      %v624 = vpop.permute.xlu0 %623
      %v626 = vlaneseq
      %v627 = vshrl.u32 %v626, 7
      %v628 = vsub.s32 0, %v627
      %v629 = vrot.slane %v40, %v628
      %v630 = vmul.f32 %v624, %v629
      %v631 = vadd.f32 %v621, %v630
      %632 = vset.pattern.permute.xlu0 17
      %633 = vperm.xlu0 %632, %v460
      %v634 = vpop.permute.xlu0 %633
      %v636 = vlaneseq
      %v637 = vshrl.u32 %v636, 7
      %v638 = vsub.s32 1, %v637
      %v639 = vrot.slane %v40, %v638
      %v640 = vmul.f32 %v634, %v639
      %v641 = vadd.f32 %v631, %v640
      %642 = vset.pattern.permute.xlu0 18
      %643 = vperm.xlu0 %642, %v460
      %v644 = vpop.permute.xlu0 %643
      %v646 = vlaneseq
      %v647 = vshrl.u32 %v646, 7
      %v648 = vsub.s32 2, %v647
      %v649 = vrot.slane %v40, %v648
      %v650 = vmul.f32 %v644, %v649
      %v651 = vadd.f32 %v641, %v650
      %652 = vset.pattern.permute.xlu0 19
      %653 = vperm.xlu0 %652, %v460
      %v654 = vpop.permute.xlu0 %653
      %v656 = vlaneseq
      %v657 = vshrl.u32 %v656, 7
      %v658 = vsub.s32 3, %v657
      %v659 = vrot.slane %v40, %v658
      %v660 = vmul.f32 %v654, %v659
      %v661 = vadd.f32 %v651, %v660
      %662 = vset.pattern.permute.xlu0 20
      %663 = vperm.xlu0 %662, %v460
      %v664 = vpop.permute.xlu0 %663
      %v666 = vlaneseq
      %v667 = vshrl.u32 %v666, 7
      %v668 = vsub.s32 4, %v667
      %v669 = vrot.slane %v40, %v668
      %v670 = vmul.f32 %v664, %v669
      %v671 = vadd.f32 %v661, %v670
      %672 = vset.pattern.permute.xlu0 21
      %673 = vperm.xlu0 %672, %v460
      %v674 = vpop.permute.xlu0 %673
      %v676 = vlaneseq
      %v677 = vshrl.u32 %v676, 7
      %v678 = vsub.s32 5, %v677
      %v679 = vrot.slane %v40, %v678
      %v680 = vmul.f32 %v674, %v679
      %v681 = vadd.f32 %v671, %v680
      %682 = vset.pattern.permute.xlu0 22
      %683 = vperm.xlu0 %682, %v460
      %v684 = vpop.permute.xlu0 %683
      %v686 = vlaneseq
      %v687 = vshrl.u32 %v686, 7
      %v688 = vsub.s32 6, %v687
      %v689 = vrot.slane %v40, %v688
      %v690 = vmul.f32 %v684, %v689
      %v691 = vadd.f32 %v681, %v690
      %692 = vset.pattern.permute.xlu0 23
      %693 = vperm.xlu0 %692, %v460
      %v694 = vpop.permute.xlu0 %693
      %v696 = vlaneseq
      %v697 = vshrl.u32 %v696, 7
      %v698 = vsub.s32 7, %v697
      %v699 = vrot.slane %v40, %v698
      %v700 = vmul.f32 %v694, %v699
      %v701 = vadd.f32 %v691, %v700
      %702 = vset.pattern.permute.xlu0 24
      %703 = vperm.xlu0 %702, %v460
      %v704 = vpop.permute.xlu0 %703
      %v706 = vlaneseq
      %v707 = vshrl.u32 %v706, 7
      %v708 = vsub.s32 0, %v707
      %v709 = vrot.slane %v41, %v708
      %v710 = vmul.f32 %v704, %v709
      %v711 = vadd.f32 %v701, %v710
      %712 = vset.pattern.permute.xlu0 25
      %713 = vperm.xlu0 %712, %v460
      %v714 = vpop.permute.xlu0 %713
      %v716 = vlaneseq
      %v717 = vshrl.u32 %v716, 7
      %v718 = vsub.s32 1, %v717
      %v719 = vrot.slane %v41, %v718
      %v720 = vmul.f32 %v714, %v719
      %v721 = vadd.f32 %v711, %v720
      %722 = vset.pattern.permute.xlu0 26
      %723 = vperm.xlu0 %722, %v460
      %v724 = vpop.permute.xlu0 %723
      %v726 = vlaneseq
      %v727 = vshrl.u32 %v726, 7
      %v728 = vsub.s32 2, %v727
      %v729 = vrot.slane %v41, %v728
      %v730 = vmul.f32 %v724, %v729
      %v731 = vadd.f32 %v721, %v730
      %732 = vset.pattern.permute.xlu0 27
      %733 = vperm.xlu0 %732, %v460
      %v734 = vpop.permute.xlu0 %733
      %v736 = vlaneseq
      %v737 = vshrl.u32 %v736, 7
      %v738 = vsub.s32 3, %v737
      %v739 = vrot.slane %v41, %v738
      %v740 = vmul.f32 %v734, %v739
      %v741 = vadd.f32 %v731, %v740
      %742 = vset.pattern.permute.xlu0 28
      %743 = vperm.xlu0 %742, %v460
      %v744 = vpop.permute.xlu0 %743
      %v746 = vlaneseq
      %v747 = vshrl.u32 %v746, 7
      %v748 = vsub.s32 4, %v747
      %v749 = vrot.slane %v41, %v748
      %v750 = vmul.f32 %v744, %v749
      %v751 = vadd.f32 %v741, %v750
      %752 = vset.pattern.permute.xlu0 29
      %753 = vperm.xlu0 %752, %v460
      %v754 = vpop.permute.xlu0 %753
      %v756 = vlaneseq
      %v757 = vshrl.u32 %v756, 7
      %v758 = vsub.s32 5, %v757
      %v759 = vrot.slane %v41, %v758
      %v760 = vmul.f32 %v754, %v759
      %v761 = vadd.f32 %v751, %v760
      %762 = vset.pattern.permute.xlu0 30
      %763 = vperm.xlu0 %762, %v460
      %v764 = vpop.permute.xlu0 %763
      %v766 = vlaneseq
      %v767 = vshrl.u32 %v766, 7
      %v768 = vsub.s32 6, %v767
      %v769 = vrot.slane %v41, %v768
      %v770 = vmul.f32 %v764, %v769
      %v771 = vadd.f32 %v761, %v770
      %772 = vset.pattern.permute.xlu0 31
      %773 = vperm.xlu0 %772, %v460
      %v774 = vpop.permute.xlu0 %773
      %v776 = vlaneseq
      %v777 = vshrl.u32 %v776, 7
      %v778 = vsub.s32 7, %v777
      %v779 = vrot.slane %v41, %v778
      %v780 = vmul.f32 %v774, %v779
      %v781 = vadd.f32 %v771, %v780
      %s782 = smul.f32 %s79, 0.5
      %v783 = vstv %s782
      %v784 = vmul.f32 %v783, %v781
      %v785 = vadd.f32 %v86, %v784
      %787 = vset.pattern.permute.xlu0 0
      %788 = vperm.xlu0 %787, %v785
      %v789 = vpop.permute.xlu0 %788
      %v791 = vmul.f32 %v789, %v95
      %v792 = vadd.f32 %v47, %v791
      %793 = vset.pattern.permute.xlu0 1
      %794 = vperm.xlu0 %793, %v785
      %v795 = vpop.permute.xlu0 %794
      %v797 = vmul.f32 %v795, %v105
      %v798 = vadd.f32 %v792, %v797
      %799 = vset.pattern.permute.xlu0 2
      %800 = vperm.xlu0 %799, %v785
      %v801 = vpop.permute.xlu0 %800
      %v803 = vmul.f32 %v801, %v115
      %v804 = vadd.f32 %v798, %v803
      %805 = vset.pattern.permute.xlu0 3
      %806 = vperm.xlu0 %805, %v785
      %v807 = vpop.permute.xlu0 %806
      %v809 = vmul.f32 %v807, %v125
      %v810 = vadd.f32 %v804, %v809
      %vm811 = vcmp.gt.f32.partialorder %v810, 0.0
      %v812 = vmin.f32 %v810, 0.0
      %v813 = vmul.f32 %v812, 1.442695
      %v814 = vpow.pop %v813
      %v815 = vsub.f32 %v814, 1.0
      %v816 = vsel %vm811, %v810, %v815
      %818 = vset.pattern.permute.xlu0 0
      %819 = vperm.xlu0 %818, %v816
      %v820 = vpop.permute.xlu0 %819
      %v822 = vmul.f32 %v820, %v142
      %v823 = vadd.f32 %v54, %v822
      %824 = vset.pattern.permute.xlu0 1
      %825 = vperm.xlu0 %824, %v816
      %v826 = vpop.permute.xlu0 %825
      %v828 = vmul.f32 %v826, %v152
      %v829 = vadd.f32 %v823, %v828
      %830 = vset.pattern.permute.xlu0 2
      %831 = vperm.xlu0 %830, %v816
      %v832 = vpop.permute.xlu0 %831
      %v834 = vmul.f32 %v832, %v162
      %v835 = vadd.f32 %v829, %v834
      %836 = vset.pattern.permute.xlu0 3
      %837 = vperm.xlu0 %836, %v816
      %v838 = vpop.permute.xlu0 %837
      %v840 = vmul.f32 %v838, %v172
      %v841 = vadd.f32 %v835, %v840
      %842 = vset.pattern.permute.xlu0 4
      %843 = vperm.xlu0 %842, %v816
      %v844 = vpop.permute.xlu0 %843
      %v846 = vmul.f32 %v844, %v182
      %v847 = vadd.f32 %v841, %v846
      %848 = vset.pattern.permute.xlu0 5
      %849 = vperm.xlu0 %848, %v816
      %v850 = vpop.permute.xlu0 %849
      %v852 = vmul.f32 %v850, %v192
      %v853 = vadd.f32 %v847, %v852
      %854 = vset.pattern.permute.xlu0 6
      %855 = vperm.xlu0 %854, %v816
      %v856 = vpop.permute.xlu0 %855
      %v858 = vmul.f32 %v856, %v202
      %v859 = vadd.f32 %v853, %v858
      %860 = vset.pattern.permute.xlu0 7
      %861 = vperm.xlu0 %860, %v816
      %v862 = vpop.permute.xlu0 %861
      %v864 = vmul.f32 %v862, %v212
      %v865 = vadd.f32 %v859, %v864
      %866 = vset.pattern.permute.xlu0 8
      %867 = vperm.xlu0 %866, %v816
      %v868 = vpop.permute.xlu0 %867
      %v870 = vmul.f32 %v868, %v222
      %v871 = vadd.f32 %v865, %v870
      %872 = vset.pattern.permute.xlu0 9
      %873 = vperm.xlu0 %872, %v816
      %v874 = vpop.permute.xlu0 %873
      %v876 = vmul.f32 %v874, %v232
      %v877 = vadd.f32 %v871, %v876
      %878 = vset.pattern.permute.xlu0 10
      %879 = vperm.xlu0 %878, %v816
      %v880 = vpop.permute.xlu0 %879
      %v882 = vmul.f32 %v880, %v242
      %v883 = vadd.f32 %v877, %v882
      %884 = vset.pattern.permute.xlu0 11
      %885 = vperm.xlu0 %884, %v816
      %v886 = vpop.permute.xlu0 %885
      %v888 = vmul.f32 %v886, %v252
      %v889 = vadd.f32 %v883, %v888
      %890 = vset.pattern.permute.xlu0 12
      %891 = vperm.xlu0 %890, %v816
      %v892 = vpop.permute.xlu0 %891
      %v894 = vmul.f32 %v892, %v262
      %v895 = vadd.f32 %v889, %v894
      %896 = vset.pattern.permute.xlu0 13
      %897 = vperm.xlu0 %896, %v816
      %v898 = vpop.permute.xlu0 %897
      %v900 = vmul.f32 %v898, %v272
      %v901 = vadd.f32 %v895, %v900
      %902 = vset.pattern.permute.xlu0 14
      %903 = vperm.xlu0 %902, %v816
      %v904 = vpop.permute.xlu0 %903
      %v906 = vmul.f32 %v904, %v282
      %v907 = vadd.f32 %v901, %v906
      %908 = vset.pattern.permute.xlu0 15
      %909 = vperm.xlu0 %908, %v816
      %v910 = vpop.permute.xlu0 %909
      %v912 = vmul.f32 %v910, %v292
      %v913 = vadd.f32 %v907, %v912
      %914 = vset.pattern.permute.xlu0 16
      %915 = vperm.xlu0 %914, %v816
      %v916 = vpop.permute.xlu0 %915
      %v918 = vmul.f32 %v916, %v302
      %v919 = vadd.f32 %v913, %v918
      %920 = vset.pattern.permute.xlu0 17
      %921 = vperm.xlu0 %920, %v816
      %v922 = vpop.permute.xlu0 %921
      %v924 = vmul.f32 %v922, %v312
      %v925 = vadd.f32 %v919, %v924
      %926 = vset.pattern.permute.xlu0 18
      %927 = vperm.xlu0 %926, %v816
      %v928 = vpop.permute.xlu0 %927
      %v930 = vmul.f32 %v928, %v322
      %v931 = vadd.f32 %v925, %v930
      %932 = vset.pattern.permute.xlu0 19
      %933 = vperm.xlu0 %932, %v816
      %v934 = vpop.permute.xlu0 %933
      %v936 = vmul.f32 %v934, %v332
      %v937 = vadd.f32 %v931, %v936
      %938 = vset.pattern.permute.xlu0 20
      %939 = vperm.xlu0 %938, %v816
      %v940 = vpop.permute.xlu0 %939
      %v942 = vmul.f32 %v940, %v342
      %v943 = vadd.f32 %v937, %v942
      %944 = vset.pattern.permute.xlu0 21
      %945 = vperm.xlu0 %944, %v816
      %v946 = vpop.permute.xlu0 %945
      %v948 = vmul.f32 %v946, %v352
      %v949 = vadd.f32 %v943, %v948
      %950 = vset.pattern.permute.xlu0 22
      %951 = vperm.xlu0 %950, %v816
      %v952 = vpop.permute.xlu0 %951
      %v954 = vmul.f32 %v952, %v362
      %v955 = vadd.f32 %v949, %v954
      %956 = vset.pattern.permute.xlu0 23
      %957 = vperm.xlu0 %956, %v816
      %v958 = vpop.permute.xlu0 %957
      %v960 = vmul.f32 %v958, %v372
      %v961 = vadd.f32 %v955, %v960
      %962 = vset.pattern.permute.xlu0 24
      %963 = vperm.xlu0 %962, %v816
      %v964 = vpop.permute.xlu0 %963
      %v966 = vmul.f32 %v964, %v382
      %v967 = vadd.f32 %v961, %v966
      %968 = vset.pattern.permute.xlu0 25
      %969 = vperm.xlu0 %968, %v816
      %v970 = vpop.permute.xlu0 %969
      %v972 = vmul.f32 %v970, %v392
      %v973 = vadd.f32 %v967, %v972
      %974 = vset.pattern.permute.xlu0 26
      %975 = vperm.xlu0 %974, %v816
      %v976 = vpop.permute.xlu0 %975
      %v978 = vmul.f32 %v976, %v402
      %v979 = vadd.f32 %v973, %v978
      %980 = vset.pattern.permute.xlu0 27
      %981 = vperm.xlu0 %980, %v816
      %v982 = vpop.permute.xlu0 %981
      %v984 = vmul.f32 %v982, %v412
      %v985 = vadd.f32 %v979, %v984
      %986 = vset.pattern.permute.xlu0 28
      %987 = vperm.xlu0 %986, %v816
      %v988 = vpop.permute.xlu0 %987
      %v990 = vmul.f32 %v988, %v422
      %v991 = vadd.f32 %v985, %v990
      %992 = vset.pattern.permute.xlu0 29
      %993 = vperm.xlu0 %992, %v816
      %v994 = vpop.permute.xlu0 %993
      %v996 = vmul.f32 %v994, %v432
      %v997 = vadd.f32 %v991, %v996
      %998 = vset.pattern.permute.xlu0 30
      %999 = vperm.xlu0 %998, %v816
      %v1000 = vpop.permute.xlu0 %999
      %v1002 = vmul.f32 %v1000, %v442
      %v1003 = vadd.f32 %v997, %v1002
      %1004 = vset.pattern.permute.xlu0 31
      %1005 = vperm.xlu0 %1004, %v816
      %v1006 = vpop.permute.xlu0 %1005
      %v1008 = vmul.f32 %v1006, %v452
      %v1009 = vadd.f32 %v1003, %v1008
      %vm1010 = vcmp.gt.f32.partialorder %v1009, 0.0
      %v1011 = vmin.f32 %v1009, 0.0
      %v1012 = vmul.f32 %v1011, 1.442695
      %v1013 = vpow.pop %v1012
      %v1014 = vsub.f32 %v1013, 1.0
      %v1015 = vsel %vm1010, %v1009, %v1014
      %1017 = vset.pattern.permute.xlu0 0
      %1018 = vperm.xlu0 %1017, %v1015
      %v1019 = vpop.permute.xlu0 %1018
      %v1021 = vmul.f32 %v1019, %v469
      %v1022 = vadd.f32 %v61, %v1021
      %1023 = vset.pattern.permute.xlu0 1
      %1024 = vperm.xlu0 %1023, %v1015
      %v1025 = vpop.permute.xlu0 %1024
      %v1027 = vmul.f32 %v1025, %v479
      %v1028 = vadd.f32 %v1022, %v1027
      %1029 = vset.pattern.permute.xlu0 2
      %1030 = vperm.xlu0 %1029, %v1015
      %v1031 = vpop.permute.xlu0 %1030
      %v1033 = vmul.f32 %v1031, %v489
      %v1034 = vadd.f32 %v1028, %v1033
      %1035 = vset.pattern.permute.xlu0 3
      %1036 = vperm.xlu0 %1035, %v1015
      %v1037 = vpop.permute.xlu0 %1036
      %v1039 = vmul.f32 %v1037, %v499
      %v1040 = vadd.f32 %v1034, %v1039
      %1041 = vset.pattern.permute.xlu0 4
      %1042 = vperm.xlu0 %1041, %v1015
      %v1043 = vpop.permute.xlu0 %1042
      %v1045 = vmul.f32 %v1043, %v509
      %v1046 = vadd.f32 %v1040, %v1045
      %1047 = vset.pattern.permute.xlu0 5
      %1048 = vperm.xlu0 %1047, %v1015
      %v1049 = vpop.permute.xlu0 %1048
      %v1051 = vmul.f32 %v1049, %v519
      %v1052 = vadd.f32 %v1046, %v1051
      %1053 = vset.pattern.permute.xlu0 6
      %1054 = vperm.xlu0 %1053, %v1015
      %v1055 = vpop.permute.xlu0 %1054
      %v1057 = vmul.f32 %v1055, %v529
      %v1058 = vadd.f32 %v1052, %v1057
      %1059 = vset.pattern.permute.xlu0 7
      %1060 = vperm.xlu0 %1059, %v1015
      %v1061 = vpop.permute.xlu0 %1060
      %v1063 = vmul.f32 %v1061, %v539
      %v1064 = vadd.f32 %v1058, %v1063
      %1065 = vset.pattern.permute.xlu0 8
      %1066 = vperm.xlu0 %1065, %v1015
      %v1067 = vpop.permute.xlu0 %1066
      %v1069 = vmul.f32 %v1067, %v549
      %v1070 = vadd.f32 %v1064, %v1069
      %1071 = vset.pattern.permute.xlu0 9
      %1072 = vperm.xlu0 %1071, %v1015
      %v1073 = vpop.permute.xlu0 %1072
      %v1075 = vmul.f32 %v1073, %v559
      %v1076 = vadd.f32 %v1070, %v1075
      %1077 = vset.pattern.permute.xlu0 10
      %1078 = vperm.xlu0 %1077, %v1015
      %v1079 = vpop.permute.xlu0 %1078
      %v1081 = vmul.f32 %v1079, %v569
      %v1082 = vadd.f32 %v1076, %v1081
      %1083 = vset.pattern.permute.xlu0 11
      %1084 = vperm.xlu0 %1083, %v1015
      %v1085 = vpop.permute.xlu0 %1084
      %v1087 = vmul.f32 %v1085, %v579
      %v1088 = vadd.f32 %v1082, %v1087
      %1089 = vset.pattern.permute.xlu0 12
      %1090 = vperm.xlu0 %1089, %v1015
      %v1091 = vpop.permute.xlu0 %1090
      %v1093 = vmul.f32 %v1091, %v589
      %v1094 = vadd.f32 %v1088, %v1093
      %1095 = vset.pattern.permute.xlu0 13
      %1096 = vperm.xlu0 %1095, %v1015
      %v1097 = vpop.permute.xlu0 %1096
      %v1099 = vmul.f32 %v1097, %v599
      %v1100 = vadd.f32 %v1094, %v1099
      %1101 = vset.pattern.permute.xlu0 14
      %1102 = vperm.xlu0 %1101, %v1015
      %v1103 = vpop.permute.xlu0 %1102
      %v1105 = vmul.f32 %v1103, %v609
      %v1106 = vadd.f32 %v1100, %v1105
      %1107 = vset.pattern.permute.xlu0 15
      %1108 = vperm.xlu0 %1107, %v1015
      %v1109 = vpop.permute.xlu0 %1108
      %v1111 = vmul.f32 %v1109, %v619
      %v1112 = vadd.f32 %v1106, %v1111
      %1113 = vset.pattern.permute.xlu0 16
      %1114 = vperm.xlu0 %1113, %v1015
      %v1115 = vpop.permute.xlu0 %1114
      %v1117 = vmul.f32 %v1115, %v629
      %v1118 = vadd.f32 %v1112, %v1117
      %1119 = vset.pattern.permute.xlu0 17
      %1120 = vperm.xlu0 %1119, %v1015
      %v1121 = vpop.permute.xlu0 %1120
      %v1123 = vmul.f32 %v1121, %v639
      %v1124 = vadd.f32 %v1118, %v1123
      %1125 = vset.pattern.permute.xlu0 18
      %1126 = vperm.xlu0 %1125, %v1015
      %v1127 = vpop.permute.xlu0 %1126
      %v1129 = vmul.f32 %v1127, %v649
      %v1130 = vadd.f32 %v1124, %v1129
      %1131 = vset.pattern.permute.xlu0 19
      %1132 = vperm.xlu0 %1131, %v1015
      %v1133 = vpop.permute.xlu0 %1132
      %v1135 = vmul.f32 %v1133, %v659
      %v1136 = vadd.f32 %v1130, %v1135
      %1137 = vset.pattern.permute.xlu0 20
      %1138 = vperm.xlu0 %1137, %v1015
      %v1139 = vpop.permute.xlu0 %1138
      %v1141 = vmul.f32 %v1139, %v669
      %v1142 = vadd.f32 %v1136, %v1141
      %1143 = vset.pattern.permute.xlu0 21
      %1144 = vperm.xlu0 %1143, %v1015
      %v1145 = vpop.permute.xlu0 %1144
      %v1147 = vmul.f32 %v1145, %v679
      %v1148 = vadd.f32 %v1142, %v1147
      %1149 = vset.pattern.permute.xlu0 22
      %1150 = vperm.xlu0 %1149, %v1015
      %v1151 = vpop.permute.xlu0 %1150
      %v1153 = vmul.f32 %v1151, %v689
      %v1154 = vadd.f32 %v1148, %v1153
      %1155 = vset.pattern.permute.xlu0 23
      %1156 = vperm.xlu0 %1155, %v1015
      %v1157 = vpop.permute.xlu0 %1156
      %v1159 = vmul.f32 %v1157, %v699
      %v1160 = vadd.f32 %v1154, %v1159
      %1161 = vset.pattern.permute.xlu0 24
      %1162 = vperm.xlu0 %1161, %v1015
      %v1163 = vpop.permute.xlu0 %1162
      %v1165 = vmul.f32 %v1163, %v709
      %v1166 = vadd.f32 %v1160, %v1165
      %1167 = vset.pattern.permute.xlu0 25
      %1168 = vperm.xlu0 %1167, %v1015
      %v1169 = vpop.permute.xlu0 %1168
      %v1171 = vmul.f32 %v1169, %v719
      %v1172 = vadd.f32 %v1166, %v1171
      %1173 = vset.pattern.permute.xlu0 26
      %1174 = vperm.xlu0 %1173, %v1015
      %v1175 = vpop.permute.xlu0 %1174
      %v1177 = vmul.f32 %v1175, %v729
      %v1178 = vadd.f32 %v1172, %v1177
      %1179 = vset.pattern.permute.xlu0 27
      %1180 = vperm.xlu0 %1179, %v1015
      %v1181 = vpop.permute.xlu0 %1180
      %v1183 = vmul.f32 %v1181, %v739
      %v1184 = vadd.f32 %v1178, %v1183
      %1185 = vset.pattern.permute.xlu0 28
      %1186 = vperm.xlu0 %1185, %v1015
      %v1187 = vpop.permute.xlu0 %1186
      %v1189 = vmul.f32 %v1187, %v749
      %v1190 = vadd.f32 %v1184, %v1189
      %1191 = vset.pattern.permute.xlu0 29
      %1192 = vperm.xlu0 %1191, %v1015
      %v1193 = vpop.permute.xlu0 %1192
      %v1195 = vmul.f32 %v1193, %v759
      %v1196 = vadd.f32 %v1190, %v1195
      %1197 = vset.pattern.permute.xlu0 30
      %1198 = vperm.xlu0 %1197, %v1015
      %v1199 = vpop.permute.xlu0 %1198
      %v1201 = vmul.f32 %v1199, %v769
      %v1202 = vadd.f32 %v1196, %v1201
      %1203 = vset.pattern.permute.xlu0 31
      %1204 = vperm.xlu0 %1203, %v1015
      %v1205 = vpop.permute.xlu0 %1204
      %v1207 = vmul.f32 %v1205, %v779
      %v1208 = vadd.f32 %v1202, %v1207
      %v1209 = vmul.f32 %v783, %v1208
      %v1210 = vadd.f32 %v86, %v1209
      %1212 = vset.pattern.permute.xlu0 0
      %1213 = vperm.xlu0 %1212, %v1210
      %v1214 = vpop.permute.xlu0 %1213
      %v1216 = vmul.f32 %v1214, %v95
      %v1217 = vadd.f32 %v47, %v1216
      %1218 = vset.pattern.permute.xlu0 1
      %1219 = vperm.xlu0 %1218, %v1210
      %v1220 = vpop.permute.xlu0 %1219
      %v1222 = vmul.f32 %v1220, %v105
      %v1223 = vadd.f32 %v1217, %v1222
      %1224 = vset.pattern.permute.xlu0 2
      %1225 = vperm.xlu0 %1224, %v1210
      %v1226 = vpop.permute.xlu0 %1225
      %v1228 = vmul.f32 %v1226, %v115
      %v1229 = vadd.f32 %v1223, %v1228
      %1230 = vset.pattern.permute.xlu0 3
      %1231 = vperm.xlu0 %1230, %v1210
      %v1232 = vpop.permute.xlu0 %1231
      %v1234 = vmul.f32 %v1232, %v125
      %v1235 = vadd.f32 %v1229, %v1234
      %vm1236 = vcmp.gt.f32.partialorder %v1235, 0.0
      %v1237 = vmin.f32 %v1235, 0.0
      %v1238 = vmul.f32 %v1237, 1.442695
      %v1239 = vpow.pop %v1238
      %v1240 = vsub.f32 %v1239, 1.0
      %v1241 = vsel %vm1236, %v1235, %v1240
      %1243 = vset.pattern.permute.xlu0 0
      %1244 = vperm.xlu0 %1243, %v1241
      %v1245 = vpop.permute.xlu0 %1244
      %v1247 = vmul.f32 %v1245, %v142
      %v1248 = vadd.f32 %v54, %v1247
      %1249 = vset.pattern.permute.xlu0 1
      %1250 = vperm.xlu0 %1249, %v1241
      %v1251 = vpop.permute.xlu0 %1250
      %v1253 = vmul.f32 %v1251, %v152
      %v1254 = vadd.f32 %v1248, %v1253
      %1255 = vset.pattern.permute.xlu0 2
      %1256 = vperm.xlu0 %1255, %v1241
      %v1257 = vpop.permute.xlu0 %1256
      %v1259 = vmul.f32 %v1257, %v162
      %v1260 = vadd.f32 %v1254, %v1259
      %1261 = vset.pattern.permute.xlu0 3
      %1262 = vperm.xlu0 %1261, %v1241
      %v1263 = vpop.permute.xlu0 %1262
      %v1265 = vmul.f32 %v1263, %v172
      %v1266 = vadd.f32 %v1260, %v1265
      %1267 = vset.pattern.permute.xlu0 4
      %1268 = vperm.xlu0 %1267, %v1241
      %v1269 = vpop.permute.xlu0 %1268
      %v1271 = vmul.f32 %v1269, %v182
      %v1272 = vadd.f32 %v1266, %v1271
      %1273 = vset.pattern.permute.xlu0 5
      %1274 = vperm.xlu0 %1273, %v1241
      %v1275 = vpop.permute.xlu0 %1274
      %v1277 = vmul.f32 %v1275, %v192
      %v1278 = vadd.f32 %v1272, %v1277
      %1279 = vset.pattern.permute.xlu0 6
      %1280 = vperm.xlu0 %1279, %v1241
      %v1281 = vpop.permute.xlu0 %1280
      %v1283 = vmul.f32 %v1281, %v202
      %v1284 = vadd.f32 %v1278, %v1283
      %1285 = vset.pattern.permute.xlu0 7
      %1286 = vperm.xlu0 %1285, %v1241
      %v1287 = vpop.permute.xlu0 %1286
      %v1289 = vmul.f32 %v1287, %v212
      %v1290 = vadd.f32 %v1284, %v1289
      %1291 = vset.pattern.permute.xlu0 8
      %1292 = vperm.xlu0 %1291, %v1241
      %v1293 = vpop.permute.xlu0 %1292
      %v1295 = vmul.f32 %v1293, %v222
      %v1296 = vadd.f32 %v1290, %v1295
      %1297 = vset.pattern.permute.xlu0 9
      %1298 = vperm.xlu0 %1297, %v1241
      %v1299 = vpop.permute.xlu0 %1298
      %v1301 = vmul.f32 %v1299, %v232
      %v1302 = vadd.f32 %v1296, %v1301
      %1303 = vset.pattern.permute.xlu0 10
      %1304 = vperm.xlu0 %1303, %v1241
      %v1305 = vpop.permute.xlu0 %1304
      %v1307 = vmul.f32 %v1305, %v242
      %v1308 = vadd.f32 %v1302, %v1307
      %1309 = vset.pattern.permute.xlu0 11
      %1310 = vperm.xlu0 %1309, %v1241
      %v1311 = vpop.permute.xlu0 %1310
      %v1313 = vmul.f32 %v1311, %v252
      %v1314 = vadd.f32 %v1308, %v1313
      %1315 = vset.pattern.permute.xlu0 12
      %1316 = vperm.xlu0 %1315, %v1241
      %v1317 = vpop.permute.xlu0 %1316
      %v1319 = vmul.f32 %v1317, %v262
      %v1320 = vadd.f32 %v1314, %v1319
      %1321 = vset.pattern.permute.xlu0 13
      %1322 = vperm.xlu0 %1321, %v1241
      %v1323 = vpop.permute.xlu0 %1322
      %v1325 = vmul.f32 %v1323, %v272
      %v1326 = vadd.f32 %v1320, %v1325
      %1327 = vset.pattern.permute.xlu0 14
      %1328 = vperm.xlu0 %1327, %v1241
      %v1329 = vpop.permute.xlu0 %1328
      %v1331 = vmul.f32 %v1329, %v282
      %v1332 = vadd.f32 %v1326, %v1331
      %1333 = vset.pattern.permute.xlu0 15
      %1334 = vperm.xlu0 %1333, %v1241
      %v1335 = vpop.permute.xlu0 %1334
      %v1337 = vmul.f32 %v1335, %v292
      %v1338 = vadd.f32 %v1332, %v1337
      %1339 = vset.pattern.permute.xlu0 16
      %1340 = vperm.xlu0 %1339, %v1241
      %v1341 = vpop.permute.xlu0 %1340
      %v1343 = vmul.f32 %v1341, %v302
      %v1344 = vadd.f32 %v1338, %v1343
      %1345 = vset.pattern.permute.xlu0 17
      %1346 = vperm.xlu0 %1345, %v1241
      %v1347 = vpop.permute.xlu0 %1346
      %v1349 = vmul.f32 %v1347, %v312
      %v1350 = vadd.f32 %v1344, %v1349
      %1351 = vset.pattern.permute.xlu0 18
      %1352 = vperm.xlu0 %1351, %v1241
      %v1353 = vpop.permute.xlu0 %1352
      %v1355 = vmul.f32 %v1353, %v322
      %v1356 = vadd.f32 %v1350, %v1355
      %1357 = vset.pattern.permute.xlu0 19
      %1358 = vperm.xlu0 %1357, %v1241
      %v1359 = vpop.permute.xlu0 %1358
      %v1361 = vmul.f32 %v1359, %v332
      %v1362 = vadd.f32 %v1356, %v1361
      %1363 = vset.pattern.permute.xlu0 20
      %1364 = vperm.xlu0 %1363, %v1241
      %v1365 = vpop.permute.xlu0 %1364
      %v1367 = vmul.f32 %v1365, %v342
      %v1368 = vadd.f32 %v1362, %v1367
      %1369 = vset.pattern.permute.xlu0 21
      %1370 = vperm.xlu0 %1369, %v1241
      %v1371 = vpop.permute.xlu0 %1370
      %v1373 = vmul.f32 %v1371, %v352
      %v1374 = vadd.f32 %v1368, %v1373
      %1375 = vset.pattern.permute.xlu0 22
      %1376 = vperm.xlu0 %1375, %v1241
      %v1377 = vpop.permute.xlu0 %1376
      %v1379 = vmul.f32 %v1377, %v362
      %v1380 = vadd.f32 %v1374, %v1379
      %1381 = vset.pattern.permute.xlu0 23
      %1382 = vperm.xlu0 %1381, %v1241
      %v1383 = vpop.permute.xlu0 %1382
      %v1385 = vmul.f32 %v1383, %v372
      %v1386 = vadd.f32 %v1380, %v1385
      %1387 = vset.pattern.permute.xlu0 24
      %1388 = vperm.xlu0 %1387, %v1241
      %v1389 = vpop.permute.xlu0 %1388
      %v1391 = vmul.f32 %v1389, %v382
      %v1392 = vadd.f32 %v1386, %v1391
      %1393 = vset.pattern.permute.xlu0 25
      %1394 = vperm.xlu0 %1393, %v1241
      %v1395 = vpop.permute.xlu0 %1394
      %v1397 = vmul.f32 %v1395, %v392
      %v1398 = vadd.f32 %v1392, %v1397
      %1399 = vset.pattern.permute.xlu0 26
      %1400 = vperm.xlu0 %1399, %v1241
      %v1401 = vpop.permute.xlu0 %1400
      %v1403 = vmul.f32 %v1401, %v402
      %v1404 = vadd.f32 %v1398, %v1403
      %1405 = vset.pattern.permute.xlu0 27
      %1406 = vperm.xlu0 %1405, %v1241
      %v1407 = vpop.permute.xlu0 %1406
      %v1409 = vmul.f32 %v1407, %v412
      %v1410 = vadd.f32 %v1404, %v1409
      %1411 = vset.pattern.permute.xlu0 28
      %1412 = vperm.xlu0 %1411, %v1241
      %v1413 = vpop.permute.xlu0 %1412
      %v1415 = vmul.f32 %v1413, %v422
      %v1416 = vadd.f32 %v1410, %v1415
      %1417 = vset.pattern.permute.xlu0 29
      %1418 = vperm.xlu0 %1417, %v1241
      %v1419 = vpop.permute.xlu0 %1418
      %v1421 = vmul.f32 %v1419, %v432
      %v1422 = vadd.f32 %v1416, %v1421
      %1423 = vset.pattern.permute.xlu0 30
      %1424 = vperm.xlu0 %1423, %v1241
      %v1425 = vpop.permute.xlu0 %1424
      %v1427 = vmul.f32 %v1425, %v442
      %v1428 = vadd.f32 %v1422, %v1427
      %1429 = vset.pattern.permute.xlu0 31
      %1430 = vperm.xlu0 %1429, %v1241
      %v1431 = vpop.permute.xlu0 %1430
      %v1433 = vmul.f32 %v1431, %v452
      %v1434 = vadd.f32 %v1428, %v1433
      %vm1435 = vcmp.gt.f32.partialorder %v1434, 0.0
      %v1436 = vmin.f32 %v1434, 0.0
      %v1437 = vmul.f32 %v1436, 1.442695
      %v1438 = vpow.pop %v1437
      %v1439 = vsub.f32 %v1438, 1.0
      %v1440 = vsel %vm1435, %v1434, %v1439
      %1442 = vset.pattern.permute.xlu0 0
      %1443 = vperm.xlu0 %1442, %v1440
      %v1444 = vpop.permute.xlu0 %1443
      %v1446 = vmul.f32 %v1444, %v469
      %v1447 = vadd.f32 %v61, %v1446
      %1448 = vset.pattern.permute.xlu0 1
      %1449 = vperm.xlu0 %1448, %v1440
      %v1450 = vpop.permute.xlu0 %1449
      %v1452 = vmul.f32 %v1450, %v479
      %v1453 = vadd.f32 %v1447, %v1452
      %1454 = vset.pattern.permute.xlu0 2
      %1455 = vperm.xlu0 %1454, %v1440
      %v1456 = vpop.permute.xlu0 %1455
      %v1458 = vmul.f32 %v1456, %v489
      %v1459 = vadd.f32 %v1453, %v1458
      %1460 = vset.pattern.permute.xlu0 3
      %1461 = vperm.xlu0 %1460, %v1440
      %v1462 = vpop.permute.xlu0 %1461
      %v1464 = vmul.f32 %v1462, %v499
      %v1465 = vadd.f32 %v1459, %v1464
      %1466 = vset.pattern.permute.xlu0 4
      %1467 = vperm.xlu0 %1466, %v1440
      %v1468 = vpop.permute.xlu0 %1467
      %v1470 = vmul.f32 %v1468, %v509
      %v1471 = vadd.f32 %v1465, %v1470
      %1472 = vset.pattern.permute.xlu0 5
      %1473 = vperm.xlu0 %1472, %v1440
      %v1474 = vpop.permute.xlu0 %1473
      %v1476 = vmul.f32 %v1474, %v519
      %v1477 = vadd.f32 %v1471, %v1476
      %1478 = vset.pattern.permute.xlu0 6
      %1479 = vperm.xlu0 %1478, %v1440
      %v1480 = vpop.permute.xlu0 %1479
      %v1482 = vmul.f32 %v1480, %v529
      %v1483 = vadd.f32 %v1477, %v1482
      %1484 = vset.pattern.permute.xlu0 7
      %1485 = vperm.xlu0 %1484, %v1440
      %v1486 = vpop.permute.xlu0 %1485
      %v1488 = vmul.f32 %v1486, %v539
      %v1489 = vadd.f32 %v1483, %v1488
      %1490 = vset.pattern.permute.xlu0 8
      %1491 = vperm.xlu0 %1490, %v1440
      %v1492 = vpop.permute.xlu0 %1491
      %v1494 = vmul.f32 %v1492, %v549
      %v1495 = vadd.f32 %v1489, %v1494
      %1496 = vset.pattern.permute.xlu0 9
      %1497 = vperm.xlu0 %1496, %v1440
      %v1498 = vpop.permute.xlu0 %1497
      %v1500 = vmul.f32 %v1498, %v559
      %v1501 = vadd.f32 %v1495, %v1500
      %1502 = vset.pattern.permute.xlu0 10
      %1503 = vperm.xlu0 %1502, %v1440
      %v1504 = vpop.permute.xlu0 %1503
      %v1506 = vmul.f32 %v1504, %v569
      %v1507 = vadd.f32 %v1501, %v1506
      %1508 = vset.pattern.permute.xlu0 11
      %1509 = vperm.xlu0 %1508, %v1440
      %v1510 = vpop.permute.xlu0 %1509
      %v1512 = vmul.f32 %v1510, %v579
      %v1513 = vadd.f32 %v1507, %v1512
      %1514 = vset.pattern.permute.xlu0 12
      %1515 = vperm.xlu0 %1514, %v1440
      %v1516 = vpop.permute.xlu0 %1515
      %v1518 = vmul.f32 %v1516, %v589
      %v1519 = vadd.f32 %v1513, %v1518
      %1520 = vset.pattern.permute.xlu0 13
      %1521 = vperm.xlu0 %1520, %v1440
      %v1522 = vpop.permute.xlu0 %1521
      %v1524 = vmul.f32 %v1522, %v599
      %v1525 = vadd.f32 %v1519, %v1524
      %1526 = vset.pattern.permute.xlu0 14
      %1527 = vperm.xlu0 %1526, %v1440
      %v1528 = vpop.permute.xlu0 %1527
      %v1530 = vmul.f32 %v1528, %v609
      %v1531 = vadd.f32 %v1525, %v1530
      %1532 = vset.pattern.permute.xlu0 15
      %1533 = vperm.xlu0 %1532, %v1440
      %v1534 = vpop.permute.xlu0 %1533
      %v1536 = vmul.f32 %v1534, %v619
      %v1537 = vadd.f32 %v1531, %v1536
      %1538 = vset.pattern.permute.xlu0 16
      %1539 = vperm.xlu0 %1538, %v1440
      %v1540 = vpop.permute.xlu0 %1539
      %v1542 = vmul.f32 %v1540, %v629
      %v1543 = vadd.f32 %v1537, %v1542
      %1544 = vset.pattern.permute.xlu0 17
      %1545 = vperm.xlu0 %1544, %v1440
      %v1546 = vpop.permute.xlu0 %1545
      %v1548 = vmul.f32 %v1546, %v639
      %v1549 = vadd.f32 %v1543, %v1548
      %1550 = vset.pattern.permute.xlu0 18
      %1551 = vperm.xlu0 %1550, %v1440
      %v1552 = vpop.permute.xlu0 %1551
      %v1554 = vmul.f32 %v1552, %v649
      %v1555 = vadd.f32 %v1549, %v1554
      %1556 = vset.pattern.permute.xlu0 19
      %1557 = vperm.xlu0 %1556, %v1440
      %v1558 = vpop.permute.xlu0 %1557
      %v1560 = vmul.f32 %v1558, %v659
      %v1561 = vadd.f32 %v1555, %v1560
      %1562 = vset.pattern.permute.xlu0 20
      %1563 = vperm.xlu0 %1562, %v1440
      %v1564 = vpop.permute.xlu0 %1563
      %v1566 = vmul.f32 %v1564, %v669
      %v1567 = vadd.f32 %v1561, %v1566
      %1568 = vset.pattern.permute.xlu0 21
      %1569 = vperm.xlu0 %1568, %v1440
      %v1570 = vpop.permute.xlu0 %1569
      %v1572 = vmul.f32 %v1570, %v679
      %v1573 = vadd.f32 %v1567, %v1572
      %1574 = vset.pattern.permute.xlu0 22
      %1575 = vperm.xlu0 %1574, %v1440
      %v1576 = vpop.permute.xlu0 %1575
      %v1578 = vmul.f32 %v1576, %v689
      %v1579 = vadd.f32 %v1573, %v1578
      %1580 = vset.pattern.permute.xlu0 23
      %1581 = vperm.xlu0 %1580, %v1440
      %v1582 = vpop.permute.xlu0 %1581
      %v1584 = vmul.f32 %v1582, %v699
      %v1585 = vadd.f32 %v1579, %v1584
      %1586 = vset.pattern.permute.xlu0 24
      %1587 = vperm.xlu0 %1586, %v1440
      %v1588 = vpop.permute.xlu0 %1587
      %v1590 = vmul.f32 %v1588, %v709
      %v1591 = vadd.f32 %v1585, %v1590
      %1592 = vset.pattern.permute.xlu0 25
      %1593 = vperm.xlu0 %1592, %v1440
      %v1594 = vpop.permute.xlu0 %1593
      %v1596 = vmul.f32 %v1594, %v719
      %v1597 = vadd.f32 %v1591, %v1596
      %1598 = vset.pattern.permute.xlu0 26
      %1599 = vperm.xlu0 %1598, %v1440
      %v1600 = vpop.permute.xlu0 %1599
      %v1602 = vmul.f32 %v1600, %v729
      %v1603 = vadd.f32 %v1597, %v1602
      %1604 = vset.pattern.permute.xlu0 27
      %1605 = vperm.xlu0 %1604, %v1440
      %v1606 = vpop.permute.xlu0 %1605
      %v1608 = vmul.f32 %v1606, %v739
      %v1609 = vadd.f32 %v1603, %v1608
      %1610 = vset.pattern.permute.xlu0 28
      %1611 = vperm.xlu0 %1610, %v1440
      %v1612 = vpop.permute.xlu0 %1611
      %v1614 = vmul.f32 %v1612, %v749
      %v1615 = vadd.f32 %v1609, %v1614
      %1616 = vset.pattern.permute.xlu0 29
      %1617 = vperm.xlu0 %1616, %v1440
      %v1618 = vpop.permute.xlu0 %1617
      %v1620 = vmul.f32 %v1618, %v759
      %v1621 = vadd.f32 %v1615, %v1620
      %1622 = vset.pattern.permute.xlu0 30
      %1623 = vperm.xlu0 %1622, %v1440
      %v1624 = vpop.permute.xlu0 %1623
      %v1626 = vmul.f32 %v1624, %v769
      %v1627 = vadd.f32 %v1621, %v1626
      %1628 = vset.pattern.permute.xlu0 31
      %1629 = vperm.xlu0 %1628, %v1440
      %v1630 = vpop.permute.xlu0 %1629
      %v1632 = vmul.f32 %v1630, %v779
      %v1633 = vadd.f32 %v1627, %v1632
      %v1634 = vstv %s79
      %v1635 = vmul.f32 %v1634, %v1633
      %v1636 = vadd.f32 %v86, %v1635
      %1638 = vset.pattern.permute.xlu0 0
      %1639 = vperm.xlu0 %1638, %v1636
      %v1640 = vpop.permute.xlu0 %1639
      %v1642 = vmul.f32 %v1640, %v95
      %v1643 = vadd.f32 %v47, %v1642
      %1644 = vset.pattern.permute.xlu0 1
      %1645 = vperm.xlu0 %1644, %v1636
      %v1646 = vpop.permute.xlu0 %1645
      %v1648 = vmul.f32 %v1646, %v105
      %v1649 = vadd.f32 %v1643, %v1648
      %1650 = vset.pattern.permute.xlu0 2
      %1651 = vperm.xlu0 %1650, %v1636
      %v1652 = vpop.permute.xlu0 %1651
      %v1654 = vmul.f32 %v1652, %v115
      %v1655 = vadd.f32 %v1649, %v1654
      %1656 = vset.pattern.permute.xlu0 3
      %1657 = vperm.xlu0 %1656, %v1636
      %v1658 = vpop.permute.xlu0 %1657
      %v1660 = vmul.f32 %v1658, %v125
      %v1661 = vadd.f32 %v1655, %v1660
      %vm1662 = vcmp.gt.f32.partialorder %v1661, 0.0
      %v1663 = vmin.f32 %v1661, 0.0
      %v1664 = vmul.f32 %v1663, 1.442695
      %v1665 = vpow.pop %v1664
      %v1666 = vsub.f32 %v1665, 1.0
      %v1667 = vsel %vm1662, %v1661, %v1666
      %1669 = vset.pattern.permute.xlu0 0
      %1670 = vperm.xlu0 %1669, %v1667
      %v1671 = vpop.permute.xlu0 %1670
      %v1673 = vmul.f32 %v1671, %v142
      %v1674 = vadd.f32 %v54, %v1673
      %1675 = vset.pattern.permute.xlu0 1
      %1676 = vperm.xlu0 %1675, %v1667
      %v1677 = vpop.permute.xlu0 %1676
      %v1679 = vmul.f32 %v1677, %v152
      %v1680 = vadd.f32 %v1674, %v1679
      %1681 = vset.pattern.permute.xlu0 2
      %1682 = vperm.xlu0 %1681, %v1667
      %v1683 = vpop.permute.xlu0 %1682
      %v1685 = vmul.f32 %v1683, %v162
      %v1686 = vadd.f32 %v1680, %v1685
      %1687 = vset.pattern.permute.xlu0 3
      %1688 = vperm.xlu0 %1687, %v1667
      %v1689 = vpop.permute.xlu0 %1688
      %v1691 = vmul.f32 %v1689, %v172
      %v1692 = vadd.f32 %v1686, %v1691
      %1693 = vset.pattern.permute.xlu0 4
      %1694 = vperm.xlu0 %1693, %v1667
      %v1695 = vpop.permute.xlu0 %1694
      %v1697 = vmul.f32 %v1695, %v182
      %v1698 = vadd.f32 %v1692, %v1697
      %1699 = vset.pattern.permute.xlu0 5
      %1700 = vperm.xlu0 %1699, %v1667
      %v1701 = vpop.permute.xlu0 %1700
      %v1703 = vmul.f32 %v1701, %v192
      %v1704 = vadd.f32 %v1698, %v1703
      %1705 = vset.pattern.permute.xlu0 6
      %1706 = vperm.xlu0 %1705, %v1667
      %v1707 = vpop.permute.xlu0 %1706
      %v1709 = vmul.f32 %v1707, %v202
      %v1710 = vadd.f32 %v1704, %v1709
      %1711 = vset.pattern.permute.xlu0 7
      %1712 = vperm.xlu0 %1711, %v1667
      %v1713 = vpop.permute.xlu0 %1712
      %v1715 = vmul.f32 %v1713, %v212
      %v1716 = vadd.f32 %v1710, %v1715
      %1717 = vset.pattern.permute.xlu0 8
      %1718 = vperm.xlu0 %1717, %v1667
      %v1719 = vpop.permute.xlu0 %1718
      %v1721 = vmul.f32 %v1719, %v222
      %v1722 = vadd.f32 %v1716, %v1721
      %1723 = vset.pattern.permute.xlu0 9
      %1724 = vperm.xlu0 %1723, %v1667
      %v1725 = vpop.permute.xlu0 %1724
      %v1727 = vmul.f32 %v1725, %v232
      %v1728 = vadd.f32 %v1722, %v1727
      %1729 = vset.pattern.permute.xlu0 10
      %1730 = vperm.xlu0 %1729, %v1667
      %v1731 = vpop.permute.xlu0 %1730
      %v1733 = vmul.f32 %v1731, %v242
      %v1734 = vadd.f32 %v1728, %v1733
      %1735 = vset.pattern.permute.xlu0 11
      %1736 = vperm.xlu0 %1735, %v1667
      %v1737 = vpop.permute.xlu0 %1736
      %v1739 = vmul.f32 %v1737, %v252
      %v1740 = vadd.f32 %v1734, %v1739
      %1741 = vset.pattern.permute.xlu0 12
      %1742 = vperm.xlu0 %1741, %v1667
      %v1743 = vpop.permute.xlu0 %1742
      %v1745 = vmul.f32 %v1743, %v262
      %v1746 = vadd.f32 %v1740, %v1745
      %1747 = vset.pattern.permute.xlu0 13
      %1748 = vperm.xlu0 %1747, %v1667
      %v1749 = vpop.permute.xlu0 %1748
      %v1751 = vmul.f32 %v1749, %v272
      %v1752 = vadd.f32 %v1746, %v1751
      %1753 = vset.pattern.permute.xlu0 14
      %1754 = vperm.xlu0 %1753, %v1667
      %v1755 = vpop.permute.xlu0 %1754
      %v1757 = vmul.f32 %v1755, %v282
      %v1758 = vadd.f32 %v1752, %v1757
      %1759 = vset.pattern.permute.xlu0 15
      %1760 = vperm.xlu0 %1759, %v1667
      %v1761 = vpop.permute.xlu0 %1760
      %v1763 = vmul.f32 %v1761, %v292
      %v1764 = vadd.f32 %v1758, %v1763
      %1765 = vset.pattern.permute.xlu0 16
      %1766 = vperm.xlu0 %1765, %v1667
      %v1767 = vpop.permute.xlu0 %1766
      %v1769 = vmul.f32 %v1767, %v302
      %v1770 = vadd.f32 %v1764, %v1769
      %1771 = vset.pattern.permute.xlu0 17
      %1772 = vperm.xlu0 %1771, %v1667
      %v1773 = vpop.permute.xlu0 %1772
      %v1775 = vmul.f32 %v1773, %v312
      %v1776 = vadd.f32 %v1770, %v1775
      %1777 = vset.pattern.permute.xlu0 18
      %1778 = vperm.xlu0 %1777, %v1667
      %v1779 = vpop.permute.xlu0 %1778
      %v1781 = vmul.f32 %v1779, %v322
      %v1782 = vadd.f32 %v1776, %v1781
      %1783 = vset.pattern.permute.xlu0 19
      %1784 = vperm.xlu0 %1783, %v1667
      %v1785 = vpop.permute.xlu0 %1784
      %v1787 = vmul.f32 %v1785, %v332
      %v1788 = vadd.f32 %v1782, %v1787
      %1789 = vset.pattern.permute.xlu0 20
      %1790 = vperm.xlu0 %1789, %v1667
      %v1791 = vpop.permute.xlu0 %1790
      %v1793 = vmul.f32 %v1791, %v342
      %v1794 = vadd.f32 %v1788, %v1793
      %1795 = vset.pattern.permute.xlu0 21
      %1796 = vperm.xlu0 %1795, %v1667
      %v1797 = vpop.permute.xlu0 %1796
      %v1799 = vmul.f32 %v1797, %v352
      %v1800 = vadd.f32 %v1794, %v1799
      %1801 = vset.pattern.permute.xlu0 22
      %1802 = vperm.xlu0 %1801, %v1667
      %v1803 = vpop.permute.xlu0 %1802
      %v1805 = vmul.f32 %v1803, %v362
      %v1806 = vadd.f32 %v1800, %v1805
      %1807 = vset.pattern.permute.xlu0 23
      %1808 = vperm.xlu0 %1807, %v1667
      %v1809 = vpop.permute.xlu0 %1808
      %v1811 = vmul.f32 %v1809, %v372
      %v1812 = vadd.f32 %v1806, %v1811
      %1813 = vset.pattern.permute.xlu0 24
      %1814 = vperm.xlu0 %1813, %v1667
      %v1815 = vpop.permute.xlu0 %1814
      %v1817 = vmul.f32 %v1815, %v382
      %v1818 = vadd.f32 %v1812, %v1817
      %1819 = vset.pattern.permute.xlu0 25
      %1820 = vperm.xlu0 %1819, %v1667
      %v1821 = vpop.permute.xlu0 %1820
      %v1823 = vmul.f32 %v1821, %v392
      %v1824 = vadd.f32 %v1818, %v1823
      %1825 = vset.pattern.permute.xlu0 26
      %1826 = vperm.xlu0 %1825, %v1667
      %v1827 = vpop.permute.xlu0 %1826
      %v1829 = vmul.f32 %v1827, %v402
      %v1830 = vadd.f32 %v1824, %v1829
      %1831 = vset.pattern.permute.xlu0 27
      %1832 = vperm.xlu0 %1831, %v1667
      %v1833 = vpop.permute.xlu0 %1832
      %v1835 = vmul.f32 %v1833, %v412
      %v1836 = vadd.f32 %v1830, %v1835
      %1837 = vset.pattern.permute.xlu0 28
      %1838 = vperm.xlu0 %1837, %v1667
      %v1839 = vpop.permute.xlu0 %1838
      %v1841 = vmul.f32 %v1839, %v422
      %v1842 = vadd.f32 %v1836, %v1841
      %1843 = vset.pattern.permute.xlu0 29
      %1844 = vperm.xlu0 %1843, %v1667
      %v1845 = vpop.permute.xlu0 %1844
      %v1847 = vmul.f32 %v1845, %v432
      %v1848 = vadd.f32 %v1842, %v1847
      %1849 = vset.pattern.permute.xlu0 30
      %1850 = vperm.xlu0 %1849, %v1667
      %v1851 = vpop.permute.xlu0 %1850
      %v1853 = vmul.f32 %v1851, %v442
      %v1854 = vadd.f32 %v1848, %v1853
      %1855 = vset.pattern.permute.xlu0 31
      %1856 = vperm.xlu0 %1855, %v1667
      %v1857 = vpop.permute.xlu0 %1856
      %v1859 = vmul.f32 %v1857, %v452
      %v1860 = vadd.f32 %v1854, %v1859
      %vm1861 = vcmp.gt.f32.partialorder %v1860, 0.0
      %v1862 = vmin.f32 %v1860, 0.0
      %v1863 = vmul.f32 %v1862, 1.442695
      %v1864 = vpow.pop %v1863
      %v1865 = vsub.f32 %v1864, 1.0
      %v1866 = vsel %vm1861, %v1860, %v1865
      %1868 = vset.pattern.permute.xlu0 0
      %1869 = vperm.xlu0 %1868, %v1866
      %v1870 = vpop.permute.xlu0 %1869
      %v1872 = vmul.f32 %v1870, %v469
      %v1873 = vadd.f32 %v61, %v1872
      %1874 = vset.pattern.permute.xlu0 1
      %1875 = vperm.xlu0 %1874, %v1866
      %v1876 = vpop.permute.xlu0 %1875
      %v1878 = vmul.f32 %v1876, %v479
      %v1879 = vadd.f32 %v1873, %v1878
      %1880 = vset.pattern.permute.xlu0 2
      %1881 = vperm.xlu0 %1880, %v1866
      %v1882 = vpop.permute.xlu0 %1881
      %v1884 = vmul.f32 %v1882, %v489
      %v1885 = vadd.f32 %v1879, %v1884
      %1886 = vset.pattern.permute.xlu0 3
      %1887 = vperm.xlu0 %1886, %v1866
      %v1888 = vpop.permute.xlu0 %1887
      %v1890 = vmul.f32 %v1888, %v499
      %v1891 = vadd.f32 %v1885, %v1890
      %1892 = vset.pattern.permute.xlu0 4
      %1893 = vperm.xlu0 %1892, %v1866
      %v1894 = vpop.permute.xlu0 %1893
      %v1896 = vmul.f32 %v1894, %v509
      %v1897 = vadd.f32 %v1891, %v1896
      %1898 = vset.pattern.permute.xlu0 5
      %1899 = vperm.xlu0 %1898, %v1866
      %v1900 = vpop.permute.xlu0 %1899
      %v1902 = vmul.f32 %v1900, %v519
      %v1903 = vadd.f32 %v1897, %v1902
      %1904 = vset.pattern.permute.xlu0 6
      %1905 = vperm.xlu0 %1904, %v1866
      %v1906 = vpop.permute.xlu0 %1905
      %v1908 = vmul.f32 %v1906, %v529
      %v1909 = vadd.f32 %v1903, %v1908
      %1910 = vset.pattern.permute.xlu0 7
      %1911 = vperm.xlu0 %1910, %v1866
      %v1912 = vpop.permute.xlu0 %1911
      %v1914 = vmul.f32 %v1912, %v539
      %v1915 = vadd.f32 %v1909, %v1914
      %1916 = vset.pattern.permute.xlu0 8
      %1917 = vperm.xlu0 %1916, %v1866
      %v1918 = vpop.permute.xlu0 %1917
      %v1920 = vmul.f32 %v1918, %v549
      %v1921 = vadd.f32 %v1915, %v1920
      %1922 = vset.pattern.permute.xlu0 9
      %1923 = vperm.xlu0 %1922, %v1866
      %v1924 = vpop.permute.xlu0 %1923
      %v1926 = vmul.f32 %v1924, %v559
      %v1927 = vadd.f32 %v1921, %v1926
      %1928 = vset.pattern.permute.xlu0 10
      %1929 = vperm.xlu0 %1928, %v1866
      %v1930 = vpop.permute.xlu0 %1929
      %v1932 = vmul.f32 %v1930, %v569
      %v1933 = vadd.f32 %v1927, %v1932
      %1934 = vset.pattern.permute.xlu0 11
      %1935 = vperm.xlu0 %1934, %v1866
      %v1936 = vpop.permute.xlu0 %1935
      %v1938 = vmul.f32 %v1936, %v579
      %v1939 = vadd.f32 %v1933, %v1938
      %1940 = vset.pattern.permute.xlu0 12
      %1941 = vperm.xlu0 %1940, %v1866
      %v1942 = vpop.permute.xlu0 %1941
      %v1944 = vmul.f32 %v1942, %v589
      %v1945 = vadd.f32 %v1939, %v1944
      %1946 = vset.pattern.permute.xlu0 13
      %1947 = vperm.xlu0 %1946, %v1866
      %v1948 = vpop.permute.xlu0 %1947
      %v1950 = vmul.f32 %v1948, %v599
      %v1951 = vadd.f32 %v1945, %v1950
      %1952 = vset.pattern.permute.xlu0 14
      %1953 = vperm.xlu0 %1952, %v1866
      %v1954 = vpop.permute.xlu0 %1953
      %v1956 = vmul.f32 %v1954, %v609
      %v1957 = vadd.f32 %v1951, %v1956
      %1958 = vset.pattern.permute.xlu0 15
      %1959 = vperm.xlu0 %1958, %v1866
      %v1960 = vpop.permute.xlu0 %1959
      %v1962 = vmul.f32 %v1960, %v619
      %v1963 = vadd.f32 %v1957, %v1962
      %1964 = vset.pattern.permute.xlu0 16
      %1965 = vperm.xlu0 %1964, %v1866
      %v1966 = vpop.permute.xlu0 %1965
      %v1968 = vmul.f32 %v1966, %v629
      %v1969 = vadd.f32 %v1963, %v1968
      %1970 = vset.pattern.permute.xlu0 17
      %1971 = vperm.xlu0 %1970, %v1866
      %v1972 = vpop.permute.xlu0 %1971
      %v1974 = vmul.f32 %v1972, %v639
      %v1975 = vadd.f32 %v1969, %v1974
      %1976 = vset.pattern.permute.xlu0 18
      %1977 = vperm.xlu0 %1976, %v1866
      %v1978 = vpop.permute.xlu0 %1977
      %v1980 = vmul.f32 %v1978, %v649
      %v1981 = vadd.f32 %v1975, %v1980
      %1982 = vset.pattern.permute.xlu0 19
      %1983 = vperm.xlu0 %1982, %v1866
      %v1984 = vpop.permute.xlu0 %1983
      %v1986 = vmul.f32 %v1984, %v659
      %v1987 = vadd.f32 %v1981, %v1986
      %1988 = vset.pattern.permute.xlu0 20
      %1989 = vperm.xlu0 %1988, %v1866
      %v1990 = vpop.permute.xlu0 %1989
      %v1992 = vmul.f32 %v1990, %v669
      %v1993 = vadd.f32 %v1987, %v1992
      %1994 = vset.pattern.permute.xlu0 21
      %1995 = vperm.xlu0 %1994, %v1866
      %v1996 = vpop.permute.xlu0 %1995
      %v1998 = vmul.f32 %v1996, %v679
      %v1999 = vadd.f32 %v1993, %v1998
      %2000 = vset.pattern.permute.xlu0 22
      %2001 = vperm.xlu0 %2000, %v1866
      %v2002 = vpop.permute.xlu0 %2001
      %v2004 = vmul.f32 %v2002, %v689
      %v2005 = vadd.f32 %v1999, %v2004
      %2006 = vset.pattern.permute.xlu0 23
      %2007 = vperm.xlu0 %2006, %v1866
      %v2008 = vpop.permute.xlu0 %2007
      %v2010 = vmul.f32 %v2008, %v699
      %v2011 = vadd.f32 %v2005, %v2010
      %2012 = vset.pattern.permute.xlu0 24
      %2013 = vperm.xlu0 %2012, %v1866
      %v2014 = vpop.permute.xlu0 %2013
      %v2016 = vmul.f32 %v2014, %v709
      %v2017 = vadd.f32 %v2011, %v2016
      %2018 = vset.pattern.permute.xlu0 25
      %2019 = vperm.xlu0 %2018, %v1866
      %v2020 = vpop.permute.xlu0 %2019
      %v2022 = vmul.f32 %v2020, %v719
      %v2023 = vadd.f32 %v2017, %v2022
      %2024 = vset.pattern.permute.xlu0 26
      %2025 = vperm.xlu0 %2024, %v1866
      %v2026 = vpop.permute.xlu0 %2025
      %v2028 = vmul.f32 %v2026, %v729
      %v2029 = vadd.f32 %v2023, %v2028
      %2030 = vset.pattern.permute.xlu0 27
      %2031 = vperm.xlu0 %2030, %v1866
      %v2032 = vpop.permute.xlu0 %2031
      %v2034 = vmul.f32 %v2032, %v739
      %v2035 = vadd.f32 %v2029, %v2034
      %2036 = vset.pattern.permute.xlu0 28
      %2037 = vperm.xlu0 %2036, %v1866
      %v2038 = vpop.permute.xlu0 %2037
      %v2040 = vmul.f32 %v2038, %v749
      %v2041 = vadd.f32 %v2035, %v2040
      %2042 = vset.pattern.permute.xlu0 29
      %2043 = vperm.xlu0 %2042, %v1866
      %v2044 = vpop.permute.xlu0 %2043
      %v2046 = vmul.f32 %v2044, %v759
      %v2047 = vadd.f32 %v2041, %v2046
      %2048 = vset.pattern.permute.xlu0 30
      %2049 = vperm.xlu0 %2048, %v1866
      %v2050 = vpop.permute.xlu0 %2049
      %v2052 = vmul.f32 %v2050, %v769
      %v2053 = vadd.f32 %v2047, %v2052
      %2054 = vset.pattern.permute.xlu0 31
      %2055 = vperm.xlu0 %2054, %v1866
      %v2056 = vpop.permute.xlu0 %2055
      %v2058 = vmul.f32 %v2056, %v779
      %v2059 = vadd.f32 %v2053, %v2058
      %v2060 = vrcp.pop 6.0
      %s2061 = vtos %v2060
      %s2062 = smul.f32 %s79, %s2061
      %v2063 = vmul.f32 %v1208, 2.0
      %v2064 = vadd.f32 %v781, %v2063
      %v2065 = vmul.f32 %v1633, 2.0
      %v2066 = vadd.f32 %v2064, %v2065
      %v2067 = vadd.f32 %v2066, %v2059
      %v2068 = vstv %s2062
      %v2069 = vmul.f32 %v2068, %v2067
      %v2070 = vadd.f32 %v86, %v2069
    $region41: #{tpu_custom_call.1} parent=33 // loop_footer
      %s85 = sadd.s32 1, %s81
    $region42: #{tpu_custom_call.1} parent=33 // loop_footer_branch
      %80 = sbr.rel target = $region38
    $region43: #{tpu_custom_call.1} parent=33 // loop_exit
      _
    %s2071 = smul.u32 %s67, 8
    %s2072 = scalar_lea.vmem %s8, %s2071
    %2073 = vst.msk [vmem:[%s2072] sm:$0xff] %vm64, %v86
  $region34: #{tpu_custom_call.1} parent=0 // loop_footer
    %s71 = sadd.s32 1, %s67
  $region35: #{tpu_custom_call.1} parent=0 // loop_footer_branch
    %66 = sbr.rel target = $region31
  $region36: #{tpu_custom_call.1} parent=0 // loop_exit
    _
  // Predicated region
  $region44: #{tpu_custom_call.1} parent=0 // pred_check
    _
  $region45: #{tpu_custom_call.1} parent=0 // pred_check_branch
    %2075 = sbr.rel (0) target = $region47
  $region46: #{tpu_custom_call.1} parent=0 // pred_region
    _
  $region47: #{tpu_custom_call.1} parent=0 // pred_fallthru
    _
  // Predicated region
  $region48: #{tpu_custom_call.1} parent=0 // pred_check
    _
  $region49: #{tpu_custom_call.1} parent=0 // pred_check_branch
    %2077 = sbr.rel (0) target = $region51
  $region50: #{tpu_custom_call.1} parent=0 // pred_region
    _
  $region51: #{tpu_custom_call.1} parent=0 // pred_fallthru
    _

</llo_original>
